<compile_context>
chip_gen: v7x
topology: tpu7x:2x2x1
jax: 0.10.0
libtpu: 0.0.40
codegen_flags: <defaults>
</compile_context>

<pallas_src>
import functools
import numpy as np
import jax
import jax.numpy as jnp
from jax.experimental import pallas as pl
from jax.experimental.pallas import tpu as pltpu  # noqa: F401  (TPU backend assumed)

# ----------------------------- configuration -----------------------------
C_IN = 4
C_FEAT = 16
FEAT_STRIDE = 2
N_ANCHOR = 3
N_ROIS = 16          # proposals kept (no NMS, see TODO below)
ROI_SIZE = 2
HIDDEN = 32
N_CLASS = 5          # 4 foreground classes + background


@functools.lru_cache(maxsize=1)
def _compute_dtype():
    """bf16 MXU operands on v6e/v7x (f32 accumulation); f32 on v5e and older."""
    try:
        kind = jax.devices()[0].device_kind.lower()
    except Exception:
        return jnp.float32
    return jnp.bfloat16 if ("v6" in kind or "v7" in kind) else jnp.float32


def _cost(flops, out_bytes, *arrays):
    return pl.CostEstimate(
        flops=int(flops), transcendentals=0,
        bytes_accessed=int(out_bytes)
        + sum(int(a.size) * a.dtype.itemsize for a in arrays))


# ------------------------------ Pallas kernels ------------------------------
def _conv3x3_kernel(xp_ref, w_ref, b_ref, o_ref, *, H, W, Cin, relu):
    """o = relu?(conv3x3(xp) + b).  xp:(H+2, W+2, Cin) pre-padded, w:(9*Cin, Cout).
    im2col is folded into the kernel: 9 shifted taps, one MXU matmul each,
    accumulated in f32 — no 9x patch tensor ever hits HBM."""
    acc = jnp.zeros(o_ref.shape, jnp.float32)
    for di in range(3):
        for dj in range(3):
            tap = xp_ref[di:di + H, dj:dj + W, :].reshape(H * W, Cin)
            wk = w_ref[(di * 3 + dj) * Cin:(di * 3 + dj + 1) * Cin, :]
            acc = acc + jnp.dot(tap, wk, preferred_element_type=jnp.float32)
    acc = acc + b_ref[...]
    if relu:
        acc = jnp.maximum(acc, 0.0)
    o_ref[...] = acc.astype(o_ref.dtype)


def _rpn_kernel(hp_ref, wc_ref, bc_ref, wh_ref, bh_ref, o_ref, *, H, W, Cin):
    """Fused RPN: 3x3 conv + ReLU, then fused 1x1 loc/score matmul.
    The conv output ("mid") stays in vregs/VMEM."""
    Cout = wc_ref.shape[-1]
    acc = jnp.zeros((H * W, Cout), jnp.float32)
    for di in range(3):
        for dj in range(3):
            tap = hp_ref[di:di + H, dj:dj + W, :].reshape(H * W, Cin)
            wk = wc_ref[(di * 3 + dj) * Cin:(di * 3 + dj + 1) * Cin, :]
            acc = acc + jnp.dot(tap, wk, preferred_element_type=jnp.float32)
    mid = jnp.maximum(acc + bc_ref[...], 0.0).astype(wh_ref.dtype)
    out = jnp.dot(mid, wh_ref[...], preferred_element_type=jnp.float32) + bh_ref[...]
    o_ref[...] = out.astype(o_ref.dtype)


def _head_kernel(x_ref, w1_ref, b1_ref, w2_ref, b2_ref, w3_ref, b3_ref, o_ref):
    """Fused head: fc1+ReLU -> fc2+ReLU -> fused cls_loc/score matmul.
    No HBM round-trips for the intermediates."""
    cdt = w1_ref.dtype
    h1 = jnp.dot(x_ref[...], w1_ref[...], preferred_element_type=jnp.float32) + b1_ref[...]
    h1 = jnp.maximum(h1, 0.0).astype(cdt)
    h2 = jnp.dot(h1, w2_ref[...], preferred_element_type=jnp.float32) + b2_ref[...]
    h2 = jnp.maximum(h2, 0.0).astype(cdt)
    out = jnp.dot(h2, w3_ref[...], preferred_element_type=jnp.float32) + b3_ref[...]
    o_ref[...] = out.astype(o_ref.dtype)


# ----------------------------- kernel wrappers ------------------------------
def conv3x3(x_nhwc, w_hwio, b, relu=True):
    """3x3 conv, stride 1, pad 1 on a batch-1 NHWC tensor.  Single pallas_call,
    single grid step (full-M tile), im2col folded into the kernel."""
    N, H, W, Cin = x_nhwc.shape
    assert N == 1
    Cout = w_hwio.shape[-1]
    cdt = _compute_dtype()
    xp = jnp.pad(x_nhwc[0], ((1, 1), (1, 1), (0, 0))).astype(cdt)      # (H+2, W+2, Cin)
    w2 = w_hwio.reshape(9 * Cin, Cout).astype(cdt)
    b2 = b.reshape(1, Cout).astype(jnp.float32)
    y = pl.pallas_call(
        functools.partial(_conv3x3_kernel, H=H, W=W, Cin=Cin, relu=relu),
        out_shape=jax.ShapeDtypeStruct((H * W, Cout), jnp.float32),
        cost_estimate=_cost(2 * H * W * 9 * Cin * Cout, H * W * Cout * 4, xp, w2, b2),
    )(xp, w2, b2)
    return y.reshape(1, H, W, Cout)


def rpn_conv_heads(h_nhwc, p):
    """Fused RPN compute: conv3x3+ReLU and the (concatenated) 1x1 loc/score convs."""
    N, Hf, Wf, C = h_nhwc.shape
    assert N == 1
    cdt = _compute_dtype()
    hp = jnp.pad(h_nhwc[0], ((1, 1), (1, 1), (0, 0))).astype(cdt)      # (Hf+2, Wf+2, C)
    wc = p["rpn_conv_w"].reshape(9 * C, C).astype(cdt)
    bc = p["rpn_conv_b"].reshape(1, C).astype(jnp.float32)
    wh = jnp.concatenate([p["rpn_loc_w"], p["rpn_score_w"]], axis=1).astype(cdt)   # (C, A*6)
    bh = jnp.concatenate([p["rpn_loc_b"], p["rpn_score_b"]]).reshape(1, -1).astype(jnp.float32)
    n_out = wh.shape[1]
    flops = 2 * Hf * Wf * (9 * C * C + C * n_out)
    out = pl.pallas_call(
        functools.partial(_rpn_kernel, H=Hf, W=Wf, Cin=C),
        out_shape=jax.ShapeDtypeStruct((Hf * Wf, n_out), jnp.float32),
        cost_estimate=_cost(flops, Hf * Wf * n_out * 4, hp, wc, bc, wh, bh),
    )(hp, wc, bc, wh, bh)
    locs2d = out[:, :N_ANCHOR * 4]
    scores2d = out[:, N_ANCHOR * 4:]
    return locs2d, scores2d


def head_mlp(pooled_flat, p):
    """Entire head MLP in one kernel; cls_loc/score weights fused into one matmul."""
    R, F = pooled_flat.shape
    cdt = _compute_dtype()
    x = pooled_flat.astype(cdt)
    w1 = p["fc1_w"].astype(cdt)
    b1 = p["fc1_b"].reshape(1, -1).astype(jnp.float32)
    w2 = p["fc2_w"].astype(cdt)
    b2 = p["fc2_b"].reshape(1, -1).astype(jnp.float32)
    w3 = jnp.concatenate([p["cls_loc_w"], p["score_w"]], axis=1).astype(cdt)       # (HIDDEN, 25)
    b3 = jnp.concatenate([p["cls_loc_b"], p["score_b"]]).reshape(1, -1).astype(jnp.float32)
    n_out = w3.shape[1]
    flops = 2 * R * (F * HIDDEN + HIDDEN * HIDDEN + HIDDEN * n_out)
    out = pl.pallas_call(
        _head_kernel,
        out_shape=jax.ShapeDtypeStruct((R, n_out), jnp.float32),
        cost_estimate=_cost(flops, R * n_out * 4, x, w1, b1, w2, b2, w3, b3),
    )(x, w1, b1, w2, b2, w3, b3)
    return out[:, :N_CLASS * 4], out[:, N_CLASS * 4:]


# ------------------------------ JAX glue ops --------------------------------
def maxpool2x2(x):
    N, H, W, C = x.shape
    return jnp.max(x.reshape(N, H // 2, 2, W // 2, 2, C), axis=(2, 4))


def generate_anchor_base(base_size=FEAT_STRIDE, ratios=(0.5, 1.0, 2.0), scales=(2.0,)):
    py = px = base_size / 2.0
    out = []
    for r in ratios:
        for s in scales:
            h = base_size * s * np.sqrt(r)
            w = base_size * s * np.sqrt(1.0 / r)
            out.append([py - h / 2, px - w / 2, py + h / 2, px + w / 2])
    return np.asarray(out, np.float32)


def enumerate_anchors(hf, wf):
    ab = generate_anchor_base()                               # (A,4)
    sy = np.arange(0, hf * FEAT_STRIDE, FEAT_STRIDE, dtype=np.float32)
    sx = np.arange(0, wf * FEAT_STRIDE, FEAT_STRIDE, dtype=np.float32)
    sx, sy = np.meshgrid(sx, sy)
    shift = np.stack([sy.ravel(), sx.ravel(), sy.ravel(), sx.ravel()], axis=1)
    anchors = (shift[:, None, :] + ab[None, :, :]).reshape(-1, 4)  # (hf*wf*A, 4)
    return jnp.asarray(anchors)


def loc2bbox(src_bbox, loc):
    sh = src_bbox[:, 2] - src_bbox[:, 0]
    sw = src_bbox[:, 3] - src_bbox[:, 1]
    cy = src_bbox[:, 0] + 0.5 * sh
    cx = src_bbox[:, 1] + 0.5 * sw
    dy, dx, dh, dw = loc[:, 0], loc[:, 1], loc[:, 2], loc[:, 3]
    cy = dy * sh + cy
    cx = dx * sw + cx
    h = jnp.exp(dh) * sh
    w = jnp.exp(dw) * sw
    return jnp.stack([cy - 0.5 * h, cx - 0.5 * w, cy + 0.5 * h, cx + 0.5 * w], axis=1)


def roi_pool_nearest(feat, rois, roi_size, spatial_scale):
    # TODO(synk): true RoIPool max-pooling has data-dependent bin extents;
    #             replaced by nearest-neighbor grid sampling (RoIAlign-1pt).
    Hf, Wf, C = feat.shape
    y1, x1, y2, x2 = (rois[:, i] * spatial_scale for i in range(4))
    bins = (jnp.arange(roi_size, dtype=jnp.float32) + 0.5) / roi_size
    ys = y1[:, None] + bins[None, :] * (y2 - y1)[:, None]
    xs = x1[:, None] + bins[None, :] * (x2 - x1)[:, None]
    yi = jnp.clip(jnp.floor(ys).astype(jnp.int32), 0, Hf - 1)
    xi = jnp.clip(jnp.floor(xs).astype(jnp.int32), 0, Wf - 1)
    return feat[yi[:, :, None], xi[:, None, :], :]            # (R,S,S,C)


# ------------------------------ sub-modules --------------------------------
def extractor_forward(p, x_nhwc):
    h = conv3x3(x_nhwc, p["ext_w"], p["ext_b"], relu=True)
    return maxpool2x2(h)                                      # (N, H/2, W/2, C_FEAT)


def rpn_forward(p, h, img_size, scale):
    del scale  # only used by min-size filtering in the reference impl
    N, Hf, Wf, C = h.shape
    locs2d, scores2d = rpn_conv_heads(h, p)
    rpn_locs = locs2d.reshape(N, Hf * Wf * N_ANCHOR, 4)
    rpn_scores = scores2d.reshape(N, Hf * Wf * N_ANCHOR, 2)

    anchor = enumerate_anchors(Hf, Wf)
    fg = jax.nn.softmax(rpn_scores[0], axis=-1)[:, 1]
    boxes = loc2bbox(anchor, rpn_locs[0])
    boxes = jnp.stack([
        jnp.clip(boxes[:, 0], 0.0, float(img_size[0])),
        jnp.clip(boxes[:, 1], 0.0, float(img_size[1])),
        jnp.clip(boxes[:, 2], 0.0, float(img_size[0])),
        jnp.clip(boxes[:, 3], 0.0, float(img_size[1])),
    ], axis=1)
    # TODO(synk): NMS has data-dependent control flow; proposals are plain top-k by fg score.
    _, idx = jax.lax.top_k(fg, N_ROIS)
    rois = boxes[idx]
    roi_indices = jnp.zeros((N_ROIS,), jnp.int32)             # batch size 1 (as in reference)
    return rpn_locs, rpn_scores, rois, roi_indices, anchor


def head_forward(p, h, rois, roi_indices):
    del roi_indices                                           # batch size 1
    pooled = roi_pool_nearest(h[0], rois, ROI_SIZE, 1.0 / FEAT_STRIDE)
    flat = pooled.reshape(rois.shape[0], -1)                  # (R, S*S*C)
    return head_mlp(flat, p)


def faster_rcnn_forward(p, x_nchw, scale=1.0):
    img_size = x_nchw.shape[2:]                               # (H, W)
    x = jnp.transpose(x_nchw, (0, 2, 3, 1))                   # NCHW -> NHWC
    h = extractor_forward(p, x)
    rpn_locs, rpn_scores, rois, roi_indices, anchor = rpn_forward(p, h, img_size, scale)
    roi_cls_locs, roi_scores = head_forward(p, h, rois, roi_indices)
    return roi_cls_locs, roi_scores, rois, roi_indices


# ------------------------------ parameters ---------------------------------
def init_params(key):
    ks = jax.random.split(key, 8)
    n = lambda k, s: 0.01 * jax.random.normal(k, s, jnp.float32)
    z = lambda s: jnp.zeros(s, jnp.float32)
    return {
        "ext_w": n(ks[0], (3, 3, C_IN, C_FEAT)),       "ext_b": z((C_FEAT,)),
        "rpn_conv_w": n(ks[1], (3, 3, C_FEAT, C_FEAT)), "rpn_conv_b": z((C_FEAT,)),
        "rpn_loc_w": n(ks[2], (C_FEAT, N_ANCHOR * 4)),  "rpn_loc_b": z((N_ANCHOR * 4,)),
        "rpn_score_w": n(ks[3], (C_FEAT, N_ANCHOR * 2)), "rpn_score_b": z((N_ANCHOR * 2,)),
        "fc1_w": n(ks[4], (ROI_SIZE * ROI_SIZE * C_FEAT, HIDDEN)), "fc1_b": z((HIDDEN,)),
        "fc2_w": n(ks[5], (HIDDEN, HIDDEN)),            "fc2_b": z((HIDDEN,)),
        "cls_loc_w": n(ks[6], (HIDDEN, N_CLASS * 4)),   "cls_loc_b": z((N_CLASS * 4,)),
        "score_w": n(ks[7], (HIDDEN, N_CLASS)),         "score_b": z((N_CLASS,)),
    }


# --------------------------------- main -------------------------------------
if __name__ == "__main__":
    key = jax.random.PRNGKey(0)
    kp, kx = jax.random.split(key)
    params = init_params(kp)
    x = jax.random.normal(kx, (1, C_IN, 16, 16), jnp.float32)  # NCHW, batch=1 (as in reference)

    fwd = jax.jit(functools.partial(faster_rcnn_forward, scale=1.0))
    roi_cls_locs, roi_scores, rois, roi_indices = fwd(params, x)
    jax.block_until_ready((roi_cls_locs, roi_scores, rois, roi_indices))

    assert roi_cls_locs.shape == (N_ROIS, N_CLASS * 4)
    assert roi_scores.shape == (N_ROIS, N_CLASS)
    assert rois.shape == (N_ROIS, 4)
    assert roi_indices.shape == (N_ROIS,)
    print("KERNEL_OK")
</pallas_src>

<mosaic_0001>
module attributes {stable_mosaic.version = 11 : i64} {
  func.func @_conv3x3_kernel(%arg0: memref<18x18x4xf32, #tpu.memory_space<vmem>>, %arg1: memref<36x16xf32, #tpu.memory_space<vmem>>, %arg2: memref<1x16xf32, #tpu.memory_space<vmem>>, %arg3: memref<256x16xf32, #tpu.memory_space<vmem>>) attributes {dimension_semantics = [], scalar_prefetch = 0 : i64, scratch_operands = 0 : i64, tpu.core_type = #tpu.core_type<tc>} {
    %cst = arith.constant 0.000000e+00 : f32
    %0 = vector.broadcast %cst : f32 to vector<256x16xf32>
    %c0 = arith.constant 0 : index
    %c0_0 = arith.constant 0 : index
    %c0_1 = arith.constant 0 : index
    %1 = vector.load %arg0[%c0, %c0_0, %c0_1] : memref<18x18x4xf32, #tpu.memory_space<vmem>>, vector<16x16x4xf32>
    %2 = vector.shape_cast %1 : vector<16x16x4xf32> to vector<256x4xf32>
    %c0_2 = arith.constant 0 : index
    %c0_3 = arith.constant 0 : index
    %3 = vector.load %arg1[%c0_2, %c0_3] : memref<36x16xf32, #tpu.memory_space<vmem>>, vector<4x16xf32>
    %cst_4 = arith.constant dense<0.000000e+00> : vector<256x16xf32>
    %4 = tpu.matmul %2, %3, %cst_4 {dimension_numbers = #tpu.dot_dimension_numbers<[1], [0], [0], [1], [0, 0, 1, 1], [], []>} : vector<256x4xf32>, vector<4x16xf32>, vector<256x16xf32> -> vector<256x16xf32>
    %5 = arith.addf %0, %4 : vector<256x16xf32>
    %c0_5 = arith.constant 0 : index
    %c1 = arith.constant 1 : index
    %c0_6 = arith.constant 0 : index
    %6 = vector.load %arg0[%c0_5, %c1, %c0_6] : memref<18x18x4xf32, #tpu.memory_space<vmem>>, vector<16x16x4xf32>
    %7 = vector.shape_cast %6 : vector<16x16x4xf32> to vector<256x4xf32>
    %c4 = arith.constant 4 : index
    %c0_7 = arith.constant 0 : index
    %8 = vector.load %arg1[%c4, %c0_7] : memref<36x16xf32, #tpu.memory_space<vmem>>, vector<4x16xf32>
    %cst_8 = arith.constant dense<0.000000e+00> : vector<256x16xf32>
    %9 = tpu.matmul %7, %8, %cst_8 {dimension_numbers = #tpu.dot_dimension_numbers<[1], [0], [0], [1], [0, 0, 1, 1], [], []>} : vector<256x4xf32>, vector<4x16xf32>, vector<256x16xf32> -> vector<256x16xf32>
    %10 = arith.addf %5, %9 : vector<256x16xf32>
    %c0_9 = arith.constant 0 : index
    %c2 = arith.constant 2 : index
    %c0_10 = arith.constant 0 : index
    %11 = vector.load %arg0[%c0_9, %c2, %c0_10] : memref<18x18x4xf32, #tpu.memory_space<vmem>>, vector<16x16x4xf32>
    %12 = vector.shape_cast %11 : vector<16x16x4xf32> to vector<256x4xf32>
    %c8 = arith.constant 8 : index
    %c0_11 = arith.constant 0 : index
    %13 = vector.load %arg1[%c8, %c0_11] : memref<36x16xf32, #tpu.memory_space<vmem>>, vector<4x16xf32>
    %cst_12 = arith.constant dense<0.000000e+00> : vector<256x16xf32>
    %14 = tpu.matmul %12, %13, %cst_12 {dimension_numbers = #tpu.dot_dimension_numbers<[1], [0], [0], [1], [0, 0, 1, 1], [], []>} : vector<256x4xf32>, vector<4x16xf32>, vector<256x16xf32> -> vector<256x16xf32>
    %15 = arith.addf %10, %14 : vector<256x16xf32>
    %c1_13 = arith.constant 1 : index
    %c0_14 = arith.constant 0 : index
    %c0_15 = arith.constant 0 : index
    %16 = vector.load %arg0[%c1_13, %c0_14, %c0_15] : memref<18x18x4xf32, #tpu.memory_space<vmem>>, vector<16x16x4xf32>
    %17 = vector.shape_cast %16 : vector<16x16x4xf32> to vector<256x4xf32>
    %c12 = arith.constant 12 : index
    %c0_16 = arith.constant 0 : index
    %18 = vector.load %arg1[%c12, %c0_16] : memref<36x16xf32, #tpu.memory_space<vmem>>, vector<4x16xf32>
    %cst_17 = arith.constant dense<0.000000e+00> : vector<256x16xf32>
    %19 = tpu.matmul %17, %18, %cst_17 {dimension_numbers = #tpu.dot_dimension_numbers<[1], [0], [0], [1], [0, 0, 1, 1], [], []>} : vector<256x4xf32>, vector<4x16xf32>, vector<256x16xf32> -> vector<256x16xf32>
    %20 = arith.addf %15, %19 : vector<256x16xf32>
    %c1_18 = arith.constant 1 : index
    %c1_19 = arith.constant 1 : index
    %c0_20 = arith.constant 0 : index
    %21 = vector.load %arg0[%c1_18, %c1_19, %c0_20] : memref<18x18x4xf32, #tpu.memory_space<vmem>>, vector<16x16x4xf32>
    %22 = vector.shape_cast %21 : vector<16x16x4xf32> to vector<256x4xf32>
    %c16 = arith.constant 16 : index
    %c0_21 = arith.constant 0 : index
    %23 = vector.load %arg1[%c16, %c0_21] : memref<36x16xf32, #tpu.memory_space<vmem>>, vector<4x16xf32>
    %cst_22 = arith.constant dense<0.000000e+00> : vector<256x16xf32>
    %24 = tpu.matmul %22, %23, %cst_22 {dimension_numbers = #tpu.dot_dimension_numbers<[1], [0], [0], [1], [0, 0, 1, 1], [], []>} : vector<256x4xf32>, vector<4x16xf32>, vector<256x16xf32> -> vector<256x16xf32>
    %25 = arith.addf %20, %24 : vector<256x16xf32>
    %c1_23 = arith.constant 1 : index
    %c2_24 = arith.constant 2 : index
    %c0_25 = arith.constant 0 : index
    %26 = vector.load %arg0[%c1_23, %c2_24, %c0_25] : memref<18x18x4xf32, #tpu.memory_space<vmem>>, vector<16x16x4xf32>
    %27 = vector.shape_cast %26 : vector<16x16x4xf32> to vector<256x4xf32>
    %c20 = arith.constant 20 : index
    %c0_26 = arith.constant 0 : index
    %28 = vector.load %arg1[%c20, %c0_26] : memref<36x16xf32, #tpu.memory_space<vmem>>, vector<4x16xf32>
    %cst_27 = arith.constant dense<0.000000e+00> : vector<256x16xf32>
    %29 = tpu.matmul %27, %28, %cst_27 {dimension_numbers = #tpu.dot_dimension_numbers<[1], [0], [0], [1], [0, 0, 1, 1], [], []>} : vector<256x4xf32>, vector<4x16xf32>, vector<256x16xf32> -> vector<256x16xf32>
    %30 = arith.addf %25, %29 : vector<256x16xf32>
    %c2_28 = arith.constant 2 : index
    %c0_29 = arith.constant 0 : index
    %c0_30 = arith.constant 0 : index
    %31 = vector.load %arg0[%c2_28, %c0_29, %c0_30] : memref<18x18x4xf32, #tpu.memory_space<vmem>>, vector<16x16x4xf32>
    %32 = vector.shape_cast %31 : vector<16x16x4xf32> to vector<256x4xf32>
    %c24 = arith.constant 24 : index
    %c0_31 = arith.constant 0 : index
    %33 = vector.load %arg1[%c24, %c0_31] : memref<36x16xf32, #tpu.memory_space<vmem>>, vector<4x16xf32>
    %cst_32 = arith.constant dense<0.000000e+00> : vector<256x16xf32>
    %34 = tpu.matmul %32, %33, %cst_32 {dimension_numbers = #tpu.dot_dimension_numbers<[1], [0], [0], [1], [0, 0, 1, 1], [], []>} : vector<256x4xf32>, vector<4x16xf32>, vector<256x16xf32> -> vector<256x16xf32>
    %35 = arith.addf %30, %34 : vector<256x16xf32>
    %c2_33 = arith.constant 2 : index
    %c1_34 = arith.constant 1 : index
    %c0_35 = arith.constant 0 : index
    %36 = vector.load %arg0[%c2_33, %c1_34, %c0_35] : memref<18x18x4xf32, #tpu.memory_space<vmem>>, vector<16x16x4xf32>
    %37 = vector.shape_cast %36 : vector<16x16x4xf32> to vector<256x4xf32>
    %c28 = arith.constant 28 : index
    %c0_36 = arith.constant 0 : index
    %38 = vector.load %arg1[%c28, %c0_36] : memref<36x16xf32, #tpu.memory_space<vmem>>, vector<4x16xf32>
    %cst_37 = arith.constant dense<0.000000e+00> : vector<256x16xf32>
    %39 = tpu.matmul %37, %38, %cst_37 {dimension_numbers = #tpu.dot_dimension_numbers<[1], [0], [0], [1], [0, 0, 1, 1], [], []>} : vector<256x4xf32>, vector<4x16xf32>, vector<256x16xf32> -> vector<256x16xf32>
    %40 = arith.addf %35, %39 : vector<256x16xf32>
    %c2_38 = arith.constant 2 : index
    %c2_39 = arith.constant 2 : index
    %c0_40 = arith.constant 0 : index
    %41 = vector.load %arg0[%c2_38, %c2_39, %c0_40] : memref<18x18x4xf32, #tpu.memory_space<vmem>>, vector<16x16x4xf32>
    %42 = vector.shape_cast %41 : vector<16x16x4xf32> to vector<256x4xf32>
    %c32 = arith.constant 32 : index
    %c0_41 = arith.constant 0 : index
    %43 = vector.load %arg1[%c32, %c0_41] : memref<36x16xf32, #tpu.memory_space<vmem>>, vector<4x16xf32>
    %cst_42 = arith.constant dense<0.000000e+00> : vector<256x16xf32>
    %44 = tpu.matmul %42, %43, %cst_42 {dimension_numbers = #tpu.dot_dimension_numbers<[1], [0], [0], [1], [0, 0, 1, 1], [], []>} : vector<256x4xf32>, vector<4x16xf32>, vector<256x16xf32> -> vector<256x16xf32>
    %45 = arith.addf %40, %44 : vector<256x16xf32>
    %c0_43 = arith.constant 0 : index
    %c0_44 = arith.constant 0 : index
    %46 = vector.load %arg2[%c0_43, %c0_44] : memref<1x16xf32, #tpu.memory_space<vmem>>, vector<1x16xf32>
    %47 = vector.broadcast %46 : vector<1x16xf32> to vector<256x16xf32>
    %48 = arith.addf %45, %47 : vector<256x16xf32>
    %cst_45 = arith.constant 0.000000e+00 : f32
    %49 = vector.broadcast %cst_45 : f32 to vector<256x16xf32>
    %50 = arith.maximumf %48, %49 : vector<256x16xf32>
    %c0_46 = arith.constant 0 : index
    %c0_47 = arith.constant 0 : index
    %51 = vector.load %arg3[%c0_46, %c0_47] : memref<256x16xf32, #tpu.memory_space<vmem>>, vector<256x16xf32>
    tpu.vector_store %arg3[%c0_46, %c0_47], %50 {strides = array<i32>} : memref<256x16xf32, #tpu.memory_space<vmem>>, vector<256x16xf32>,
    return
  }
}

module attributes {stable_mosaic.version = 11 : i64} {
  func.func @_rpn_kernel(%arg0: memref<10x10x16xf32, #tpu.memory_space<vmem>>, %arg1: memref<144x16xf32, #tpu.memory_space<vmem>>, %arg2: memref<1x16xf32, #tpu.memory_space<vmem>>, %arg3: memref<16x18xf32, #tpu.memory_space<vmem>>, %arg4: memref<1x18xf32, #tpu.memory_space<vmem>>, %arg5: memref<64x18xf32, #tpu.memory_space<vmem>>) attributes {dimension_semantics = [], scalar_prefetch = 0 : i64, scratch_operands = 0 : i64, tpu.core_type = #tpu.core_type<tc>} {
    %cst = arith.constant 0.000000e+00 : f32
    %0 = vector.broadcast %cst : f32 to vector<64x16xf32>
    %c0 = arith.constant 0 : index
    %c0_0 = arith.constant 0 : index
    %c0_1 = arith.constant 0 : index
    %1 = vector.load %arg0[%c0, %c0_0, %c0_1] : memref<10x10x16xf32, #tpu.memory_space<vmem>>, vector<8x8x16xf32>
    %2 = vector.shape_cast %1 : vector<8x8x16xf32> to vector<64x16xf32>
    %c0_2 = arith.constant 0 : index
    %c0_3 = arith.constant 0 : index
    %3 = vector.load %arg1[%c0_2, %c0_3] : memref<144x16xf32, #tpu.memory_space<vmem>>, vector<16x16xf32>
    %cst_4 = arith.constant dense<0.000000e+00> : vector<64x16xf32>
    %4 = tpu.matmul %2, %3, %cst_4 {dimension_numbers = #tpu.dot_dimension_numbers<[1], [0], [0], [1], [0, 0, 1, 1], [], []>} : vector<64x16xf32>, vector<16x16xf32>, vector<64x16xf32> -> vector<64x16xf32>
    %5 = arith.addf %0, %4 : vector<64x16xf32>
    %c0_5 = arith.constant 0 : index
    %c1 = arith.constant 1 : index
    %c0_6 = arith.constant 0 : index
    %6 = vector.load %arg0[%c0_5, %c1, %c0_6] : memref<10x10x16xf32, #tpu.memory_space<vmem>>, vector<8x8x16xf32>
    %7 = vector.shape_cast %6 : vector<8x8x16xf32> to vector<64x16xf32>
    %c16 = arith.constant 16 : index
    %c0_7 = arith.constant 0 : index
    %8 = vector.load %arg1[%c16, %c0_7] : memref<144x16xf32, #tpu.memory_space<vmem>>, vector<16x16xf32>
    %cst_8 = arith.constant dense<0.000000e+00> : vector<64x16xf32>
    %9 = tpu.matmul %7, %8, %cst_8 {dimension_numbers = #tpu.dot_dimension_numbers<[1], [0], [0], [1], [0, 0, 1, 1], [], []>} : vector<64x16xf32>, vector<16x16xf32>, vector<64x16xf32> -> vector<64x16xf32>
    %10 = arith.addf %5, %9 : vector<64x16xf32>
    %c0_9 = arith.constant 0 : index
    %c2 = arith.constant 2 : index
    %c0_10 = arith.constant 0 : index
    %11 = vector.load %arg0[%c0_9, %c2, %c0_10] : memref<10x10x16xf32, #tpu.memory_space<vmem>>, vector<8x8x16xf32>
    %12 = vector.shape_cast %11 : vector<8x8x16xf32> to vector<64x16xf32>
    %c32 = arith.constant 32 : index
    %c0_11 = arith.constant 0 : index
    %13 = vector.load %arg1[%c32, %c0_11] : memref<144x16xf32, #tpu.memory_space<vmem>>, vector<16x16xf32>
    %cst_12 = arith.constant dense<0.000000e+00> : vector<64x16xf32>
    %14 = tpu.matmul %12, %13, %cst_12 {dimension_numbers = #tpu.dot_dimension_numbers<[1], [0], [0], [1], [0, 0, 1, 1], [], []>} : vector<64x16xf32>, vector<16x16xf32>, vector<64x16xf32> -> vector<64x16xf32>
    %15 = arith.addf %10, %14 : vector<64x16xf32>
    %c1_13 = arith.constant 1 : index
    %c0_14 = arith.constant 0 : index
    %c0_15 = arith.constant 0 : index
    %16 = vector.load %arg0[%c1_13, %c0_14, %c0_15] : memref<10x10x16xf32, #tpu.memory_space<vmem>>, vector<8x8x16xf32>
    %17 = vector.shape_cast %16 : vector<8x8x16xf32> to vector<64x16xf32>
    %c48 = arith.constant 48 : index
    %c0_16 = arith.constant 0 : index
    %18 = vector.load %arg1[%c48, %c0_16] : memref<144x16xf32, #tpu.memory_space<vmem>>, vector<16x16xf32>
    %cst_17 = arith.constant dense<0.000000e+00> : vector<64x16xf32>
    %19 = tpu.matmul %17, %18, %cst_17 {dimension_numbers = #tpu.dot_dimension_numbers<[1], [0], [0], [1], [0, 0, 1, 1], [], []>} : vector<64x16xf32>, vector<16x16xf32>, vector<64x16xf32> -> vector<64x16xf32>
    %20 = arith.addf %15, %19 : vector<64x16xf32>
    %c1_18 = arith.constant 1 : index
    %c1_19 = arith.constant 1 : index
    %c0_20 = arith.constant 0 : index
    %21 = vector.load %arg0[%c1_18, %c1_19, %c0_20] : memref<10x10x16xf32, #tpu.memory_space<vmem>>, vector<8x8x16xf32>
    %22 = vector.shape_cast %21 : vector<8x8x16xf32> to vector<64x16xf32>
    %c64 = arith.constant 64 : index
    %c0_21 = arith.constant 0 : index
    %23 = vector.load %arg1[%c64, %c0_21] : memref<144x16xf32, #tpu.memory_space<vmem>>, vector<16x16xf32>
    %cst_22 = arith.constant dense<0.000000e+00> : vector<64x16xf32>
    %24 = tpu.matmul %22, %23, %cst_22 {dimension_numbers = #tpu.dot_dimension_numbers<[1], [0], [0], [1], [0, 0, 1, 1], [], []>} : vector<64x16xf32>, vector<16x16xf32>, vector<64x16xf32> -> vector<64x16xf32>
    %25 = arith.addf %20, %24 : vector<64x16xf32>
    %c1_23 = arith.constant 1 : index
    %c2_24 = arith.constant 2 : index
    %c0_25 = arith.constant 0 : index
    %26 = vector.load %arg0[%c1_23, %c2_24, %c0_25] : memref<10x10x16xf32, #tpu.memory_space<vmem>>, vector<8x8x16xf32>
    %27 = vector.shape_cast %26 : vector<8x8x16xf32> to vector<64x16xf32>
    %c80 = arith.constant 80 : index
    %c0_26 = arith.constant 0 : index
    %28 = vector.load %arg1[%c80, %c0_26] : memref<144x16xf32, #tpu.memory_space<vmem>>, vector<16x16xf32>
    %cst_27 = arith.constant dense<0.000000e+00> : vector<64x16xf32>
    %29 = tpu.matmul %27, %28, %cst_27 {dimension_numbers = #tpu.dot_dimension_numbers<[1], [0], [0], [1], [0, 0, 1, 1], [], []>} : vector<64x16xf32>, vector<16x16xf32>, vector<64x16xf32> -> vector<64x16xf32>
    %30 = arith.addf %25, %29 : vector<64x16xf32>
    %c2_28 = arith.constant 2 : index
    %c0_29 = arith.constant 0 : index
    %c0_30 = arith.constant 0 : index
    %31 = vector.load %arg0[%c2_28, %c0_29, %c0_30] : memref<10x10x16xf32, #tpu.memory_space<vmem>>, vector<8x8x16xf32>
    %32 = vector.shape_cast %31 : vector<8x8x16xf32> to vector<64x16xf32>
    %c96 = arith.constant 96 : index
    %c0_31 = arith.constant 0 : index
    %33 = vector.load %arg1[%c96, %c0_31] : memref<144x16xf32, #tpu.memory_space<vmem>>, vector<16x16xf32>
    %cst_32 = arith.constant dense<0.000000e+00> : vector<64x16xf32>
    %34 = tpu.matmul %32, %33, %cst_32 {dimension_numbers = #tpu.dot_dimension_numbers<[1], [0], [0], [1], [0, 0, 1, 1], [], []>} : vector<64x16xf32>, vector<16x16xf32>, vector<64x16xf32> -> vector<64x16xf32>
    %35 = arith.addf %30, %34 : vector<64x16xf32>
    %c2_33 = arith.constant 2 : index
    %c1_34 = arith.constant 1 : index
    %c0_35 = arith.constant 0 : index
    %36 = vector.load %arg0[%c2_33, %c1_34, %c0_35] : memref<10x10x16xf32, #tpu.memory_space<vmem>>, vector<8x8x16xf32>
    %37 = vector.shape_cast %36 : vector<8x8x16xf32> to vector<64x16xf32>
    %c112 = arith.constant 112 : index
    %c0_36 = arith.constant 0 : index
    %38 = vector.load %arg1[%c112, %c0_36] : memref<144x16xf32, #tpu.memory_space<vmem>>, vector<16x16xf32>
    %cst_37 = arith.constant dense<0.000000e+00> : vector<64x16xf32>
    %39 = tpu.matmul %37, %38, %cst_37 {dimension_numbers = #tpu.dot_dimension_numbers<[1], [0], [0], [1], [0, 0, 1, 1], [], []>} : vector<64x16xf32>, vector<16x16xf32>, vector<64x16xf32> -> vector<64x16xf32>
    %40 = arith.addf %35, %39 : vector<64x16xf32>
    %c2_38 = arith.constant 2 : index
    %c2_39 = arith.constant 2 : index
    %c0_40 = arith.constant 0 : index
    %41 = vector.load %arg0[%c2_38, %c2_39, %c0_40] : memref<10x10x16xf32, #tpu.memory_space<vmem>>, vector<8x8x16xf32>
    %42 = vector.shape_cast %41 : vector<8x8x16xf32> to vector<64x16xf32>
    %c128 = arith.constant 128 : index
    %c0_41 = arith.constant 0 : index
    %43 = vector.load %arg1[%c128, %c0_41] : memref<144x16xf32, #tpu.memory_space<vmem>>, vector<16x16xf32>
    %cst_42 = arith.constant dense<0.000000e+00> : vector<64x16xf32>
    %44 = tpu.matmul %42, %43, %cst_42 {dimension_numbers = #tpu.dot_dimension_numbers<[1], [0], [0], [1], [0, 0, 1, 1], [], []>} : vector<64x16xf32>, vector<16x16xf32>, vector<64x16xf32> -> vector<64x16xf32>
    %45 = arith.addf %40, %44 : vector<64x16xf32>
    %c0_43 = arith.constant 0 : index
    %c0_44 = arith.constant 0 : index
    %46 = vector.load %arg2[%c0_43, %c0_44] : memref<1x16xf32, #tpu.memory_space<vmem>>, vector<1x16xf32>
    %47 = vector.broadcast %46 : vector<1x16xf32> to vector<64x16xf32>
    %48 = arith.addf %45, %47 : vector<64x16xf32>
    %cst_45 = arith.constant 0.000000e+00 : f32
    %49 = vector.broadcast %cst_45 : f32 to vector<64x16xf32>
    %50 = arith.maximumf %48, %49 : vector<64x16xf32>
    %c0_46 = arith.constant 0 : index
    %c0_47 = arith.constant 0 : index
    %51 = vector.load %arg3[%c0_46, %c0_47] : memref<16x18xf32, #tpu.memory_space<vmem>>, vector<16x18xf32>
    %cst_48 = arith.constant dense<0.000000e+00> : vector<64x18xf32>
    %52 = tpu.matmul %50, %51, %cst_48 {dimension_numbers = #tpu.dot_dimension_numbers<[1], [0], [0], [1], [0, 0, 1, 1], [], []>} : vector<64x16xf32>, vector<16x18xf32>, vector<64x18xf32> -> vector<64x18xf32>
    %c0_49 = arith.constant 0 : index
    %c0_50 = arith.constant 0 : index
    %53 = vector.load %arg4[%c0_49, %c0_50] : memref<1x18xf32, #tpu.memory_space<vmem>>, vector<1x18xf32>
    %54 = vector.broadcast %53 : vector<1x18xf32> to vector<64x18xf32>
    %55 = arith.addf %52, %54 : vector<64x18xf32>
    %c0_51 = arith.constant 0 : index
    %c0_52 = arith.constant 0 : index
    %56 = vector.load %arg5[%c0_51, %c0_52] : memref<64x18xf32, #tpu.memory_space<vmem>>, vector<64x18xf32>
    tpu.vector_store %arg5[%c0_51, %c0_52], %55 {strides = array<i32>} : memref<64x18xf32, #tpu.memory_space<vmem>>, vector<64x18xf32>,
    return
  }
}

module attributes {stable_mosaic.version = 11 : i64} {
  func.func @_head_kernel(%arg0: memref<16x64xf32, #tpu.memory_space<vmem>>, %arg1: memref<64x32xf32, #tpu.memory_space<vmem>>, %arg2: memref<1x32xf32, #tpu.memory_space<vmem>>, %arg3: memref<32x32xf32, #tpu.memory_space<vmem>>, %arg4: memref<1x32xf32, #tpu.memory_space<vmem>>, %arg5: memref<32x25xf32, #tpu.memory_space<vmem>>, %arg6: memref<1x25xf32, #tpu.memory_space<vmem>>, %arg7: memref<16x25xf32, #tpu.memory_space<vmem>>) attributes {dimension_semantics = [], scalar_prefetch = 0 : i64, scratch_operands = 0 : i64, tpu.core_type = #tpu.core_type<tc>} {
    %c0 = arith.constant 0 : index
    %c0_0 = arith.constant 0 : index
    %0 = vector.load %arg0[%c0, %c0_0] : memref<16x64xf32, #tpu.memory_space<vmem>>, vector<16x64xf32>
    %c0_1 = arith.constant 0 : index
    %c0_2 = arith.constant 0 : index
    %1 = vector.load %arg1[%c0_1, %c0_2] : memref<64x32xf32, #tpu.memory_space<vmem>>, vector<64x32xf32>
    %cst = arith.constant dense<0.000000e+00> : vector<16x32xf32>
    %2 = tpu.matmul %0, %1, %cst {dimension_numbers = #tpu.dot_dimension_numbers<[1], [0], [0], [1], [0, 0, 1, 1], [], []>} : vector<16x64xf32>, vector<64x32xf32>, vector<16x32xf32> -> vector<16x32xf32>
    %c0_3 = arith.constant 0 : index
    %c0_4 = arith.constant 0 : index
    %3 = vector.load %arg2[%c0_3, %c0_4] : memref<1x32xf32, #tpu.memory_space<vmem>>, vector<1x32xf32>
    %4 = vector.broadcast %3 : vector<1x32xf32> to vector<16x32xf32>
    %5 = arith.addf %2, %4 : vector<16x32xf32>
    %cst_5 = arith.constant 0.000000e+00 : f32
    %6 = vector.broadcast %cst_5 : f32 to vector<16x32xf32>
    %7 = arith.maximumf %5, %6 : vector<16x32xf32>
    %c0_6 = arith.constant 0 : index
    %c0_7 = arith.constant 0 : index
    %8 = vector.load %arg3[%c0_6, %c0_7] : memref<32x32xf32, #tpu.memory_space<vmem>>, vector<32x32xf32>
    %cst_8 = arith.constant dense<0.000000e+00> : vector<16x32xf32>
    %9 = tpu.matmul %7, %8, %cst_8 {dimension_numbers = #tpu.dot_dimension_numbers<[1], [0], [0], [1], [0, 0, 1, 1], [], []>} : vector<16x32xf32>, vector<32x32xf32>, vector<16x32xf32> -> vector<16x32xf32>
    %c0_9 = arith.constant 0 : index
    %c0_10 = arith.constant 0 : index
    %10 = vector.load %arg4[%c0_9, %c0_10] : memref<1x32xf32, #tpu.memory_space<vmem>>, vector<1x32xf32>
    %11 = vector.broadcast %10 : vector<1x32xf32> to vector<16x32xf32>
    %12 = arith.addf %9, %11 : vector<16x32xf32>
    %cst_11 = arith.constant 0.000000e+00 : f32
    %13 = vector.broadcast %cst_11 : f32 to vector<16x32xf32>
    %14 = arith.maximumf %12, %13 : vector<16x32xf32>
    %c0_12 = arith.constant 0 : index
    %c0_13 = arith.constant 0 : index
    %15 = vector.load %arg5[%c0_12, %c0_13] : memref<32x25xf32, #tpu.memory_space<vmem>>, vector<32x25xf32>
    %cst_14 = arith.constant dense<0.000000e+00> : vector<16x25xf32>
    %16 = tpu.matmul %14, %15, %cst_14 {dimension_numbers = #tpu.dot_dimension_numbers<[1], [0], [0], [1], [0, 0, 1, 1], [], []>} : vector<16x32xf32>, vector<32x25xf32>, vector<16x25xf32> -> vector<16x25xf32>
    %c0_15 = arith.constant 0 : index
    %c0_16 = arith.constant 0 : index
    %17 = vector.load %arg6[%c0_15, %c0_16] : memref<1x25xf32, #tpu.memory_space<vmem>>, vector<1x25xf32>
    %18 = vector.broadcast %17 : vector<1x25xf32> to vector<16x25xf32>
    %19 = arith.addf %16, %18 : vector<16x25xf32>
    %c0_17 = arith.constant 0 : index
    %c0_18 = arith.constant 0 : index
    %20 = vector.load %arg7[%c0_17, %c0_18] : memref<16x25xf32, #tpu.memory_space<vmem>>, vector<16x25xf32>
    tpu.vector_store %arg7[%c0_17, %c0_18], %19 {strides = array<i32>} : memref<16x25xf32, #tpu.memory_space<vmem>>, vector<16x25xf32>,
    return
  }
}

</mosaic_0001>

<llo_original>
// kernel: faster_rcnn_forward.4
$region0: #{faster_rcnn_forward.4}
  #allocation0 [shape = 'u32[]', space=smem, size = 0x4, offset = 0x4, fixed_abs, tag = 'smem constant byte address 0x4 - core index']
  #allocation1 [shape = 'u32[144,128]{1,0:T(1,128)}', space=vmem, size = 0x12000, scoped, tag = 'internal scratch']
  %s0 = inlined_call_operand.vmem [shape: f32[10,10,16], index: 0, kind: input, shape index: {}]
  %s1 = inlined_call_operand.vmem [shape: f32[144,16], index: 1, kind: input, shape index: {}]
  %s2 = inlined_call_operand.vmem [shape: f32[1,16], index: 2, kind: input, shape index: {}]
  %s3 = inlined_call_operand.vmem [shape: f32[16,18], index: 3, kind: input, shape index: {}]
  %s4 = inlined_call_operand.vmem [shape: f32[1,18], index: 4, kind: input, shape index: {}]
  %s5 = inlined_call_operand.vmem [shape: f32[64,18], index: 5, kind: output, shape index: {}]
  %s6 = sld [smem:[#allocation0]]
  $region30: #{faster_rcnn_forward.4} parent=0
    _
  %s8 = ssub.s32 1, %s6
  %s9 = scalar_select 0, %s8, %s6
  // Predicated region
  $region2: #{faster_rcnn_forward.4} parent=0 // pred_check
    _
  $region3: #{faster_rcnn_forward.4} parent=0 // pred_check_branch
    %11 = sbr.rel (0) target = $region5
  $region4: #{faster_rcnn_forward.4} parent=0 // pred_region
    _
  $region5: #{faster_rcnn_forward.4} parent=0 // pred_fallthru
    _
  // Predicated region
  $region6: #{faster_rcnn_forward.4} parent=0 // pred_check
    _
  $region7: #{faster_rcnn_forward.4} parent=0 // pred_check_branch
    %13 = sbr.rel (0) target = $region9
  $region8: #{faster_rcnn_forward.4} parent=0 // pred_region
    _
  $region9: #{faster_rcnn_forward.4} parent=0 // pred_fallthru
    _
  // Predicated region
  $region10: #{faster_rcnn_forward.4} parent=0 // pred_check
    _
  $region11: #{faster_rcnn_forward.4} parent=0 // pred_check_branch
    %15 = sbr.rel (0) target = $region13
  $region12: #{faster_rcnn_forward.4} parent=0 // pred_region
    _
  $region13: #{faster_rcnn_forward.4} parent=0 // pred_fallthru
    _
  // Predicated region
  $region14: #{faster_rcnn_forward.4} parent=0 // pred_check
    _
  $region15: #{faster_rcnn_forward.4} parent=0 // pred_check_branch
    %17 = sbr.rel (0) target = $region17
  $region16: #{faster_rcnn_forward.4} parent=0 // pred_region
    _
  $region17: #{faster_rcnn_forward.4} parent=0 // pred_fallthru
    _
  // Predicated region
  $region18: #{faster_rcnn_forward.4} parent=0 // pred_check
    _
  $region19: #{faster_rcnn_forward.4} parent=0 // pred_check_branch
    %19 = sbr.rel (0) target = $region21
  $region20: #{faster_rcnn_forward.4} parent=0 // pred_region
    _
  $region21: #{faster_rcnn_forward.4} parent=0 // pred_fallthru
    _
  %v20 = vld [vmem:[%s0] sm:$0xff]
  %v21 = vld [vmem:[%s0 + $0x10] sm:$0xff]
  %v22 = vld [vmem:[%s0 + $0x20] sm:$0xff]
  %v23 = vld [vmem:[%s0 + $0x30] sm:$0xff]
  %v24 = vld [vmem:[%s0 + $0x40] sm:$0xff]
  %v25 = vld [vmem:[%s0 + $0x50] sm:$0xff]
  %v26 = vld [vmem:[%s0 + $0x60] sm:$0xff]
  %v27 = vld [vmem:[%s0 + $0x70] sm:$0xff]
  %v28 = vld [vmem:[%s1] sm:$0xff]
  %v29 = vld [vmem:[%s1 + $0x8] sm:$0xff]
  %v30 = vld [vmem:[%s0 + $0x1] sm:$0xff]
  %v31 = vld [vmem:[%s0 + $0x11] sm:$0xff]
  %v32 = vld [vmem:[%s0 + $0x21] sm:$0xff]
  %v33 = vld [vmem:[%s0 + $0x31] sm:$0xff]
  %v34 = vld [vmem:[%s0 + $0x41] sm:$0xff]
  %v35 = vld [vmem:[%s0 + $0x51] sm:$0xff]
  %v36 = vld [vmem:[%s0 + $0x61] sm:$0xff]
  %v37 = vld [vmem:[%s0 + $0x71] sm:$0xff]
  %v38 = vld [vmem:[%s1 + $0x10] sm:$0xff]
  %v39 = vld [vmem:[%s1 + $0x18] sm:$0xff]
  %vm40 = vcmask 130048
  %v42 = vsel %vm40, %v30, 0
  %v45 = vsel %vm40, %v31, 0
  %v48 = vsel %vm40, %v32, 0
  %v51 = vsel %vm40, %v33, 0
  %v54 = vsel %vm40, %v34, 0
  %v57 = vsel %vm40, %v35, 0
  %v60 = vsel %vm40, %v36, 0
  %v63 = vsel %vm40, %v37, 0
  %65 = vmatprep.subr.mxu0 0.0
  %66 = vmatpush1.msra.mxu0 %v38
  %67 = vmatprep.subr.mxu0 0.0
  %68 = vmatpush1.msra.mxu0 %v39
  %69 = vmatprep.subr.mxu0 0.0
  %70 = vmatpush1.msra.mxu0 0.0
  %71 = vmatprep.subr.mxu0 0.0
  %72 = vmatpush1.msra.mxu0 0.0
  %73 = vmatprep.subr.mxu0 0.0
  %74 = vmatpush1.msra.mxu0 0.0
  %75 = vmatprep.subr.mxu0 0.0
  %76 = vmatpush1.msra.mxu0 0.0
  %77 = vmatprep.subr.mxu0 0.0
  %78 = vmatpush1.msra.mxu0 0.0
  %79 = vmatprep.subr.mxu0 0.0
  %80 = vmatpush1.msra.mxu0 0.0
  %81 = vmatprep.subr.mxu0 0.0
  %82 = vmatpush1.msra.mxu0 0.0
  %83 = vmatprep.subr.mxu0 0.0
  %84 = vmatpush1.msra.mxu0 0.0
  %85 = vmatprep.subr.mxu0 0.0
  %86 = vmatpush1.msra.mxu0 0.0
  %87 = vmatprep.subr.mxu0 0.0
  %88 = vmatpush1.msra.mxu0 0.0
  %89 = vmatprep.subr.mxu0 0.0
  %90 = vmatpush1.msra.mxu0 0.0
  %91 = vmatprep.subr.mxu0 0.0
  %92 = vmatpush1.msra.mxu0 0.0
  %93 = vmatprep.subr.mxu0 0.0
  %94 = vmatpush1.msra.mxu0 0.0
  %95 = vmatprep.subr.mxu0 0.0
  %96 = vmatpush1.msra.mxu0 0.0
  %97 = vmatprep.subr.mxu0 0.0
  %98 = vmatpush1.msra.mxu0 0.0
  %99 = vmatprep.subr.mxu0 0.0
  %100 = vmatpush1.msra.mxu0 0.0
  %101 = vmatprep.subr.mxu0 0.0
  %102 = vmatpush1.msra.mxu0 0.0
  %103 = vmatprep.subr.mxu0 0.0
  %104 = vmatpush1.msra.mxu0 0.0
  %105 = vmatprep.subr.mxu0 0.0
  %106 = vmatpush1.msra.mxu0 0.0
  %107 = vmatprep.subr.mxu0 0.0
  %108 = vmatpush1.msra.mxu0 0.0
  %109 = vmatprep.subr.mxu0 0.0
  %110 = vmatpush1.msra.mxu0 0.0
  %111 = vmatprep.subr.mxu0 0.0
  %112 = vmatpush1.msra.mxu0 0.0
  %113 = vmatprep.subr.mxu0 0.0
  %114 = vmatpush1.msra.mxu0 0.0
  %115 = vmatprep.subr.mxu0 0.0
  %116 = vmatpush1.msra.mxu0 0.0
  %117 = vmatprep.subr.mxu0 0.0
  %118 = vmatpush1.msra.mxu0 0.0
  %119 = vmatprep.subr.mxu0 0.0
  %120 = vmatpush1.msra.mxu0 0.0
  %121 = vmatprep.subr.mxu0 0.0
  %122 = vmatpush1.msra.mxu0 0.0
  %123 = vmatprep.subr.mxu0 0.0
  %124 = vmatpush1.msra.mxu0 0.0
  %125 = vmatprep.subr.mxu0 0.0
  %126 = vmatpush1.msra.mxu0 0.0
  %127 = vmatprep.subr.mxu0 0.0
  %128 = vmatpush1.msra.mxu0 0.0
  %129 = vmatprep.mubr.f32.mxu0 0.0
  %130 = vmatmul.mubr.f32.gmra.mrb[0].mxu0 %v42
  %v131 = vpop.f32.mrb[0].mxu0
  %v132 = vadd.f32 0.0, %v131
  %v133 = vpop.f32.mrb[0].mxu0
  %134 = vmatprep.mubr.f32.mxu0 0.0
  %135 = vmatmul.mubr.f32.gmra.mrb[0].mxu0 %v45
  %v136 = vpop.f32.mrb[0].mxu0
  %v137 = vadd.f32 0.0, %v136
  %v138 = vpop.f32.mrb[0].mxu0
  %139 = vmatprep.mubr.f32.mxu0 0.0
  %140 = vmatmul.mubr.f32.gmra.mrb[0].mxu0 %v48
  %v141 = vpop.f32.mrb[0].mxu0
  %v142 = vadd.f32 0.0, %v141
  %v143 = vpop.f32.mrb[0].mxu0
  %144 = vmatprep.mubr.f32.mxu0 0.0
  %145 = vmatmul.mubr.f32.gmra.mrb[0].mxu0 %v51
  %v146 = vpop.f32.mrb[0].mxu0
  %v147 = vadd.f32 0.0, %v146
  %v148 = vpop.f32.mrb[0].mxu0
  %149 = vmatprep.mubr.f32.mxu0 0.0
  %150 = vmatmul.mubr.f32.gmra.mrb[0].mxu0 %v54
  %v151 = vpop.f32.mrb[0].mxu0
  %v152 = vadd.f32 0.0, %v151
  %v153 = vpop.f32.mrb[0].mxu0
  %154 = vmatprep.mubr.f32.mxu0 0.0
  %155 = vmatmul.mubr.f32.gmra.mrb[0].mxu0 %v57
  %v156 = vpop.f32.mrb[0].mxu0
  %v157 = vadd.f32 0.0, %v156
  %v158 = vpop.f32.mrb[0].mxu0
  %159 = vmatprep.mubr.f32.mxu0 0.0
  %160 = vmatmul.mubr.f32.gmra.mrb[0].mxu0 %v60
  %v161 = vpop.f32.mrb[0].mxu0
  %v162 = vadd.f32 0.0, %v161
  %v163 = vpop.f32.mrb[0].mxu0
  %164 = vmatprep.mubr.f32.mxu0 0.0
  %165 = vmatmul.mubr.f32.gmra.mrb[0].mxu0 %v63
  %v166 = vpop.f32.mrb[0].mxu0
  %v167 = vadd.f32 0.0, %v166
  %v168 = vpop.f32.mrb[0].mxu0
  %169 = vdwg.mxu0
  %v171 = vsel %vm40, %v20, 0
  %v174 = vsel %vm40, %v21, 0
  %v177 = vsel %vm40, %v22, 0
  %v180 = vsel %vm40, %v23, 0
  %v183 = vsel %vm40, %v24, 0
  %v186 = vsel %vm40, %v25, 0
  %v189 = vsel %vm40, %v26, 0
  %v192 = vsel %vm40, %v27, 0
  %194 = vmatprep.subr.mxu0 0.0
  %195 = vmatpush1.msra.mxu0 %v28
  %196 = vmatprep.subr.mxu0 0.0
  %197 = vmatpush1.msra.mxu0 %v29
  %198 = vmatprep.subr.mxu0 0.0
  %199 = vmatpush1.msra.mxu0 0.0
  %200 = vmatprep.subr.mxu0 0.0
  %201 = vmatpush1.msra.mxu0 0.0
  %202 = vmatprep.subr.mxu0 0.0
  %203 = vmatpush1.msra.mxu0 0.0
  %204 = vmatprep.subr.mxu0 0.0
  %205 = vmatpush1.msra.mxu0 0.0
  %206 = vmatprep.subr.mxu0 0.0
  %207 = vmatpush1.msra.mxu0 0.0
  %208 = vmatprep.subr.mxu0 0.0
  %209 = vmatpush1.msra.mxu0 0.0
  %210 = vmatprep.subr.mxu0 0.0
  %211 = vmatpush1.msra.mxu0 0.0
  %212 = vmatprep.subr.mxu0 0.0
  %213 = vmatpush1.msra.mxu0 0.0
  %214 = vmatprep.subr.mxu0 0.0
  %215 = vmatpush1.msra.mxu0 0.0
  %216 = vmatprep.subr.mxu0 0.0
  %217 = vmatpush1.msra.mxu0 0.0
  %218 = vmatprep.subr.mxu0 0.0
  %219 = vmatpush1.msra.mxu0 0.0
  %220 = vmatprep.subr.mxu0 0.0
  %221 = vmatpush1.msra.mxu0 0.0
  %222 = vmatprep.subr.mxu0 0.0
  %223 = vmatpush1.msra.mxu0 0.0
  %224 = vmatprep.subr.mxu0 0.0
  %225 = vmatpush1.msra.mxu0 0.0
  %226 = vmatprep.subr.mxu0 0.0
  %227 = vmatpush1.msra.mxu0 0.0
  %228 = vmatprep.subr.mxu0 0.0
  %229 = vmatpush1.msra.mxu0 0.0
  %230 = vmatprep.subr.mxu0 0.0
  %231 = vmatpush1.msra.mxu0 0.0
  %232 = vmatprep.subr.mxu0 0.0
  %233 = vmatpush1.msra.mxu0 0.0
  %234 = vmatprep.subr.mxu0 0.0
  %235 = vmatpush1.msra.mxu0 0.0
  %236 = vmatprep.subr.mxu0 0.0
  %237 = vmatpush1.msra.mxu0 0.0
  %238 = vmatprep.subr.mxu0 0.0
  %239 = vmatpush1.msra.mxu0 0.0
  %240 = vmatprep.subr.mxu0 0.0
  %241 = vmatpush1.msra.mxu0 0.0
  %242 = vmatprep.subr.mxu0 0.0
  %243 = vmatpush1.msra.mxu0 0.0
  %244 = vmatprep.subr.mxu0 0.0
  %245 = vmatpush1.msra.mxu0 0.0
  %246 = vmatprep.subr.mxu0 0.0
  %247 = vmatpush1.msra.mxu0 0.0
  %248 = vmatprep.subr.mxu0 0.0
  %249 = vmatpush1.msra.mxu0 0.0
  %250 = vmatprep.subr.mxu0 0.0
  %251 = vmatpush1.msra.mxu0 0.0
  %252 = vmatprep.subr.mxu0 0.0
  %253 = vmatpush1.msra.mxu0 0.0
  %254 = vmatprep.subr.mxu0 0.0
  %255 = vmatpush1.msra.mxu0 0.0
  %256 = vmatprep.subr.mxu0 0.0
  %257 = vmatpush1.msra.mxu0 0.0
  %258 = vmatprep.mubr.f32.mxu0 0.0
  %259 = vmatmul.mubr.f32.gmra.mrb[0].mxu0 %v171
  %v260 = vpop.f32.mrb[0].mxu0
  %v261 = vadd.f32 %v132, %v260
  %v262 = vpop.f32.mrb[0].mxu0
  %263 = vmatprep.mubr.f32.mxu0 0.0
  %264 = vmatmul.mubr.f32.gmra.mrb[0].mxu0 %v174
  %v265 = vpop.f32.mrb[0].mxu0
  %v266 = vadd.f32 %v137, %v265
  %v267 = vpop.f32.mrb[0].mxu0
  %268 = vmatprep.mubr.f32.mxu0 0.0
  %269 = vmatmul.mubr.f32.gmra.mrb[0].mxu0 %v177
  %v270 = vpop.f32.mrb[0].mxu0
  %v271 = vadd.f32 %v142, %v270
  %v272 = vpop.f32.mrb[0].mxu0
  %273 = vmatprep.mubr.f32.mxu0 0.0
  %274 = vmatmul.mubr.f32.gmra.mrb[0].mxu0 %v180
  %v275 = vpop.f32.mrb[0].mxu0
  %v276 = vadd.f32 %v147, %v275
  %v277 = vpop.f32.mrb[0].mxu0
  %278 = vmatprep.mubr.f32.mxu0 0.0
  %279 = vmatmul.mubr.f32.gmra.mrb[0].mxu0 %v183
  %v280 = vpop.f32.mrb[0].mxu0
  %v281 = vadd.f32 %v152, %v280
  %v282 = vpop.f32.mrb[0].mxu0
  %283 = vmatprep.mubr.f32.mxu0 0.0
  %284 = vmatmul.mubr.f32.gmra.mrb[0].mxu0 %v186
  %v285 = vpop.f32.mrb[0].mxu0
  %v286 = vadd.f32 %v157, %v285
  %v287 = vpop.f32.mrb[0].mxu0
  %288 = vmatprep.mubr.f32.mxu0 0.0
  %289 = vmatmul.mubr.f32.gmra.mrb[0].mxu0 %v189
  %v290 = vpop.f32.mrb[0].mxu0
  %v291 = vadd.f32 %v162, %v290
  %v292 = vpop.f32.mrb[0].mxu0
  %293 = vmatprep.mubr.f32.mxu0 0.0
  %294 = vmatmul.mubr.f32.gmra.mrb[0].mxu0 %v192
  %v295 = vpop.f32.mrb[0].mxu0
  %v296 = vadd.f32 %v167, %v295
  %v297 = vpop.f32.mrb[0].mxu0
  %298 = vdwg.mxu0
  %v299 = vld [vmem:[%s0 + $0x2] sm:$0xff]
  %v300 = vld [vmem:[%s0 + $0x12] sm:$0xff]
  %v301 = vld [vmem:[%s0 + $0x22] sm:$0xff]
  %v302 = vld [vmem:[%s0 + $0x32] sm:$0xff]
  %v303 = vld [vmem:[%s0 + $0x42] sm:$0xff]
  %v304 = vld [vmem:[%s0 + $0x52] sm:$0xff]
  %v305 = vld [vmem:[%s0 + $0x62] sm:$0xff]
  %v306 = vld [vmem:[%s0 + $0x72] sm:$0xff]
  %v307 = vld [vmem:[%s1 + $0x20] sm:$0xff]
  %v308 = vld [vmem:[%s1 + $0x28] sm:$0xff]
  %v310 = vsel %vm40, %v299, 0
  %v313 = vsel %vm40, %v300, 0
  %v316 = vsel %vm40, %v301, 0
  %v319 = vsel %vm40, %v302, 0
  %v322 = vsel %vm40, %v303, 0
  %v325 = vsel %vm40, %v304, 0
  %v328 = vsel %vm40, %v305, 0
  %v331 = vsel %vm40, %v306, 0
  %333 = vmatprep.subr.mxu0 0.0
  %334 = vmatpush1.msra.mxu0 %v307
  %335 = vmatprep.subr.mxu0 0.0
  %336 = vmatpush1.msra.mxu0 %v308
  %337 = vmatprep.subr.mxu0 0.0
  %338 = vmatpush1.msra.mxu0 0.0
  %339 = vmatprep.subr.mxu0 0.0
  %340 = vmatpush1.msra.mxu0 0.0
  %341 = vmatprep.subr.mxu0 0.0
  %342 = vmatpush1.msra.mxu0 0.0
  %343 = vmatprep.subr.mxu0 0.0
  %344 = vmatpush1.msra.mxu0 0.0
  %345 = vmatprep.subr.mxu0 0.0
  %346 = vmatpush1.msra.mxu0 0.0
  %347 = vmatprep.subr.mxu0 0.0
  %348 = vmatpush1.msra.mxu0 0.0
  %349 = vmatprep.subr.mxu0 0.0
  %350 = vmatpush1.msra.mxu0 0.0
  %351 = vmatprep.subr.mxu0 0.0
  %352 = vmatpush1.msra.mxu0 0.0
  %353 = vmatprep.subr.mxu0 0.0
  %354 = vmatpush1.msra.mxu0 0.0
  %355 = vmatprep.subr.mxu0 0.0
  %356 = vmatpush1.msra.mxu0 0.0
  %357 = vmatprep.subr.mxu0 0.0
  %358 = vmatpush1.msra.mxu0 0.0
  %359 = vmatprep.subr.mxu0 0.0
  %360 = vmatpush1.msra.mxu0 0.0
  %361 = vmatprep.subr.mxu0 0.0
  %362 = vmatpush1.msra.mxu0 0.0
  %363 = vmatprep.subr.mxu0 0.0
  %364 = vmatpush1.msra.mxu0 0.0
  %365 = vmatprep.subr.mxu0 0.0
  %366 = vmatpush1.msra.mxu0 0.0
  %367 = vmatprep.subr.mxu0 0.0
  %368 = vmatpush1.msra.mxu0 0.0
  %369 = vmatprep.subr.mxu0 0.0
  %370 = vmatpush1.msra.mxu0 0.0
  %371 = vmatprep.subr.mxu0 0.0
  %372 = vmatpush1.msra.mxu0 0.0
  %373 = vmatprep.subr.mxu0 0.0
  %374 = vmatpush1.msra.mxu0 0.0
  %375 = vmatprep.subr.mxu0 0.0
  %376 = vmatpush1.msra.mxu0 0.0
  %377 = vmatprep.subr.mxu0 0.0
  %378 = vmatpush1.msra.mxu0 0.0
  %379 = vmatprep.subr.mxu0 0.0
  %380 = vmatpush1.msra.mxu0 0.0
  %381 = vmatprep.subr.mxu0 0.0
  %382 = vmatpush1.msra.mxu0 0.0
  %383 = vmatprep.subr.mxu0 0.0
  %384 = vmatpush1.msra.mxu0 0.0
  %385 = vmatprep.subr.mxu0 0.0
  %386 = vmatpush1.msra.mxu0 0.0
  %387 = vmatprep.subr.mxu0 0.0
  %388 = vmatpush1.msra.mxu0 0.0
  %389 = vmatprep.subr.mxu0 0.0
  %390 = vmatpush1.msra.mxu0 0.0
  %391 = vmatprep.subr.mxu0 0.0
  %392 = vmatpush1.msra.mxu0 0.0
  %393 = vmatprep.subr.mxu0 0.0
  %394 = vmatpush1.msra.mxu0 0.0
  %395 = vmatprep.subr.mxu0 0.0
  %396 = vmatpush1.msra.mxu0 0.0
  %397 = vmatprep.mubr.f32.mxu0 0.0
  %398 = vmatmul.mubr.f32.gmra.mrb[0].mxu0 %v310
  %v399 = vpop.f32.mrb[0].mxu0
  %v400 = vadd.f32 0.0, %v399
  %v401 = vpop.f32.mrb[0].mxu0
  %402 = vmatprep.mubr.f32.mxu0 0.0
  %403 = vmatmul.mubr.f32.gmra.mrb[0].mxu0 %v313
  %v404 = vpop.f32.mrb[0].mxu0
  %v405 = vadd.f32 0.0, %v404
  %v406 = vpop.f32.mrb[0].mxu0
  %407 = vmatprep.mubr.f32.mxu0 0.0
  %408 = vmatmul.mubr.f32.gmra.mrb[0].mxu0 %v316
  %v409 = vpop.f32.mrb[0].mxu0
  %v410 = vadd.f32 0.0, %v409
  %v411 = vpop.f32.mrb[0].mxu0
  %412 = vmatprep.mubr.f32.mxu0 0.0
  %413 = vmatmul.mubr.f32.gmra.mrb[0].mxu0 %v319
  %v414 = vpop.f32.mrb[0].mxu0
  %v415 = vadd.f32 0.0, %v414
  %v416 = vpop.f32.mrb[0].mxu0
  %417 = vmatprep.mubr.f32.mxu0 0.0
  %418 = vmatmul.mubr.f32.gmra.mrb[0].mxu0 %v322
  %v419 = vpop.f32.mrb[0].mxu0
  %v420 = vadd.f32 0.0, %v419
  %v421 = vpop.f32.mrb[0].mxu0
  %422 = vmatprep.mubr.f32.mxu0 0.0
  %423 = vmatmul.mubr.f32.gmra.mrb[0].mxu0 %v325
  %v424 = vpop.f32.mrb[0].mxu0
  %v425 = vadd.f32 0.0, %v424
  %v426 = vpop.f32.mrb[0].mxu0
  %427 = vmatprep.mubr.f32.mxu0 0.0
  %428 = vmatmul.mubr.f32.gmra.mrb[0].mxu0 %v328
  %v429 = vpop.f32.mrb[0].mxu0
  %v430 = vadd.f32 0.0, %v429
  %v431 = vpop.f32.mrb[0].mxu0
  %432 = vmatprep.mubr.f32.mxu0 0.0
  %433 = vmatmul.mubr.f32.gmra.mrb[0].mxu0 %v331
  %v434 = vpop.f32.mrb[0].mxu0
  %v435 = vadd.f32 0.0, %v434
  %v436 = vpop.f32.mrb[0].mxu0
  %437 = vdwg.mxu0
  %v438 = vadd.f32 %v261, %v400
  %v439 = vadd.f32 %v266, %v405
  %v440 = vadd.f32 %v271, %v410
  %v441 = vadd.f32 %v276, %v415
  %v442 = vadd.f32 %v281, %v420
  %v443 = vadd.f32 %v286, %v425
  %v444 = vadd.f32 %v291, %v430
  %v445 = vadd.f32 %v296, %v435
  %s446 = scalar_lea.vmem %s0, 16
  %v447 = vld [vmem:[%s446] sm:$0xff]
  %v448 = vld [vmem:[%s446 + $0x10] sm:$0xff]
  %v449 = vld [vmem:[%s446 + $0x20] sm:$0xff]
  %v450 = vld [vmem:[%s446 + $0x30] sm:$0xff]
  %v451 = vld [vmem:[%s446 + $0x40] sm:$0xff]
  %v452 = vld [vmem:[%s446 + $0x50] sm:$0xff]
  %v453 = vld [vmem:[%s446 + $0x60] sm:$0xff]
  %v454 = vld [vmem:[%s446 + $0x70] sm:$0xff]
  %v455 = vld [vmem:[%s1 + $0x30] sm:$0xff]
  %v456 = vld [vmem:[%s1 + $0x38] sm:$0xff]
  %v458 = vsel %vm40, %v447, 0
  %v461 = vsel %vm40, %v448, 0
  %v464 = vsel %vm40, %v449, 0
  %v467 = vsel %vm40, %v450, 0
  %v470 = vsel %vm40, %v451, 0
  %v473 = vsel %vm40, %v452, 0
  %v476 = vsel %vm40, %v453, 0
  %v479 = vsel %vm40, %v454, 0
  %481 = vmatprep.subr.mxu0 0.0
  %482 = vmatpush1.msra.mxu0 %v455
  %483 = vmatprep.subr.mxu0 0.0
  %484 = vmatpush1.msra.mxu0 %v456
  %485 = vmatprep.subr.mxu0 0.0
  %486 = vmatpush1.msra.mxu0 0.0
  %487 = vmatprep.subr.mxu0 0.0
  %488 = vmatpush1.msra.mxu0 0.0
  %489 = vmatprep.subr.mxu0 0.0
  %490 = vmatpush1.msra.mxu0 0.0
  %491 = vmatprep.subr.mxu0 0.0
  %492 = vmatpush1.msra.mxu0 0.0
  %493 = vmatprep.subr.mxu0 0.0
  %494 = vmatpush1.msra.mxu0 0.0
  %495 = vmatprep.subr.mxu0 0.0
  %496 = vmatpush1.msra.mxu0 0.0
  %497 = vmatprep.subr.mxu0 0.0
  %498 = vmatpush1.msra.mxu0 0.0
  %499 = vmatprep.subr.mxu0 0.0
  %500 = vmatpush1.msra.mxu0 0.0
  %501 = vmatprep.subr.mxu0 0.0
  %502 = vmatpush1.msra.mxu0 0.0
  %503 = vmatprep.subr.mxu0 0.0
  %504 = vmatpush1.msra.mxu0 0.0
  %505 = vmatprep.subr.mxu0 0.0
  %506 = vmatpush1.msra.mxu0 0.0
  %507 = vmatprep.subr.mxu0 0.0
  %508 = vmatpush1.msra.mxu0 0.0
  %509 = vmatprep.subr.mxu0 0.0
  %510 = vmatpush1.msra.mxu0 0.0
  %511 = vmatprep.subr.mxu0 0.0
  %512 = vmatpush1.msra.mxu0 0.0
  %513 = vmatprep.subr.mxu0 0.0
  %514 = vmatpush1.msra.mxu0 0.0
  %515 = vmatprep.subr.mxu0 0.0
  %516 = vmatpush1.msra.mxu0 0.0
  %517 = vmatprep.subr.mxu0 0.0
  %518 = vmatpush1.msra.mxu0 0.0
  %519 = vmatprep.subr.mxu0 0.0
  %520 = vmatpush1.msra.mxu0 0.0
  %521 = vmatprep.subr.mxu0 0.0
  %522 = vmatpush1.msra.mxu0 0.0
  %523 = vmatprep.subr.mxu0 0.0
  %524 = vmatpush1.msra.mxu0 0.0
  %525 = vmatprep.subr.mxu0 0.0
  %526 = vmatpush1.msra.mxu0 0.0
  %527 = vmatprep.subr.mxu0 0.0
  %528 = vmatpush1.msra.mxu0 0.0
  %529 = vmatprep.subr.mxu0 0.0
  %530 = vmatpush1.msra.mxu0 0.0
  %531 = vmatprep.subr.mxu0 0.0
  %532 = vmatpush1.msra.mxu0 0.0
  %533 = vmatprep.subr.mxu0 0.0
  %534 = vmatpush1.msra.mxu0 0.0
  %535 = vmatprep.subr.mxu0 0.0
  %536 = vmatpush1.msra.mxu0 0.0
  %537 = vmatprep.subr.mxu0 0.0
  %538 = vmatpush1.msra.mxu0 0.0
  %539 = vmatprep.subr.mxu0 0.0
  %540 = vmatpush1.msra.mxu0 0.0
  %541 = vmatprep.subr.mxu0 0.0
  %542 = vmatpush1.msra.mxu0 0.0
  %543 = vmatprep.subr.mxu0 0.0
  %544 = vmatpush1.msra.mxu0 0.0
  %545 = vmatprep.mubr.f32.mxu0 0.0
  %546 = vmatmul.mubr.f32.gmra.mrb[0].mxu0 %v458
  %v547 = vpop.f32.mrb[0].mxu0
  %v548 = vadd.f32 0.0, %v547
  %v549 = vpop.f32.mrb[0].mxu0
  %550 = vmatprep.mubr.f32.mxu0 0.0
  %551 = vmatmul.mubr.f32.gmra.mrb[0].mxu0 %v461
  %v552 = vpop.f32.mrb[0].mxu0
  %v553 = vadd.f32 0.0, %v552
  %v554 = vpop.f32.mrb[0].mxu0
  %555 = vmatprep.mubr.f32.mxu0 0.0
  %556 = vmatmul.mubr.f32.gmra.mrb[0].mxu0 %v464
  %v557 = vpop.f32.mrb[0].mxu0
  %v558 = vadd.f32 0.0, %v557
  %v559 = vpop.f32.mrb[0].mxu0
  %560 = vmatprep.mubr.f32.mxu0 0.0
  %561 = vmatmul.mubr.f32.gmra.mrb[0].mxu0 %v467
  %v562 = vpop.f32.mrb[0].mxu0
  %v563 = vadd.f32 0.0, %v562
  %v564 = vpop.f32.mrb[0].mxu0
  %565 = vmatprep.mubr.f32.mxu0 0.0
  %566 = vmatmul.mubr.f32.gmra.mrb[0].mxu0 %v470
  %v567 = vpop.f32.mrb[0].mxu0
  %v568 = vadd.f32 0.0, %v567
  %v569 = vpop.f32.mrb[0].mxu0
  %570 = vmatprep.mubr.f32.mxu0 0.0
  %571 = vmatmul.mubr.f32.gmra.mrb[0].mxu0 %v473
  %v572 = vpop.f32.mrb[0].mxu0
  %v573 = vadd.f32 0.0, %v572
  %v574 = vpop.f32.mrb[0].mxu0
  %575 = vmatprep.mubr.f32.mxu0 0.0
  %576 = vmatmul.mubr.f32.gmra.mrb[0].mxu0 %v476
  %v577 = vpop.f32.mrb[0].mxu0
  %v578 = vadd.f32 0.0, %v577
  %v579 = vpop.f32.mrb[0].mxu0
  %580 = vmatprep.mubr.f32.mxu0 0.0
  %581 = vmatmul.mubr.f32.gmra.mrb[0].mxu0 %v479
  %v582 = vpop.f32.mrb[0].mxu0
  %v583 = vadd.f32 0.0, %v582
  %v584 = vpop.f32.mrb[0].mxu0
  %585 = vdwg.mxu0
  %v586 = vadd.f32 %v438, %v548
  %v587 = vadd.f32 %v439, %v553
  %v588 = vadd.f32 %v440, %v558
  %v589 = vadd.f32 %v441, %v563
  %v590 = vadd.f32 %v442, %v568
  %v591 = vadd.f32 %v443, %v573
  %v592 = vadd.f32 %v444, %v578
  %v593 = vadd.f32 %v445, %v583
  %v594 = vld [vmem:[%s446 + $0x1] sm:$0xff]
  %v595 = vld [vmem:[%s446 + $0x11] sm:$0xff]
  %v596 = vld [vmem:[%s446 + $0x21] sm:$0xff]
  %v597 = vld [vmem:[%s446 + $0x31] sm:$0xff]
  %v598 = vld [vmem:[%s446 + $0x41] sm:$0xff]
  %v599 = vld [vmem:[%s446 + $0x51] sm:$0xff]
  %v600 = vld [vmem:[%s446 + $0x61] sm:$0xff]
  %v601 = vld [vmem:[%s446 + $0x71] sm:$0xff]
  %v602 = vld [vmem:[%s1 + $0x40] sm:$0xff]
  %v603 = vld [vmem:[%s1 + $0x48] sm:$0xff]
  %v605 = vsel %vm40, %v594, 0
  %v608 = vsel %vm40, %v595, 0
  %v611 = vsel %vm40, %v596, 0
  %v614 = vsel %vm40, %v597, 0
  %v617 = vsel %vm40, %v598, 0
  %v620 = vsel %vm40, %v599, 0
  %v623 = vsel %vm40, %v600, 0
  %v626 = vsel %vm40, %v601, 0
  %628 = vmatprep.subr.mxu0 0.0
  %629 = vmatpush1.msra.mxu0 %v602
  %630 = vmatprep.subr.mxu0 0.0
  %631 = vmatpush1.msra.mxu0 %v603
  %632 = vmatprep.subr.mxu0 0.0
  %633 = vmatpush1.msra.mxu0 0.0
  %634 = vmatprep.subr.mxu0 0.0
  %635 = vmatpush1.msra.mxu0 0.0
  %636 = vmatprep.subr.mxu0 0.0
  %637 = vmatpush1.msra.mxu0 0.0
  %638 = vmatprep.subr.mxu0 0.0
  %639 = vmatpush1.msra.mxu0 0.0
  %640 = vmatprep.subr.mxu0 0.0
  %641 = vmatpush1.msra.mxu0 0.0
  %642 = vmatprep.subr.mxu0 0.0
  %643 = vmatpush1.msra.mxu0 0.0
  %644 = vmatprep.subr.mxu0 0.0
  %645 = vmatpush1.msra.mxu0 0.0
  %646 = vmatprep.subr.mxu0 0.0
  %647 = vmatpush1.msra.mxu0 0.0
  %648 = vmatprep.subr.mxu0 0.0
  %649 = vmatpush1.msra.mxu0 0.0
  %650 = vmatprep.subr.mxu0 0.0
  %651 = vmatpush1.msra.mxu0 0.0
  %652 = vmatprep.subr.mxu0 0.0
  %653 = vmatpush1.msra.mxu0 0.0
  %654 = vmatprep.subr.mxu0 0.0
  %655 = vmatpush1.msra.mxu0 0.0
  %656 = vmatprep.subr.mxu0 0.0
  %657 = vmatpush1.msra.mxu0 0.0
  %658 = vmatprep.subr.mxu0 0.0
  %659 = vmatpush1.msra.mxu0 0.0
  %660 = vmatprep.subr.mxu0 0.0
  %661 = vmatpush1.msra.mxu0 0.0
  %662 = vmatprep.subr.mxu0 0.0
  %663 = vmatpush1.msra.mxu0 0.0
  %664 = vmatprep.subr.mxu0 0.0
  %665 = vmatpush1.msra.mxu0 0.0
  %666 = vmatprep.subr.mxu0 0.0
  %667 = vmatpush1.msra.mxu0 0.0
  %668 = vmatprep.subr.mxu0 0.0
  %669 = vmatpush1.msra.mxu0 0.0
  %670 = vmatprep.subr.mxu0 0.0
  %671 = vmatpush1.msra.mxu0 0.0
  %672 = vmatprep.subr.mxu0 0.0
  %673 = vmatpush1.msra.mxu0 0.0
  %674 = vmatprep.subr.mxu0 0.0
  %675 = vmatpush1.msra.mxu0 0.0
  %676 = vmatprep.subr.mxu0 0.0
  %677 = vmatpush1.msra.mxu0 0.0
  %678 = vmatprep.subr.mxu0 0.0
  %679 = vmatpush1.msra.mxu0 0.0
  %680 = vmatprep.subr.mxu0 0.0
  %681 = vmatpush1.msra.mxu0 0.0
  %682 = vmatprep.subr.mxu0 0.0
  %683 = vmatpush1.msra.mxu0 0.0
  %684 = vmatprep.subr.mxu0 0.0
  %685 = vmatpush1.msra.mxu0 0.0
  %686 = vmatprep.subr.mxu0 0.0
  %687 = vmatpush1.msra.mxu0 0.0
  %688 = vmatprep.subr.mxu0 0.0
  %689 = vmatpush1.msra.mxu0 0.0
  %690 = vmatprep.subr.mxu0 0.0
  %691 = vmatpush1.msra.mxu0 0.0
  %692 = vmatprep.mubr.f32.mxu0 0.0
  %693 = vmatmul.mubr.f32.gmra.mrb[0].mxu0 %v605
  %v694 = vpop.f32.mrb[0].mxu0
  %v695 = vadd.f32 0.0, %v694
  %v696 = vpop.f32.mrb[0].mxu0
  %697 = vmatprep.mubr.f32.mxu0 0.0
  %698 = vmatmul.mubr.f32.gmra.mrb[0].mxu0 %v608
  %v699 = vpop.f32.mrb[0].mxu0
  %v700 = vadd.f32 0.0, %v699
  %v701 = vpop.f32.mrb[0].mxu0
  %702 = vmatprep.mubr.f32.mxu0 0.0
  %703 = vmatmul.mubr.f32.gmra.mrb[0].mxu0 %v611
  %v704 = vpop.f32.mrb[0].mxu0
  %v705 = vadd.f32 0.0, %v704
  %v706 = vpop.f32.mrb[0].mxu0
  %707 = vmatprep.mubr.f32.mxu0 0.0
  %708 = vmatmul.mubr.f32.gmra.mrb[0].mxu0 %v614
  %v709 = vpop.f32.mrb[0].mxu0
  %v710 = vadd.f32 0.0, %v709
  %v711 = vpop.f32.mrb[0].mxu0
  %712 = vmatprep.mubr.f32.mxu0 0.0
  %713 = vmatmul.mubr.f32.gmra.mrb[0].mxu0 %v617
  %v714 = vpop.f32.mrb[0].mxu0
  %v715 = vadd.f32 0.0, %v714
  %v716 = vpop.f32.mrb[0].mxu0
  %717 = vmatprep.mubr.f32.mxu0 0.0
  %718 = vmatmul.mubr.f32.gmra.mrb[0].mxu0 %v620
  %v719 = vpop.f32.mrb[0].mxu0
  %v720 = vadd.f32 0.0, %v719
  %v721 = vpop.f32.mrb[0].mxu0
  %722 = vmatprep.mubr.f32.mxu0 0.0
  %723 = vmatmul.mubr.f32.gmra.mrb[0].mxu0 %v623
  %v724 = vpop.f32.mrb[0].mxu0
  %v725 = vadd.f32 0.0, %v724
  %v726 = vpop.f32.mrb[0].mxu0
  %727 = vmatprep.mubr.f32.mxu0 0.0
  %728 = vmatmul.mubr.f32.gmra.mrb[0].mxu0 %v626
  %v729 = vpop.f32.mrb[0].mxu0
  %v730 = vadd.f32 0.0, %v729
  %v731 = vpop.f32.mrb[0].mxu0
  %732 = vdwg.mxu0
  %v733 = vadd.f32 %v586, %v695
  %v734 = vadd.f32 %v587, %v700
  %v735 = vadd.f32 %v588, %v705
  %v736 = vadd.f32 %v589, %v710
  %v737 = vadd.f32 %v590, %v715
  %v738 = vadd.f32 %v591, %v720
  %v739 = vadd.f32 %v592, %v725
  %v740 = vadd.f32 %v593, %v730
  %v741 = vld [vmem:[%s446 + $0x2] sm:$0xff]
  %v742 = vld [vmem:[%s446 + $0x12] sm:$0xff]
  %v743 = vld [vmem:[%s446 + $0x22] sm:$0xff]
  %v744 = vld [vmem:[%s446 + $0x32] sm:$0xff]
  %v745 = vld [vmem:[%s446 + $0x42] sm:$0xff]
  %v746 = vld [vmem:[%s446 + $0x52] sm:$0xff]
  %v747 = vld [vmem:[%s446 + $0x62] sm:$0xff]
  %v748 = vld [vmem:[%s446 + $0x72] sm:$0xff]
  %v749 = vld [vmem:[%s1 + $0x50] sm:$0xff]
  %v750 = vld [vmem:[%s1 + $0x58] sm:$0xff]
  %v752 = vsel %vm40, %v741, 0
  %v755 = vsel %vm40, %v742, 0
  %v758 = vsel %vm40, %v743, 0
  %v761 = vsel %vm40, %v744, 0
  %v764 = vsel %vm40, %v745, 0
  %v767 = vsel %vm40, %v746, 0
  %v770 = vsel %vm40, %v747, 0
  %v773 = vsel %vm40, %v748, 0
  %775 = vmatprep.subr.mxu0 0.0
  %776 = vmatpush1.msra.mxu0 %v749
  %777 = vmatprep.subr.mxu0 0.0
  %778 = vmatpush1.msra.mxu0 %v750
  %779 = vmatprep.subr.mxu0 0.0
  %780 = vmatpush1.msra.mxu0 0.0
  %781 = vmatprep.subr.mxu0 0.0
  %782 = vmatpush1.msra.mxu0 0.0
  %783 = vmatprep.subr.mxu0 0.0
  %784 = vmatpush1.msra.mxu0 0.0
  %785 = vmatprep.subr.mxu0 0.0
  %786 = vmatpush1.msra.mxu0 0.0
  %787 = vmatprep.subr.mxu0 0.0
  %788 = vmatpush1.msra.mxu0 0.0
  %789 = vmatprep.subr.mxu0 0.0
  %790 = vmatpush1.msra.mxu0 0.0
  %791 = vmatprep.subr.mxu0 0.0
  %792 = vmatpush1.msra.mxu0 0.0
  %793 = vmatprep.subr.mxu0 0.0
  %794 = vmatpush1.msra.mxu0 0.0
  %795 = vmatprep.subr.mxu0 0.0
  %796 = vmatpush1.msra.mxu0 0.0
  %797 = vmatprep.subr.mxu0 0.0
  %798 = vmatpush1.msra.mxu0 0.0
  %799 = vmatprep.subr.mxu0 0.0
  %800 = vmatpush1.msra.mxu0 0.0
  %801 = vmatprep.subr.mxu0 0.0
  %802 = vmatpush1.msra.mxu0 0.0
  %803 = vmatprep.subr.mxu0 0.0
  %804 = vmatpush1.msra.mxu0 0.0
  %805 = vmatprep.subr.mxu0 0.0
  %806 = vmatpush1.msra.mxu0 0.0
  %807 = vmatprep.subr.mxu0 0.0
  %808 = vmatpush1.msra.mxu0 0.0
  %809 = vmatprep.subr.mxu0 0.0
  %810 = vmatpush1.msra.mxu0 0.0
  %811 = vmatprep.subr.mxu0 0.0
  %812 = vmatpush1.msra.mxu0 0.0
  %813 = vmatprep.subr.mxu0 0.0
  %814 = vmatpush1.msra.mxu0 0.0
  %815 = vmatprep.subr.mxu0 0.0
  %816 = vmatpush1.msra.mxu0 0.0
  %817 = vmatprep.subr.mxu0 0.0
  %818 = vmatpush1.msra.mxu0 0.0
  %819 = vmatprep.subr.mxu0 0.0
  %820 = vmatpush1.msra.mxu0 0.0
  %821 = vmatprep.subr.mxu0 0.0
  %822 = vmatpush1.msra.mxu0 0.0
  %823 = vmatprep.subr.mxu0 0.0
  %824 = vmatpush1.msra.mxu0 0.0
  %825 = vmatprep.subr.mxu0 0.0
  %826 = vmatpush1.msra.mxu0 0.0
  %827 = vmatprep.subr.mxu0 0.0
  %828 = vmatpush1.msra.mxu0 0.0
  %829 = vmatprep.subr.mxu0 0.0
  %830 = vmatpush1.msra.mxu0 0.0
  %831 = vmatprep.subr.mxu0 0.0
  %832 = vmatpush1.msra.mxu0 0.0
  %833 = vmatprep.subr.mxu0 0.0
  %834 = vmatpush1.msra.mxu0 0.0
  %835 = vmatprep.subr.mxu0 0.0
  %836 = vmatpush1.msra.mxu0 0.0
  %837 = vmatprep.subr.mxu0 0.0
  %838 = vmatpush1.msra.mxu0 0.0
  %839 = vmatprep.mubr.f32.mxu0 0.0
  %840 = vmatmul.mubr.f32.gmra.mrb[0].mxu0 %v752
  %v841 = vpop.f32.mrb[0].mxu0
  %v842 = vadd.f32 0.0, %v841
  %v843 = vpop.f32.mrb[0].mxu0
  %844 = vmatprep.mubr.f32.mxu0 0.0
  %845 = vmatmul.mubr.f32.gmra.mrb[0].mxu0 %v755
  %v846 = vpop.f32.mrb[0].mxu0
  %v847 = vadd.f32 0.0, %v846
  %v848 = vpop.f32.mrb[0].mxu0
  %849 = vmatprep.mubr.f32.mxu0 0.0
  %850 = vmatmul.mubr.f32.gmra.mrb[0].mxu0 %v758
  %v851 = vpop.f32.mrb[0].mxu0
  %v852 = vadd.f32 0.0, %v851
  %v853 = vpop.f32.mrb[0].mxu0
  %854 = vmatprep.mubr.f32.mxu0 0.0
  %855 = vmatmul.mubr.f32.gmra.mrb[0].mxu0 %v761
  %v856 = vpop.f32.mrb[0].mxu0
  %v857 = vadd.f32 0.0, %v856
  %v858 = vpop.f32.mrb[0].mxu0
  %859 = vmatprep.mubr.f32.mxu0 0.0
  %860 = vmatmul.mubr.f32.gmra.mrb[0].mxu0 %v764
  %v861 = vpop.f32.mrb[0].mxu0
  %v862 = vadd.f32 0.0, %v861
  %v863 = vpop.f32.mrb[0].mxu0
  %864 = vmatprep.mubr.f32.mxu0 0.0
  %865 = vmatmul.mubr.f32.gmra.mrb[0].mxu0 %v767
  %v866 = vpop.f32.mrb[0].mxu0
  %v867 = vadd.f32 0.0, %v866
  %v868 = vpop.f32.mrb[0].mxu0
  %869 = vmatprep.mubr.f32.mxu0 0.0
  %870 = vmatmul.mubr.f32.gmra.mrb[0].mxu0 %v770
  %v871 = vpop.f32.mrb[0].mxu0
  %v872 = vadd.f32 0.0, %v871
  %v873 = vpop.f32.mrb[0].mxu0
  %874 = vmatprep.mubr.f32.mxu0 0.0
  %875 = vmatmul.mubr.f32.gmra.mrb[0].mxu0 %v773
  %v876 = vpop.f32.mrb[0].mxu0
  %v877 = vadd.f32 0.0, %v876
  %v878 = vpop.f32.mrb[0].mxu0
  %879 = vdwg.mxu0
  %v880 = vadd.f32 %v733, %v842
  %v881 = vadd.f32 %v734, %v847
  %v882 = vadd.f32 %v735, %v852
  %v883 = vadd.f32 %v736, %v857
  %v884 = vadd.f32 %v737, %v862
  %v885 = vadd.f32 %v738, %v867
  %v886 = vadd.f32 %v739, %v872
  %v887 = vadd.f32 %v740, %v877
  %s888 = scalar_lea.vmem %s0, 32
  %v889 = vld [vmem:[%s888] sm:$0xff]
  %v890 = vld [vmem:[%s888 + $0x10] sm:$0xff]
  %v891 = vld [vmem:[%s888 + $0x20] sm:$0xff]
  %v892 = vld [vmem:[%s888 + $0x30] sm:$0xff]
  %v893 = vld [vmem:[%s888 + $0x40] sm:$0xff]
  %v894 = vld [vmem:[%s888 + $0x50] sm:$0xff]
  %v895 = vld [vmem:[%s888 + $0x60] sm:$0xff]
  %v896 = vld [vmem:[%s888 + $0x70] sm:$0xff]
  %v897 = vld [vmem:[%s1 + $0x60] sm:$0xff]
  %v898 = vld [vmem:[%s1 + $0x68] sm:$0xff]
  %v900 = vsel %vm40, %v889, 0
  %v903 = vsel %vm40, %v890, 0
  %v906 = vsel %vm40, %v891, 0
  %v909 = vsel %vm40, %v892, 0
  %v912 = vsel %vm40, %v893, 0
  %v915 = vsel %vm40, %v894, 0
  %v918 = vsel %vm40, %v895, 0
  %v921 = vsel %vm40, %v896, 0
  %923 = vmatprep.subr.mxu0 0.0
  %924 = vmatpush1.msra.mxu0 %v897
  %925 = vmatprep.subr.mxu0 0.0
  %926 = vmatpush1.msra.mxu0 %v898
  %927 = vmatprep.subr.mxu0 0.0
  %928 = vmatpush1.msra.mxu0 0.0
  %929 = vmatprep.subr.mxu0 0.0
  %930 = vmatpush1.msra.mxu0 0.0
  %931 = vmatprep.subr.mxu0 0.0
  %932 = vmatpush1.msra.mxu0 0.0
  %933 = vmatprep.subr.mxu0 0.0
  %934 = vmatpush1.msra.mxu0 0.0
  %935 = vmatprep.subr.mxu0 0.0
  %936 = vmatpush1.msra.mxu0 0.0
  %937 = vmatprep.subr.mxu0 0.0
  %938 = vmatpush1.msra.mxu0 0.0
  %939 = vmatprep.subr.mxu0 0.0
  %940 = vmatpush1.msra.mxu0 0.0
  %941 = vmatprep.subr.mxu0 0.0
  %942 = vmatpush1.msra.mxu0 0.0
  %943 = vmatprep.subr.mxu0 0.0
  %944 = vmatpush1.msra.mxu0 0.0
  %945 = vmatprep.subr.mxu0 0.0
  %946 = vmatpush1.msra.mxu0 0.0
  %947 = vmatprep.subr.mxu0 0.0
  %948 = vmatpush1.msra.mxu0 0.0
  %949 = vmatprep.subr.mxu0 0.0
  %950 = vmatpush1.msra.mxu0 0.0
  %951 = vmatprep.subr.mxu0 0.0
  %952 = vmatpush1.msra.mxu0 0.0
  %953 = vmatprep.subr.mxu0 0.0
  %954 = vmatpush1.msra.mxu0 0.0
  %955 = vmatprep.subr.mxu0 0.0
  %956 = vmatpush1.msra.mxu0 0.0
  %957 = vmatprep.subr.mxu0 0.0
  %958 = vmatpush1.msra.mxu0 0.0
  %959 = vmatprep.subr.mxu0 0.0
  %960 = vmatpush1.msra.mxu0 0.0
  %961 = vmatprep.subr.mxu0 0.0
  %962 = vmatpush1.msra.mxu0 0.0
  %963 = vmatprep.subr.mxu0 0.0
  %964 = vmatpush1.msra.mxu0 0.0
  %965 = vmatprep.subr.mxu0 0.0
  %966 = vmatpush1.msra.mxu0 0.0
  %967 = vmatprep.subr.mxu0 0.0
  %968 = vmatpush1.msra.mxu0 0.0
  %969 = vmatprep.subr.mxu0 0.0
  %970 = vmatpush1.msra.mxu0 0.0
  %971 = vmatprep.subr.mxu0 0.0
  %972 = vmatpush1.msra.mxu0 0.0
  %973 = vmatprep.subr.mxu0 0.0
  %974 = vmatpush1.msra.mxu0 0.0
  %975 = vmatprep.subr.mxu0 0.0
  %976 = vmatpush1.msra.mxu0 0.0
  %977 = vmatprep.subr.mxu0 0.0
  %978 = vmatpush1.msra.mxu0 0.0
  %979 = vmatprep.subr.mxu0 0.0
  %980 = vmatpush1.msra.mxu0 0.0
  %981 = vmatprep.subr.mxu0 0.0
  %982 = vmatpush1.msra.mxu0 0.0
  %983 = vmatprep.subr.mxu0 0.0
  %984 = vmatpush1.msra.mxu0 0.0
  %985 = vmatprep.subr.mxu0 0.0
  %986 = vmatpush1.msra.mxu0 0.0
  %987 = vmatprep.mubr.f32.mxu0 0.0
  %988 = vmatmul.mubr.f32.gmra.mrb[0].mxu0 %v900
  %v989 = vpop.f32.mrb[0].mxu0
  %v990 = vadd.f32 0.0, %v989
  %v991 = vpop.f32.mrb[0].mxu0
  %992 = vmatprep.mubr.f32.mxu0 0.0
  %993 = vmatmul.mubr.f32.gmra.mrb[0].mxu0 %v903
  %v994 = vpop.f32.mrb[0].mxu0
  %v995 = vadd.f32 0.0, %v994
  %v996 = vpop.f32.mrb[0].mxu0
  %997 = vmatprep.mubr.f32.mxu0 0.0
  %998 = vmatmul.mubr.f32.gmra.mrb[0].mxu0 %v906
  %v999 = vpop.f32.mrb[0].mxu0
  %v1000 = vadd.f32 0.0, %v999
  %v1001 = vpop.f32.mrb[0].mxu0
  %1002 = vmatprep.mubr.f32.mxu0 0.0
  %1003 = vmatmul.mubr.f32.gmra.mrb[0].mxu0 %v909
  %v1004 = vpop.f32.mrb[0].mxu0
  %v1005 = vadd.f32 0.0, %v1004
  %v1006 = vpop.f32.mrb[0].mxu0
  %1007 = vmatprep.mubr.f32.mxu0 0.0
  %1008 = vmatmul.mubr.f32.gmra.mrb[0].mxu0 %v912
  %v1009 = vpop.f32.mrb[0].mxu0
  %v1010 = vadd.f32 0.0, %v1009
  %v1011 = vpop.f32.mrb[0].mxu0
  %1012 = vmatprep.mubr.f32.mxu0 0.0
  %1013 = vmatmul.mubr.f32.gmra.mrb[0].mxu0 %v915
  %v1014 = vpop.f32.mrb[0].mxu0
  %v1015 = vadd.f32 0.0, %v1014
  %v1016 = vpop.f32.mrb[0].mxu0
  %1017 = vmatprep.mubr.f32.mxu0 0.0
  %1018 = vmatmul.mubr.f32.gmra.mrb[0].mxu0 %v918
  %v1019 = vpop.f32.mrb[0].mxu0
  %v1020 = vadd.f32 0.0, %v1019
  %v1021 = vpop.f32.mrb[0].mxu0
  %1022 = vmatprep.mubr.f32.mxu0 0.0
  %1023 = vmatmul.mubr.f32.gmra.mrb[0].mxu0 %v921
  %v1024 = vpop.f32.mrb[0].mxu0
  %v1025 = vadd.f32 0.0, %v1024
  %v1026 = vpop.f32.mrb[0].mxu0
  %1027 = vdwg.mxu0
  %v1028 = vadd.f32 %v880, %v990
  %v1029 = vadd.f32 %v881, %v995
  %v1030 = vadd.f32 %v882, %v1000
  %v1031 = vadd.f32 %v883, %v1005
  %v1032 = vadd.f32 %v884, %v1010
  %v1033 = vadd.f32 %v885, %v1015
  %v1034 = vadd.f32 %v886, %v1020
  %v1035 = vadd.f32 %v887, %v1025
  %v1036 = vld [vmem:[%s888 + $0x1] sm:$0xff]
  %v1037 = vld [vmem:[%s888 + $0x11] sm:$0xff]
  %v1038 = vld [vmem:[%s888 + $0x21] sm:$0xff]
  %v1039 = vld [vmem:[%s888 + $0x31] sm:$0xff]
  %v1040 = vld [vmem:[%s888 + $0x41] sm:$0xff]
  %v1041 = vld [vmem:[%s888 + $0x51] sm:$0xff]
  %v1042 = vld [vmem:[%s888 + $0x61] sm:$0xff]
  %v1043 = vld [vmem:[%s888 + $0x71] sm:$0xff]
  %v1044 = vld [vmem:[%s1 + $0x70] sm:$0xff]
  %v1045 = vld [vmem:[%s1 + $0x78] sm:$0xff]
  %v1047 = vsel %vm40, %v1036, 0
  %v1050 = vsel %vm40, %v1037, 0
  %v1053 = vsel %vm40, %v1038, 0
  %v1056 = vsel %vm40, %v1039, 0
  %v1059 = vsel %vm40, %v1040, 0
  %v1062 = vsel %vm40, %v1041, 0
  %v1065 = vsel %vm40, %v1042, 0
  %v1068 = vsel %vm40, %v1043, 0
  %1070 = vmatprep.subr.mxu0 0.0
  %1071 = vmatpush1.msra.mxu0 %v1044
  %1072 = vmatprep.subr.mxu0 0.0
  %1073 = vmatpush1.msra.mxu0 %v1045
  %1074 = vmatprep.subr.mxu0 0.0
  %1075 = vmatpush1.msra.mxu0 0.0
  %1076 = vmatprep.subr.mxu0 0.0
  %1077 = vmatpush1.msra.mxu0 0.0
  %1078 = vmatprep.subr.mxu0 0.0
  %1079 = vmatpush1.msra.mxu0 0.0
  %1080 = vmatprep.subr.mxu0 0.0
  %1081 = vmatpush1.msra.mxu0 0.0
  %1082 = vmatprep.subr.mxu0 0.0
  %1083 = vmatpush1.msra.mxu0 0.0
  %1084 = vmatprep.subr.mxu0 0.0
  %1085 = vmatpush1.msra.mxu0 0.0
  %1086 = vmatprep.subr.mxu0 0.0
  %1087 = vmatpush1.msra.mxu0 0.0
  %1088 = vmatprep.subr.mxu0 0.0
  %1089 = vmatpush1.msra.mxu0 0.0
  %1090 = vmatprep.subr.mxu0 0.0
  %1091 = vmatpush1.msra.mxu0 0.0
  %1092 = vmatprep.subr.mxu0 0.0
  %1093 = vmatpush1.msra.mxu0 0.0
  %1094 = vmatprep.subr.mxu0 0.0
  %1095 = vmatpush1.msra.mxu0 0.0
  %1096 = vmatprep.subr.mxu0 0.0
  %1097 = vmatpush1.msra.mxu0 0.0
  %1098 = vmatprep.subr.mxu0 0.0
  %1099 = vmatpush1.msra.mxu0 0.0
  %1100 = vmatprep.subr.mxu0 0.0
  %1101 = vmatpush1.msra.mxu0 0.0
  %1102 = vmatprep.subr.mxu0 0.0
  %1103 = vmatpush1.msra.mxu0 0.0
  %1104 = vmatprep.subr.mxu0 0.0
  %1105 = vmatpush1.msra.mxu0 0.0
  %1106 = vmatprep.subr.mxu0 0.0
  %1107 = vmatpush1.msra.mxu0 0.0
  %1108 = vmatprep.subr.mxu0 0.0
  %1109 = vmatpush1.msra.mxu0 0.0
  %1110 = vmatprep.subr.mxu0 0.0
  %1111 = vmatpush1.msra.mxu0 0.0
  %1112 = vmatprep.subr.mxu0 0.0
  %1113 = vmatpush1.msra.mxu0 0.0
  %1114 = vmatprep.subr.mxu0 0.0
  %1115 = vmatpush1.msra.mxu0 0.0
  %1116 = vmatprep.subr.mxu0 0.0
  %1117 = vmatpush1.msra.mxu0 0.0
  %1118 = vmatprep.subr.mxu0 0.0
  %1119 = vmatpush1.msra.mxu0 0.0
  %1120 = vmatprep.subr.mxu0 0.0
  %1121 = vmatpush1.msra.mxu0 0.0
  %1122 = vmatprep.subr.mxu0 0.0
  %1123 = vmatpush1.msra.mxu0 0.0
  %1124 = vmatprep.subr.mxu0 0.0
  %1125 = vmatpush1.msra.mxu0 0.0
  %1126 = vmatprep.subr.mxu0 0.0
  %1127 = vmatpush1.msra.mxu0 0.0
  %1128 = vmatprep.subr.mxu0 0.0
  %1129 = vmatpush1.msra.mxu0 0.0
  %1130 = vmatprep.subr.mxu0 0.0
  %1131 = vmatpush1.msra.mxu0 0.0
  %1132 = vmatprep.subr.mxu0 0.0
  %1133 = vmatpush1.msra.mxu0 0.0
  %1134 = vmatprep.mubr.f32.mxu0 0.0
  %1135 = vmatmul.mubr.f32.gmra.mrb[0].mxu0 %v1047
  %v1136 = vpop.f32.mrb[0].mxu0
  %v1137 = vadd.f32 0.0, %v1136
  %v1138 = vpop.f32.mrb[0].mxu0
  %1139 = vmatprep.mubr.f32.mxu0 0.0
  %1140 = vmatmul.mubr.f32.gmra.mrb[0].mxu0 %v1050
  %v1141 = vpop.f32.mrb[0].mxu0
  %v1142 = vadd.f32 0.0, %v1141
  %v1143 = vpop.f32.mrb[0].mxu0
  %1144 = vmatprep.mubr.f32.mxu0 0.0
  %1145 = vmatmul.mubr.f32.gmra.mrb[0].mxu0 %v1053
  %v1146 = vpop.f32.mrb[0].mxu0
  %v1147 = vadd.f32 0.0, %v1146
  %v1148 = vpop.f32.mrb[0].mxu0
  %1149 = vmatprep.mubr.f32.mxu0 0.0
  %1150 = vmatmul.mubr.f32.gmra.mrb[0].mxu0 %v1056
  %v1151 = vpop.f32.mrb[0].mxu0
  %v1152 = vadd.f32 0.0, %v1151
  %v1153 = vpop.f32.mrb[0].mxu0
  %1154 = vmatprep.mubr.f32.mxu0 0.0
  %1155 = vmatmul.mubr.f32.gmra.mrb[0].mxu0 %v1059
  %v1156 = vpop.f32.mrb[0].mxu0
  %v1157 = vadd.f32 0.0, %v1156
  %v1158 = vpop.f32.mrb[0].mxu0
  %1159 = vmatprep.mubr.f32.mxu0 0.0
  %1160 = vmatmul.mubr.f32.gmra.mrb[0].mxu0 %v1062
  %v1161 = vpop.f32.mrb[0].mxu0
  %v1162 = vadd.f32 0.0, %v1161
  %v1163 = vpop.f32.mrb[0].mxu0
  %1164 = vmatprep.mubr.f32.mxu0 0.0
  %1165 = vmatmul.mubr.f32.gmra.mrb[0].mxu0 %v1065
  %v1166 = vpop.f32.mrb[0].mxu0
  %v1167 = vadd.f32 0.0, %v1166
  %v1168 = vpop.f32.mrb[0].mxu0
  %1169 = vmatprep.mubr.f32.mxu0 0.0
  %1170 = vmatmul.mubr.f32.gmra.mrb[0].mxu0 %v1068
  %v1171 = vpop.f32.mrb[0].mxu0
  %v1172 = vadd.f32 0.0, %v1171
  %v1173 = vpop.f32.mrb[0].mxu0
  %1174 = vdwg.mxu0
  %v1175 = vadd.f32 %v1028, %v1137
  %v1176 = vadd.f32 %v1029, %v1142
  %v1177 = vadd.f32 %v1030, %v1147
  %v1178 = vadd.f32 %v1031, %v1152
  %v1179 = vadd.f32 %v1032, %v1157
  %v1180 = vadd.f32 %v1033, %v1162
  %v1181 = vadd.f32 %v1034, %v1167
  %v1182 = vadd.f32 %v1035, %v1172
  %v1183 = vld [vmem:[%s888 + $0x2] sm:$0xff]
  %v1184 = vld [vmem:[%s888 + $0x12] sm:$0xff]
  %v1185 = vld [vmem:[%s888 + $0x22] sm:$0xff]
  %v1186 = vld [vmem:[%s888 + $0x32] sm:$0xff]
  %v1187 = vld [vmem:[%s888 + $0x42] sm:$0xff]
  %v1188 = vld [vmem:[%s888 + $0x52] sm:$0xff]
  %v1189 = vld [vmem:[%s888 + $0x62] sm:$0xff]
  %v1190 = vld [vmem:[%s888 + $0x72] sm:$0xff]
  %v1191 = vld [vmem:[%s1 + $0x80] sm:$0xff]
  %v1192 = vld [vmem:[%s1 + $0x88] sm:$0xff]
  %v1194 = vsel %vm40, %v1183, 0
  %v1197 = vsel %vm40, %v1184, 0
  %v1200 = vsel %vm40, %v1185, 0
  %v1203 = vsel %vm40, %v1186, 0
  %v1206 = vsel %vm40, %v1187, 0
  %v1209 = vsel %vm40, %v1188, 0
  %v1212 = vsel %vm40, %v1189, 0
  %v1215 = vsel %vm40, %v1190, 0
  %1217 = vmatprep.subr.mxu0 0.0
  %1218 = vmatpush1.msra.mxu0 %v1191
  %1219 = vmatprep.subr.mxu0 0.0
  %1220 = vmatpush1.msra.mxu0 %v1192
  %1221 = vmatprep.subr.mxu0 0.0
  %1222 = vmatpush1.msra.mxu0 0.0
  %1223 = vmatprep.subr.mxu0 0.0
  %1224 = vmatpush1.msra.mxu0 0.0
  %1225 = vmatprep.subr.mxu0 0.0
  %1226 = vmatpush1.msra.mxu0 0.0
  %1227 = vmatprep.subr.mxu0 0.0
  %1228 = vmatpush1.msra.mxu0 0.0
  %1229 = vmatprep.subr.mxu0 0.0
  %1230 = vmatpush1.msra.mxu0 0.0
  %1231 = vmatprep.subr.mxu0 0.0
  %1232 = vmatpush1.msra.mxu0 0.0
  %1233 = vmatprep.subr.mxu0 0.0
  %1234 = vmatpush1.msra.mxu0 0.0
  %1235 = vmatprep.subr.mxu0 0.0
  %1236 = vmatpush1.msra.mxu0 0.0
  %1237 = vmatprep.subr.mxu0 0.0
  %1238 = vmatpush1.msra.mxu0 0.0
  %1239 = vmatprep.subr.mxu0 0.0
  %1240 = vmatpush1.msra.mxu0 0.0
  %1241 = vmatprep.subr.mxu0 0.0
  %1242 = vmatpush1.msra.mxu0 0.0
  %1243 = vmatprep.subr.mxu0 0.0
  %1244 = vmatpush1.msra.mxu0 0.0
  %1245 = vmatprep.subr.mxu0 0.0
  %1246 = vmatpush1.msra.mxu0 0.0
  %1247 = vmatprep.subr.mxu0 0.0
  %1248 = vmatpush1.msra.mxu0 0.0
  %1249 = vmatprep.subr.mxu0 0.0
  %1250 = vmatpush1.msra.mxu0 0.0
  %1251 = vmatprep.subr.mxu0 0.0
  %1252 = vmatpush1.msra.mxu0 0.0
  %1253 = vmatprep.subr.mxu0 0.0
  %1254 = vmatpush1.msra.mxu0 0.0
  %1255 = vmatprep.subr.mxu0 0.0
  %1256 = vmatpush1.msra.mxu0 0.0
  %1257 = vmatprep.subr.mxu0 0.0
  %1258 = vmatpush1.msra.mxu0 0.0
  %1259 = vmatprep.subr.mxu0 0.0
  %1260 = vmatpush1.msra.mxu0 0.0
  %1261 = vmatprep.subr.mxu0 0.0
  %1262 = vmatpush1.msra.mxu0 0.0
  %1263 = vmatprep.subr.mxu0 0.0
  %1264 = vmatpush1.msra.mxu0 0.0
  %1265 = vmatprep.subr.mxu0 0.0
  %1266 = vmatpush1.msra.mxu0 0.0
  %1267 = vmatprep.subr.mxu0 0.0
  %1268 = vmatpush1.msra.mxu0 0.0
  %1269 = vmatprep.subr.mxu0 0.0
  %1270 = vmatpush1.msra.mxu0 0.0
  %1271 = vmatprep.subr.mxu0 0.0
  %1272 = vmatpush1.msra.mxu0 0.0
  %1273 = vmatprep.subr.mxu0 0.0
  %1274 = vmatpush1.msra.mxu0 0.0
  %1275 = vmatprep.subr.mxu0 0.0
  %1276 = vmatpush1.msra.mxu0 0.0
  %1277 = vmatprep.subr.mxu0 0.0
  %1278 = vmatpush1.msra.mxu0 0.0
  %1279 = vmatprep.subr.mxu0 0.0
  %1280 = vmatpush1.msra.mxu0 0.0
  %1281 = vmatprep.mubr.f32.mxu0 0.0
  %1282 = vmatmul.mubr.f32.gmra.mrb[0].mxu0 %v1194
  %v1283 = vpop.f32.mrb[0].mxu0
  %v1284 = vadd.f32 0.0, %v1283
  %v1285 = vpop.f32.mrb[0].mxu0
  %1286 = vmatprep.mubr.f32.mxu0 0.0
  %1287 = vmatmul.mubr.f32.gmra.mrb[0].mxu0 %v1197
  %v1288 = vpop.f32.mrb[0].mxu0
  %v1289 = vadd.f32 0.0, %v1288
  %v1290 = vpop.f32.mrb[0].mxu0
  %1291 = vmatprep.mubr.f32.mxu0 0.0
  %1292 = vmatmul.mubr.f32.gmra.mrb[0].mxu0 %v1200
  %v1293 = vpop.f32.mrb[0].mxu0
  %v1294 = vadd.f32 0.0, %v1293
  %v1295 = vpop.f32.mrb[0].mxu0
  %1296 = vmatprep.mubr.f32.mxu0 0.0
  %1297 = vmatmul.mubr.f32.gmra.mrb[0].mxu0 %v1203
  %v1298 = vpop.f32.mrb[0].mxu0
  %v1299 = vadd.f32 0.0, %v1298
  %v1300 = vpop.f32.mrb[0].mxu0
  %1301 = vmatprep.mubr.f32.mxu0 0.0
  %1302 = vmatmul.mubr.f32.gmra.mrb[0].mxu0 %v1206
  %v1303 = vpop.f32.mrb[0].mxu0
  %v1304 = vadd.f32 0.0, %v1303
  %v1305 = vpop.f32.mrb[0].mxu0
  %1306 = vmatprep.mubr.f32.mxu0 0.0
  %1307 = vmatmul.mubr.f32.gmra.mrb[0].mxu0 %v1209
  %v1308 = vpop.f32.mrb[0].mxu0
  %v1309 = vadd.f32 0.0, %v1308
  %v1310 = vpop.f32.mrb[0].mxu0
  %1311 = vmatprep.mubr.f32.mxu0 0.0
  %1312 = vmatmul.mubr.f32.gmra.mrb[0].mxu0 %v1212
  %v1313 = vpop.f32.mrb[0].mxu0
  %v1314 = vadd.f32 0.0, %v1313
  %v1315 = vpop.f32.mrb[0].mxu0
  %1316 = vmatprep.mubr.f32.mxu0 0.0
  %1317 = vmatmul.mubr.f32.gmra.mrb[0].mxu0 %v1215
  %v1318 = vpop.f32.mrb[0].mxu0
  %v1319 = vadd.f32 0.0, %v1318
  %v1320 = vpop.f32.mrb[0].mxu0
  %1321 = vdwg.mxu0
  %v1322 = vadd.f32 %v1175, %v1284
  %v1323 = vadd.f32 %v1176, %v1289
  %v1324 = vadd.f32 %v1177, %v1294
  %v1325 = vadd.f32 %v1178, %v1299
  %v1326 = vadd.f32 %v1179, %v1304
  %v1327 = vadd.f32 %v1180, %v1309
  %v1328 = vadd.f32 %v1181, %v1314
  %v1329 = vadd.f32 %v1182, %v1319
  %v1330 = vld [vmem:[%s2] sm:$0x1]
  %v1332 = vlaneseq
  %v1333 = vshrl.u32 %v1332, 7
  %v1334 = vsub.s32 0, %v1333
  %v1335 = vrot.slane %v1330, %v1334
  %v1337 = vadd.f32 %v1322, %v1335
  %v1338 = vadd.f32 %v1323, %v1335
  %v1339 = vadd.f32 %v1324, %v1335
  %v1340 = vadd.f32 %v1325, %v1335
  %v1341 = vadd.f32 %v1326, %v1335
  %v1342 = vadd.f32 %v1327, %v1335
  %v1343 = vadd.f32 %v1328, %v1335
  %v1344 = vadd.f32 %v1329, %v1335
  %v1345 = vmax.f32 %v1337, 0.0
  %v1346 = vmax.f32 %v1338, 0.0
  %v1347 = vmax.f32 %v1339, 0.0
  %v1348 = vmax.f32 %v1340, 0.0
  %v1349 = vmax.f32 %v1341, 0.0
  %v1350 = vmax.f32 %v1342, 0.0
  %v1351 = vmax.f32 %v1343, 0.0
  %v1352 = vmax.f32 %v1344, 0.0
  %v1353 = vld [vmem:[%s3] sm:$0xff]
  %v1354 = vld [vmem:[%s3 + $0x8] sm:$0xff]
  %v1355 = vld [vmem:[%s4] sm:$0x1]
  %v1357 = vlaneseq
  %v1358 = vshrl.u32 %v1357, 7
  %v1359 = vsub.s32 0, %v1358
  %v1360 = vrot.slane %v1355, %v1359
  %v1363 = vsel %vm40, %v1345, 0
  %v1366 = vsel %vm40, %v1346, 0
  %v1369 = vsel %vm40, %v1347, 0
  %v1372 = vsel %vm40, %v1348, 0
  %v1375 = vsel %vm40, %v1349, 0
  %v1378 = vsel %vm40, %v1350, 0
  %v1381 = vsel %vm40, %v1351, 0
  %v1384 = vsel %vm40, %v1352, 0
  %1386 = vmatprep.subr.mxu0 0.0
  %1387 = vmatpush1.msra.mxu0 %v1353
  %1388 = vmatprep.subr.mxu0 0.0
  %1389 = vmatpush1.msra.mxu0 %v1354
  %1390 = vmatprep.subr.mxu0 0.0
  %1391 = vmatpush1.msra.mxu0 0.0
  %1392 = vmatprep.subr.mxu0 0.0
  %1393 = vmatpush1.msra.mxu0 0.0
  %1394 = vmatprep.subr.mxu0 0.0
  %1395 = vmatpush1.msra.mxu0 0.0
  %1396 = vmatprep.subr.mxu0 0.0
  %1397 = vmatpush1.msra.mxu0 0.0
  %1398 = vmatprep.subr.mxu0 0.0
  %1399 = vmatpush1.msra.mxu0 0.0
  %1400 = vmatprep.subr.mxu0 0.0
  %1401 = vmatpush1.msra.mxu0 0.0
  %1402 = vmatprep.subr.mxu0 0.0
  %1403 = vmatpush1.msra.mxu0 0.0
  %1404 = vmatprep.subr.mxu0 0.0
  %1405 = vmatpush1.msra.mxu0 0.0
  %1406 = vmatprep.subr.mxu0 0.0
  %1407 = vmatpush1.msra.mxu0 0.0
  %1408 = vmatprep.subr.mxu0 0.0
  %1409 = vmatpush1.msra.mxu0 0.0
  %1410 = vmatprep.subr.mxu0 0.0
  %1411 = vmatpush1.msra.mxu0 0.0
  %1412 = vmatprep.subr.mxu0 0.0
  %1413 = vmatpush1.msra.mxu0 0.0
  %1414 = vmatprep.subr.mxu0 0.0
  %1415 = vmatpush1.msra.mxu0 0.0
  %1416 = vmatprep.subr.mxu0 0.0
  %1417 = vmatpush1.msra.mxu0 0.0
  %1418 = vmatprep.subr.mxu0 0.0
  %1419 = vmatpush1.msra.mxu0 0.0
  %1420 = vmatprep.subr.mxu0 0.0
  %1421 = vmatpush1.msra.mxu0 0.0
  %1422 = vmatprep.subr.mxu0 0.0
  %1423 = vmatpush1.msra.mxu0 0.0
  %1424 = vmatprep.subr.mxu0 0.0
  %1425 = vmatpush1.msra.mxu0 0.0
  %1426 = vmatprep.subr.mxu0 0.0
  %1427 = vmatpush1.msra.mxu0 0.0
  %1428 = vmatprep.subr.mxu0 0.0
  %1429 = vmatpush1.msra.mxu0 0.0
  %1430 = vmatprep.subr.mxu0 0.0
  %1431 = vmatpush1.msra.mxu0 0.0
  %1432 = vmatprep.subr.mxu0 0.0
  %1433 = vmatpush1.msra.mxu0 0.0
  %1434 = vmatprep.subr.mxu0 0.0
  %1435 = vmatpush1.msra.mxu0 0.0
  %1436 = vmatprep.subr.mxu0 0.0
  %1437 = vmatpush1.msra.mxu0 0.0
  %1438 = vmatprep.subr.mxu0 0.0
  %1439 = vmatpush1.msra.mxu0 0.0
  %1440 = vmatprep.subr.mxu0 0.0
  %1441 = vmatpush1.msra.mxu0 0.0
  %1442 = vmatprep.subr.mxu0 0.0
  %1443 = vmatpush1.msra.mxu0 0.0
  %1444 = vmatprep.subr.mxu0 0.0
  %1445 = vmatpush1.msra.mxu0 0.0
  %1446 = vmatprep.subr.mxu0 0.0
  %1447 = vmatpush1.msra.mxu0 0.0
  %1448 = vmatprep.subr.mxu0 0.0
  %1449 = vmatpush1.msra.mxu0 0.0
  %1450 = vmatprep.mubr.f32.mxu0 0.0
  %1451 = vmatmul.mubr.f32.gmra.mrb[0].mxu0 %v1363
  %v1452 = vpop.f32.mrb[0].mxu0
  %v1453 = vadd.f32 %v1360, %v1452
  %v1454 = vpop.f32.mrb[0].mxu0
  %1455 = vmatprep.mubr.f32.mxu0 0.0
  %1456 = vmatmul.mubr.f32.gmra.mrb[0].mxu0 %v1366
  %v1457 = vpop.f32.mrb[0].mxu0
  %v1458 = vadd.f32 %v1360, %v1457
  %v1459 = vpop.f32.mrb[0].mxu0
  %1460 = vmatprep.mubr.f32.mxu0 0.0
  %1461 = vmatmul.mubr.f32.gmra.mrb[0].mxu0 %v1369
  %v1462 = vpop.f32.mrb[0].mxu0
  %v1463 = vadd.f32 %v1360, %v1462
  %v1464 = vpop.f32.mrb[0].mxu0
  %1465 = vmatprep.mubr.f32.mxu0 0.0
  %1466 = vmatmul.mubr.f32.gmra.mrb[0].mxu0 %v1372
  %v1467 = vpop.f32.mrb[0].mxu0
  %v1468 = vadd.f32 %v1360, %v1467
  %v1469 = vpop.f32.mrb[0].mxu0
  %1470 = vmatprep.mubr.f32.mxu0 0.0
  %1471 = vmatmul.mubr.f32.gmra.mrb[0].mxu0 %v1375
  %v1472 = vpop.f32.mrb[0].mxu0
  %v1473 = vadd.f32 %v1360, %v1472
  %v1474 = vpop.f32.mrb[0].mxu0
  %1475 = vmatprep.mubr.f32.mxu0 0.0
  %1476 = vmatmul.mubr.f32.gmra.mrb[0].mxu0 %v1378
  %v1477 = vpop.f32.mrb[0].mxu0
  %v1478 = vadd.f32 %v1360, %v1477
  %v1479 = vpop.f32.mrb[0].mxu0
  %1480 = vmatprep.mubr.f32.mxu0 0.0
  %1481 = vmatmul.mubr.f32.gmra.mrb[0].mxu0 %v1381
  %v1482 = vpop.f32.mrb[0].mxu0
  %v1483 = vadd.f32 %v1360, %v1482
  %v1484 = vpop.f32.mrb[0].mxu0
  %1485 = vmatprep.mubr.f32.mxu0 0.0
  %1486 = vmatmul.mubr.f32.gmra.mrb[0].mxu0 %v1384
  %v1487 = vpop.f32.mrb[0].mxu0
  %v1488 = vadd.f32 %v1360, %v1487
  %v1489 = vpop.f32.mrb[0].mxu0
  %1490 = vdwg.mxu0
  %vm1491 = vcmask 146432
  %1492 = vst.msk [vmem:[%s5] sm:$0xff] %vm1491, %v1453
  %1493 = vst.msk [vmem:[%s5 + $0x8] sm:$0xff] %vm1491, %v1458
  %1494 = vst.msk [vmem:[%s5 + $0x10] sm:$0xff] %vm1491, %v1463
  %1495 = vst.msk [vmem:[%s5 + $0x18] sm:$0xff] %vm1491, %v1468
  %1496 = vst.msk [vmem:[%s5 + $0x20] sm:$0xff] %vm1491, %v1473
  %1497 = vst.msk [vmem:[%s5 + $0x28] sm:$0xff] %vm1491, %v1478
  %1498 = vst.msk [vmem:[%s5 + $0x30] sm:$0xff] %vm1491, %v1483
  %1499 = vst.msk [vmem:[%s5 + $0x38] sm:$0xff] %vm1491, %v1488
  // Predicated region
  $region22: #{faster_rcnn_forward.4} parent=0 // pred_check
    _
  $region23: #{faster_rcnn_forward.4} parent=0 // pred_check_branch
    %1501 = sbr.rel (0) target = $region25
  $region24: #{faster_rcnn_forward.4} parent=0 // pred_region
    _
  $region25: #{faster_rcnn_forward.4} parent=0 // pred_fallthru
    _
  // Predicated region
  $region26: #{faster_rcnn_forward.4} parent=0 // pred_check
    _
  $region27: #{faster_rcnn_forward.4} parent=0 // pred_check_branch
    %1503 = sbr.rel (0) target = $region29
  $region28: #{faster_rcnn_forward.4} parent=0 // pred_region
    _
  $region29: #{faster_rcnn_forward.4} parent=0 // pred_fallthru
    _

// kernel: faster_rcnn_forward.3
$region0: #{faster_rcnn_forward.3}
  #allocation0 [shape = 'u32[]', space=smem, size = 0x4, offset = 0x4, fixed_abs, tag = 'smem constant byte address 0x4 - core index']
  #allocation1 [shape = 'u32[144,128]{1,0:T(1,128)}', space=vmem, size = 0x12000, scoped, tag = 'internal scratch']
  %s0 = inlined_call_operand.vmem [shape: f32[18,18,4], index: 0, kind: input, shape index: {}]
  %s1 = inlined_call_operand.vmem [shape: f32[36,16], index: 1, kind: input, shape index: {}]
  %s2 = inlined_call_operand.vmem [shape: f32[1,16], index: 2, kind: input, shape index: {}]
  %s3 = inlined_call_operand.vmem [shape: f32[256,16], index: 3, kind: output, shape index: {}]
  %s4 = sld [smem:[#allocation0]]
  $region22: #{faster_rcnn_forward.3} parent=0
    _
  %s6 = ssub.s32 1, %s4
  %s7 = scalar_select 0, %s6, %s4
  // Predicated region
  $region2: #{faster_rcnn_forward.3} parent=0 // pred_check
    _
  $region3: #{faster_rcnn_forward.3} parent=0 // pred_check_branch
    %9 = sbr.rel (0) target = $region5
  $region4: #{faster_rcnn_forward.3} parent=0 // pred_region
    _
  $region5: #{faster_rcnn_forward.3} parent=0 // pred_fallthru
    _
  // Predicated region
  $region6: #{faster_rcnn_forward.3} parent=0 // pred_check
    _
  $region7: #{faster_rcnn_forward.3} parent=0 // pred_check_branch
    %11 = sbr.rel (0) target = $region9
  $region8: #{faster_rcnn_forward.3} parent=0 // pred_region
    _
  $region9: #{faster_rcnn_forward.3} parent=0 // pred_fallthru
    _
  // Predicated region
  $region10: #{faster_rcnn_forward.3} parent=0 // pred_check
    _
  $region11: #{faster_rcnn_forward.3} parent=0 // pred_check_branch
    %13 = sbr.rel (0) target = $region13
  $region12: #{faster_rcnn_forward.3} parent=0 // pred_region
    _
  $region13: #{faster_rcnn_forward.3} parent=0 // pred_fallthru
    _
  %v14 = vld [vmem:[%s0] sm:$0xff]
  %v15 = vld [vmem:[%s0 + $0x8] sm:$0xff]
  %v16 = vld [vmem:[%s0 + $0x18] sm:$0xff]
  %v17 = vld [vmem:[%s0 + $0x20] sm:$0xff]
  %v18 = vld [vmem:[%s0 + $0x30] sm:$0xff]
  %v19 = vld [vmem:[%s0 + $0x38] sm:$0xff]
  %v20 = vld [vmem:[%s0 + $0x48] sm:$0xff]
  %v21 = vld [vmem:[%s0 + $0x50] sm:$0xff]
  %v22 = vld [vmem:[%s0 + $0x60] sm:$0xff]
  %v23 = vld [vmem:[%s0 + $0x68] sm:$0xff]
  %v24 = vld [vmem:[%s0 + $0x78] sm:$0xff]
  %v25 = vld [vmem:[%s0 + $0x80] sm:$0xff]
  %v26 = vld [vmem:[%s0 + $0x90] sm:$0xff]
  %v27 = vld [vmem:[%s0 + $0x98] sm:$0xff]
  %v28 = vld [vmem:[%s0 + $0xa8] sm:$0xff]
  %v29 = vld [vmem:[%s0 + $0xb0] sm:$0xff]
  %v30 = vld [vmem:[%s0 + $0xc0] sm:$0xff]
  %v31 = vld [vmem:[%s0 + $0xc8] sm:$0xff]
  %v32 = vld [vmem:[%s0 + $0xd8] sm:$0xff]
  %v33 = vld [vmem:[%s0 + $0xe0] sm:$0xff]
  %v34 = vld [vmem:[%s0 + $0xf0] sm:$0xff]
  %v35 = vld [vmem:[%s0 + $0xf8] sm:$0xff]
  %v36 = vld [vmem:[%s0 + $0x108] sm:$0xff]
  %v37 = vld [vmem:[%s0 + $0x110] sm:$0xff]
  %v38 = vld [vmem:[%s0 + $0x120] sm:$0xff]
  %v39 = vld [vmem:[%s0 + $0x128] sm:$0xff]
  %v40 = vld [vmem:[%s0 + $0x138] sm:$0xff]
  %v41 = vld [vmem:[%s0 + $0x140] sm:$0xff]
  %v42 = vld [vmem:[%s0 + $0x150] sm:$0xff]
  %v43 = vld [vmem:[%s0 + $0x158] sm:$0xff]
  %v44 = vld [vmem:[%s0 + $0x168] sm:$0xff]
  %v45 = vld [vmem:[%s0 + $0x170] sm:$0xff]
  %v46 = vld [vmem:[%s1] sm:$0xf]
  %v47 = vld [vmem:[%s0 + $0x1] sm:$0xff]
  %v48 = vld [vmem:[%s0 + $0x9] sm:$0xff]
  %v49 = vld [vmem:[%s0 + $0x19] sm:$0xff]
  %v50 = vld [vmem:[%s0 + $0x21] sm:$0xff]
  %v51 = vld [vmem:[%s0 + $0x31] sm:$0xff]
  %v52 = vld [vmem:[%s0 + $0x39] sm:$0xff]
  %v53 = vld [vmem:[%s0 + $0x49] sm:$0xff]
  %v54 = vld [vmem:[%s0 + $0x51] sm:$0xff]
  %v55 = vld [vmem:[%s0 + $0x61] sm:$0xff]
  %v56 = vld [vmem:[%s0 + $0x69] sm:$0xff]
  %v57 = vld [vmem:[%s0 + $0x79] sm:$0xff]
  %v58 = vld [vmem:[%s0 + $0x81] sm:$0xff]
  %v59 = vld [vmem:[%s0 + $0x91] sm:$0xff]
  %v60 = vld [vmem:[%s0 + $0x99] sm:$0xff]
  %v61 = vld [vmem:[%s0 + $0xa9] sm:$0xff]
  %v62 = vld [vmem:[%s0 + $0xb1] sm:$0xff]
  %v63 = vld [vmem:[%s0 + $0xc1] sm:$0xff]
  %v64 = vld [vmem:[%s0 + $0xc9] sm:$0xff]
  %v65 = vld [vmem:[%s0 + $0xd9] sm:$0xff]
  %v66 = vld [vmem:[%s0 + $0xe1] sm:$0xff]
  %v67 = vld [vmem:[%s0 + $0xf1] sm:$0xff]
  %v68 = vld [vmem:[%s0 + $0xf9] sm:$0xff]
  %v69 = vld [vmem:[%s0 + $0x109] sm:$0xff]
  %v70 = vld [vmem:[%s0 + $0x111] sm:$0xff]
  %v71 = vld [vmem:[%s0 + $0x121] sm:$0xff]
  %v72 = vld [vmem:[%s0 + $0x129] sm:$0xff]
  %v73 = vld [vmem:[%s0 + $0x139] sm:$0xff]
  %v74 = vld [vmem:[%s0 + $0x141] sm:$0xff]
  %v75 = vld [vmem:[%s0 + $0x151] sm:$0xff]
  %v76 = vld [vmem:[%s0 + $0x159] sm:$0xff]
  %v77 = vld [vmem:[%s0 + $0x169] sm:$0xff]
  %v78 = vld [vmem:[%s0 + $0x171] sm:$0xff]
  %v79 = vld [vmem:[%s1 + $0x4] sm:$0xf]
  %vm80 = vcmask 31744
  %v82 = vsel %vm80, %v47, 0
  %v85 = vsel %vm80, %v48, 0
  %v88 = vsel %vm80, %v49, 0
  %v91 = vsel %vm80, %v50, 0
  %v94 = vsel %vm80, %v51, 0
  %v97 = vsel %vm80, %v52, 0
  %v100 = vsel %vm80, %v53, 0
  %v103 = vsel %vm80, %v54, 0
  %v106 = vsel %vm80, %v55, 0
  %v109 = vsel %vm80, %v56, 0
  %v112 = vsel %vm80, %v57, 0
  %v115 = vsel %vm80, %v58, 0
  %v118 = vsel %vm80, %v59, 0
  %v121 = vsel %vm80, %v60, 0
  %v124 = vsel %vm80, %v61, 0
  %v127 = vsel %vm80, %v62, 0
  %v130 = vsel %vm80, %v63, 0
  %v133 = vsel %vm80, %v64, 0
  %v136 = vsel %vm80, %v65, 0
  %v139 = vsel %vm80, %v66, 0
  %v142 = vsel %vm80, %v67, 0
  %v145 = vsel %vm80, %v68, 0
  %v148 = vsel %vm80, %v69, 0
  %v151 = vsel %vm80, %v70, 0
  %v154 = vsel %vm80, %v71, 0
  %v157 = vsel %vm80, %v72, 0
  %v160 = vsel %vm80, %v73, 0
  %v163 = vsel %vm80, %v74, 0
  %v166 = vsel %vm80, %v75, 0
  %v169 = vsel %vm80, %v76, 0
  %v172 = vsel %vm80, %v77, 0
  %v175 = vsel %vm80, %v78, 0
  %vm177 = vcmask 1043456
  %v179 = vsel %vm177, %v79, 0
  %181 = vmatprep.subr.mxu0 0.0
  %182 = vmatpush1.msra.mxu0 %v179
  %183 = vmatprep.subr.mxu0 0.0
  %184 = vmatpush1.msra.mxu0 0.0
  %185 = vmatprep.subr.mxu0 0.0
  %186 = vmatpush1.msra.mxu0 0.0
  %187 = vmatprep.subr.mxu0 0.0
  %188 = vmatpush1.msra.mxu0 0.0
  %189 = vmatprep.subr.mxu0 0.0
  %190 = vmatpush1.msra.mxu0 0.0
  %191 = vmatprep.subr.mxu0 0.0
  %192 = vmatpush1.msra.mxu0 0.0
  %193 = vmatprep.subr.mxu0 0.0
  %194 = vmatpush1.msra.mxu0 0.0
  %195 = vmatprep.subr.mxu0 0.0
  %196 = vmatpush1.msra.mxu0 0.0
  %197 = vmatprep.subr.mxu0 0.0
  %198 = vmatpush1.msra.mxu0 0.0
  %199 = vmatprep.subr.mxu0 0.0
  %200 = vmatpush1.msra.mxu0 0.0
  %201 = vmatprep.subr.mxu0 0.0
  %202 = vmatpush1.msra.mxu0 0.0
  %203 = vmatprep.subr.mxu0 0.0
  %204 = vmatpush1.msra.mxu0 0.0
  %205 = vmatprep.subr.mxu0 0.0
  %206 = vmatpush1.msra.mxu0 0.0
  %207 = vmatprep.subr.mxu0 0.0
  %208 = vmatpush1.msra.mxu0 0.0
  %209 = vmatprep.subr.mxu0 0.0
  %210 = vmatpush1.msra.mxu0 0.0
  %211 = vmatprep.subr.mxu0 0.0
  %212 = vmatpush1.msra.mxu0 0.0
  %213 = vmatprep.subr.mxu0 0.0
  %214 = vmatpush1.msra.mxu0 0.0
  %215 = vmatprep.subr.mxu0 0.0
  %216 = vmatpush1.msra.mxu0 0.0
  %217 = vmatprep.subr.mxu0 0.0
  %218 = vmatpush1.msra.mxu0 0.0
  %219 = vmatprep.subr.mxu0 0.0
  %220 = vmatpush1.msra.mxu0 0.0
  %221 = vmatprep.subr.mxu0 0.0
  %222 = vmatpush1.msra.mxu0 0.0
  %223 = vmatprep.subr.mxu0 0.0
  %224 = vmatpush1.msra.mxu0 0.0
  %225 = vmatprep.subr.mxu0 0.0
  %226 = vmatpush1.msra.mxu0 0.0
  %227 = vmatprep.subr.mxu0 0.0
  %228 = vmatpush1.msra.mxu0 0.0
  %229 = vmatprep.subr.mxu0 0.0
  %230 = vmatpush1.msra.mxu0 0.0
  %231 = vmatprep.subr.mxu0 0.0
  %232 = vmatpush1.msra.mxu0 0.0
  %233 = vmatprep.subr.mxu0 0.0
  %234 = vmatpush1.msra.mxu0 0.0
  %235 = vmatprep.subr.mxu0 0.0
  %236 = vmatpush1.msra.mxu0 0.0
  %237 = vmatprep.subr.mxu0 0.0
  %238 = vmatpush1.msra.mxu0 0.0
  %239 = vmatprep.subr.mxu0 0.0
  %240 = vmatpush1.msra.mxu0 0.0
  %241 = vmatprep.subr.mxu0 0.0
  %242 = vmatpush1.msra.mxu0 0.0
  %243 = vmatprep.subr.mxu0 0.0
  %244 = vmatpush1.msra.mxu0 0.0
  %245 = vmatprep.mubr.f32.mxu0 0.0
  %246 = vmatmul.mubr.f32.gmra.mrb[0].mxu0 %v82
  %v247 = vpop.f32.mrb[0].mxu0
  %v248 = vadd.f32 0.0, %v247
  %v249 = vpop.f32.mrb[0].mxu0
  %250 = vmatprep.mubr.f32.mxu0 0.0
  %251 = vmatmul.mubr.f32.gmra.mrb[0].mxu0 %v85
  %v252 = vpop.f32.mrb[0].mxu0
  %v253 = vadd.f32 0.0, %v252
  %v254 = vpop.f32.mrb[0].mxu0
  %255 = vmatprep.mubr.f32.mxu0 0.0
  %256 = vmatmul.mubr.f32.gmra.mrb[0].mxu0 %v88
  %v257 = vpop.f32.mrb[0].mxu0
  %v258 = vadd.f32 0.0, %v257
  %v259 = vpop.f32.mrb[0].mxu0
  %260 = vmatprep.mubr.f32.mxu0 0.0
  %261 = vmatmul.mubr.f32.gmra.mrb[0].mxu0 %v91
  %v262 = vpop.f32.mrb[0].mxu0
  %v263 = vadd.f32 0.0, %v262
  %v264 = vpop.f32.mrb[0].mxu0
  %265 = vmatprep.mubr.f32.mxu0 0.0
  %266 = vmatmul.mubr.f32.gmra.mrb[0].mxu0 %v94
  %v267 = vpop.f32.mrb[0].mxu0
  %v268 = vadd.f32 0.0, %v267
  %v269 = vpop.f32.mrb[0].mxu0
  %270 = vmatprep.mubr.f32.mxu0 0.0
  %271 = vmatmul.mubr.f32.gmra.mrb[0].mxu0 %v97
  %v272 = vpop.f32.mrb[0].mxu0
  %v273 = vadd.f32 0.0, %v272
  %v274 = vpop.f32.mrb[0].mxu0
  %275 = vmatprep.mubr.f32.mxu0 0.0
  %276 = vmatmul.mubr.f32.gmra.mrb[0].mxu0 %v100
  %v277 = vpop.f32.mrb[0].mxu0
  %v278 = vadd.f32 0.0, %v277
  %v279 = vpop.f32.mrb[0].mxu0
  %280 = vmatprep.mubr.f32.mxu0 0.0
  %281 = vmatmul.mubr.f32.gmra.mrb[0].mxu0 %v103
  %v282 = vpop.f32.mrb[0].mxu0
  %v283 = vadd.f32 0.0, %v282
  %v284 = vpop.f32.mrb[0].mxu0
  %285 = vmatprep.mubr.f32.mxu0 0.0
  %286 = vmatmul.mubr.f32.gmra.mrb[0].mxu0 %v106
  %v287 = vpop.f32.mrb[0].mxu0
  %v288 = vadd.f32 0.0, %v287
  %v289 = vpop.f32.mrb[0].mxu0
  %290 = vmatprep.mubr.f32.mxu0 0.0
  %291 = vmatmul.mubr.f32.gmra.mrb[0].mxu0 %v109
  %v292 = vpop.f32.mrb[0].mxu0
  %v293 = vadd.f32 0.0, %v292
  %v294 = vpop.f32.mrb[0].mxu0
  %295 = vmatprep.mubr.f32.mxu0 0.0
  %296 = vmatmul.mubr.f32.gmra.mrb[0].mxu0 %v112
  %v297 = vpop.f32.mrb[0].mxu0
  %v298 = vadd.f32 0.0, %v297
  %v299 = vpop.f32.mrb[0].mxu0
  %300 = vmatprep.mubr.f32.mxu0 0.0
  %301 = vmatmul.mubr.f32.gmra.mrb[0].mxu0 %v115
  %v302 = vpop.f32.mrb[0].mxu0
  %v303 = vadd.f32 0.0, %v302
  %v304 = vpop.f32.mrb[0].mxu0
  %305 = vmatprep.mubr.f32.mxu0 0.0
  %306 = vmatmul.mubr.f32.gmra.mrb[0].mxu0 %v118
  %v307 = vpop.f32.mrb[0].mxu0
  %v308 = vadd.f32 0.0, %v307
  %v309 = vpop.f32.mrb[0].mxu0
  %310 = vmatprep.mubr.f32.mxu0 0.0
  %311 = vmatmul.mubr.f32.gmra.mrb[0].mxu0 %v121
  %v312 = vpop.f32.mrb[0].mxu0
  %v313 = vadd.f32 0.0, %v312
  %v314 = vpop.f32.mrb[0].mxu0
  %315 = vmatprep.mubr.f32.mxu0 0.0
  %316 = vmatmul.mubr.f32.gmra.mrb[0].mxu0 %v124
  %v317 = vpop.f32.mrb[0].mxu0
  %v318 = vadd.f32 0.0, %v317
  %v319 = vpop.f32.mrb[0].mxu0
  %320 = vmatprep.mubr.f32.mxu0 0.0
  %321 = vmatmul.mubr.f32.gmra.mrb[0].mxu0 %v127
  %v322 = vpop.f32.mrb[0].mxu0
  %v323 = vadd.f32 0.0, %v322
  %v324 = vpop.f32.mrb[0].mxu0
  %325 = vmatprep.mubr.f32.mxu0 0.0
  %326 = vmatmul.mubr.f32.gmra.mrb[0].mxu0 %v130
  %v327 = vpop.f32.mrb[0].mxu0
  %v328 = vadd.f32 0.0, %v327
  %v329 = vpop.f32.mrb[0].mxu0
  %330 = vmatprep.mubr.f32.mxu0 0.0
  %331 = vmatmul.mubr.f32.gmra.mrb[0].mxu0 %v133
  %v332 = vpop.f32.mrb[0].mxu0
  %v333 = vadd.f32 0.0, %v332
  %v334 = vpop.f32.mrb[0].mxu0
  %335 = vmatprep.mubr.f32.mxu0 0.0
  %336 = vmatmul.mubr.f32.gmra.mrb[0].mxu0 %v136
  %v337 = vpop.f32.mrb[0].mxu0
  %v338 = vadd.f32 0.0, %v337
  %v339 = vpop.f32.mrb[0].mxu0
  %340 = vmatprep.mubr.f32.mxu0 0.0
  %341 = vmatmul.mubr.f32.gmra.mrb[0].mxu0 %v139
  %v342 = vpop.f32.mrb[0].mxu0
  %v343 = vadd.f32 0.0, %v342
  %v344 = vpop.f32.mrb[0].mxu0
  %345 = vmatprep.mubr.f32.mxu0 0.0
  %346 = vmatmul.mubr.f32.gmra.mrb[0].mxu0 %v142
  %v347 = vpop.f32.mrb[0].mxu0
  %v348 = vadd.f32 0.0, %v347
  %v349 = vpop.f32.mrb[0].mxu0
  %350 = vmatprep.mubr.f32.mxu0 0.0
  %351 = vmatmul.mubr.f32.gmra.mrb[0].mxu0 %v145
  %v352 = vpop.f32.mrb[0].mxu0
  %v353 = vadd.f32 0.0, %v352
  %v354 = vpop.f32.mrb[0].mxu0
  %355 = vmatprep.mubr.f32.mxu0 0.0
  %356 = vmatmul.mubr.f32.gmra.mrb[0].mxu0 %v148
  %v357 = vpop.f32.mrb[0].mxu0
  %v358 = vadd.f32 0.0, %v357
  %v359 = vpop.f32.mrb[0].mxu0
  %360 = vmatprep.mubr.f32.mxu0 0.0
  %361 = vmatmul.mubr.f32.gmra.mrb[0].mxu0 %v151
  %v362 = vpop.f32.mrb[0].mxu0
  %v363 = vadd.f32 0.0, %v362
  %v364 = vpop.f32.mrb[0].mxu0
  %365 = vmatprep.mubr.f32.mxu0 0.0
  %366 = vmatmul.mubr.f32.gmra.mrb[0].mxu0 %v154
  %v367 = vpop.f32.mrb[0].mxu0
  %v368 = vadd.f32 0.0, %v367
  %v369 = vpop.f32.mrb[0].mxu0
  %370 = vmatprep.mubr.f32.mxu0 0.0
  %371 = vmatmul.mubr.f32.gmra.mrb[0].mxu0 %v157
  %v372 = vpop.f32.mrb[0].mxu0
  %v373 = vadd.f32 0.0, %v372
  %v374 = vpop.f32.mrb[0].mxu0
  %375 = vmatprep.mubr.f32.mxu0 0.0
  %376 = vmatmul.mubr.f32.gmra.mrb[0].mxu0 %v160
  %v377 = vpop.f32.mrb[0].mxu0
  %v378 = vadd.f32 0.0, %v377
  %v379 = vpop.f32.mrb[0].mxu0
  %380 = vmatprep.mubr.f32.mxu0 0.0
  %381 = vmatmul.mubr.f32.gmra.mrb[0].mxu0 %v163
  %v382 = vpop.f32.mrb[0].mxu0
  %v383 = vadd.f32 0.0, %v382
  %v384 = vpop.f32.mrb[0].mxu0
  %385 = vmatprep.mubr.f32.mxu0 0.0
  %386 = vmatmul.mubr.f32.gmra.mrb[0].mxu0 %v166
  %v387 = vpop.f32.mrb[0].mxu0
  %v388 = vadd.f32 0.0, %v387
  %v389 = vpop.f32.mrb[0].mxu0
  %390 = vmatprep.mubr.f32.mxu0 0.0
  %391 = vmatmul.mubr.f32.gmra.mrb[0].mxu0 %v169
  %v392 = vpop.f32.mrb[0].mxu0
  %v393 = vadd.f32 0.0, %v392
  %v394 = vpop.f32.mrb[0].mxu0
  %395 = vmatprep.mubr.f32.mxu0 0.0
  %396 = vmatmul.mubr.f32.gmra.mrb[0].mxu0 %v172
  %v397 = vpop.f32.mrb[0].mxu0
  %v398 = vadd.f32 0.0, %v397
  %v399 = vpop.f32.mrb[0].mxu0
  %400 = vmatprep.mubr.f32.mxu0 0.0
  %401 = vmatmul.mubr.f32.gmra.mrb[0].mxu0 %v175
  %v402 = vpop.f32.mrb[0].mxu0
  %v403 = vadd.f32 0.0, %v402
  %v404 = vpop.f32.mrb[0].mxu0
  %405 = vdwg.mxu0
  %v407 = vsel %vm80, %v14, 0
  %v410 = vsel %vm80, %v15, 0
  %v413 = vsel %vm80, %v16, 0
  %v416 = vsel %vm80, %v17, 0
  %v419 = vsel %vm80, %v18, 0
  %v422 = vsel %vm80, %v19, 0
  %v425 = vsel %vm80, %v20, 0
  %v428 = vsel %vm80, %v21, 0
  %v431 = vsel %vm80, %v22, 0
  %v434 = vsel %vm80, %v23, 0
  %v437 = vsel %vm80, %v24, 0
  %v440 = vsel %vm80, %v25, 0
  %v443 = vsel %vm80, %v26, 0
  %v446 = vsel %vm80, %v27, 0
  %v449 = vsel %vm80, %v28, 0
  %v452 = vsel %vm80, %v29, 0
  %v455 = vsel %vm80, %v30, 0
  %v458 = vsel %vm80, %v31, 0
  %v461 = vsel %vm80, %v32, 0
  %v464 = vsel %vm80, %v33, 0
  %v467 = vsel %vm80, %v34, 0
  %v470 = vsel %vm80, %v35, 0
  %v473 = vsel %vm80, %v36, 0
  %v476 = vsel %vm80, %v37, 0
  %v479 = vsel %vm80, %v38, 0
  %v482 = vsel %vm80, %v39, 0
  %v485 = vsel %vm80, %v40, 0
  %v488 = vsel %vm80, %v41, 0
  %v491 = vsel %vm80, %v42, 0
  %v494 = vsel %vm80, %v43, 0
  %v497 = vsel %vm80, %v44, 0
  %v500 = vsel %vm80, %v45, 0
  %v503 = vsel %vm177, %v46, 0
  %505 = vmatprep.subr.mxu0 0.0
  %506 = vmatpush1.msra.mxu0 %v503
  %507 = vmatprep.subr.mxu0 0.0
  %508 = vmatpush1.msra.mxu0 0.0
  %509 = vmatprep.subr.mxu0 0.0
  %510 = vmatpush1.msra.mxu0 0.0
  %511 = vmatprep.subr.mxu0 0.0
  %512 = vmatpush1.msra.mxu0 0.0
  %513 = vmatprep.subr.mxu0 0.0
  %514 = vmatpush1.msra.mxu0 0.0
  %515 = vmatprep.subr.mxu0 0.0
  %516 = vmatpush1.msra.mxu0 0.0
  %517 = vmatprep.subr.mxu0 0.0
  %518 = vmatpush1.msra.mxu0 0.0
  %519 = vmatprep.subr.mxu0 0.0
  %520 = vmatpush1.msra.mxu0 0.0
  %521 = vmatprep.subr.mxu0 0.0
  %522 = vmatpush1.msra.mxu0 0.0
  %523 = vmatprep.subr.mxu0 0.0
  %524 = vmatpush1.msra.mxu0 0.0
  %525 = vmatprep.subr.mxu0 0.0
  %526 = vmatpush1.msra.mxu0 0.0
  %527 = vmatprep.subr.mxu0 0.0
  %528 = vmatpush1.msra.mxu0 0.0
  %529 = vmatprep.subr.mxu0 0.0
  %530 = vmatpush1.msra.mxu0 0.0
  %531 = vmatprep.subr.mxu0 0.0
  %532 = vmatpush1.msra.mxu0 0.0
  %533 = vmatprep.subr.mxu0 0.0
  %534 = vmatpush1.msra.mxu0 0.0
  %535 = vmatprep.subr.mxu0 0.0
  %536 = vmatpush1.msra.mxu0 0.0
  %537 = vmatprep.subr.mxu0 0.0
  %538 = vmatpush1.msra.mxu0 0.0
  %539 = vmatprep.subr.mxu0 0.0
  %540 = vmatpush1.msra.mxu0 0.0
  %541 = vmatprep.subr.mxu0 0.0
  %542 = vmatpush1.msra.mxu0 0.0
  %543 = vmatprep.subr.mxu0 0.0
  %544 = vmatpush1.msra.mxu0 0.0
  %545 = vmatprep.subr.mxu0 0.0
  %546 = vmatpush1.msra.mxu0 0.0
  %547 = vmatprep.subr.mxu0 0.0
  %548 = vmatpush1.msra.mxu0 0.0
  %549 = vmatprep.subr.mxu0 0.0
  %550 = vmatpush1.msra.mxu0 0.0
  %551 = vmatprep.subr.mxu0 0.0
  %552 = vmatpush1.msra.mxu0 0.0
  %553 = vmatprep.subr.mxu0 0.0
  %554 = vmatpush1.msra.mxu0 0.0
  %555 = vmatprep.subr.mxu0 0.0
  %556 = vmatpush1.msra.mxu0 0.0
  %557 = vmatprep.subr.mxu0 0.0
  %558 = vmatpush1.msra.mxu0 0.0
  %559 = vmatprep.subr.mxu0 0.0
  %560 = vmatpush1.msra.mxu0 0.0
  %561 = vmatprep.subr.mxu0 0.0
  %562 = vmatpush1.msra.mxu0 0.0
  %563 = vmatprep.subr.mxu0 0.0
  %564 = vmatpush1.msra.mxu0 0.0
  %565 = vmatprep.subr.mxu0 0.0
  %566 = vmatpush1.msra.mxu0 0.0
  %567 = vmatprep.subr.mxu0 0.0
  %568 = vmatpush1.msra.mxu0 0.0
  %569 = vmatprep.mubr.f32.mxu0 0.0
  %570 = vmatmul.mubr.f32.gmra.mrb[0].mxu0 %v407
  %v571 = vpop.f32.mrb[0].mxu0
  %v572 = vadd.f32 %v248, %v571
  %v573 = vpop.f32.mrb[0].mxu0
  %574 = vmatprep.mubr.f32.mxu0 0.0
  %575 = vmatmul.mubr.f32.gmra.mrb[0].mxu0 %v410
  %v576 = vpop.f32.mrb[0].mxu0
  %v577 = vadd.f32 %v253, %v576
  %v578 = vpop.f32.mrb[0].mxu0
  %579 = vmatprep.mubr.f32.mxu0 0.0
  %580 = vmatmul.mubr.f32.gmra.mrb[0].mxu0 %v413
  %v581 = vpop.f32.mrb[0].mxu0
  %v582 = vadd.f32 %v258, %v581
  %v583 = vpop.f32.mrb[0].mxu0
  %584 = vmatprep.mubr.f32.mxu0 0.0
  %585 = vmatmul.mubr.f32.gmra.mrb[0].mxu0 %v416
  %v586 = vpop.f32.mrb[0].mxu0
  %v587 = vadd.f32 %v263, %v586
  %v588 = vpop.f32.mrb[0].mxu0
  %589 = vmatprep.mubr.f32.mxu0 0.0
  %590 = vmatmul.mubr.f32.gmra.mrb[0].mxu0 %v419
  %v591 = vpop.f32.mrb[0].mxu0
  %v592 = vadd.f32 %v268, %v591
  %v593 = vpop.f32.mrb[0].mxu0
  %594 = vmatprep.mubr.f32.mxu0 0.0
  %595 = vmatmul.mubr.f32.gmra.mrb[0].mxu0 %v422
  %v596 = vpop.f32.mrb[0].mxu0
  %v597 = vadd.f32 %v273, %v596
  %v598 = vpop.f32.mrb[0].mxu0
  %599 = vmatprep.mubr.f32.mxu0 0.0
  %600 = vmatmul.mubr.f32.gmra.mrb[0].mxu0 %v425
  %v601 = vpop.f32.mrb[0].mxu0
  %v602 = vadd.f32 %v278, %v601
  %v603 = vpop.f32.mrb[0].mxu0
  %604 = vmatprep.mubr.f32.mxu0 0.0
  %605 = vmatmul.mubr.f32.gmra.mrb[0].mxu0 %v428
  %v606 = vpop.f32.mrb[0].mxu0
  %v607 = vadd.f32 %v283, %v606
  %v608 = vpop.f32.mrb[0].mxu0
  %609 = vmatprep.mubr.f32.mxu0 0.0
  %610 = vmatmul.mubr.f32.gmra.mrb[0].mxu0 %v431
  %v611 = vpop.f32.mrb[0].mxu0
  %v612 = vadd.f32 %v288, %v611
  %v613 = vpop.f32.mrb[0].mxu0
  %614 = vmatprep.mubr.f32.mxu0 0.0
  %615 = vmatmul.mubr.f32.gmra.mrb[0].mxu0 %v434
  %v616 = vpop.f32.mrb[0].mxu0
  %v617 = vadd.f32 %v293, %v616
  %v618 = vpop.f32.mrb[0].mxu0
  %619 = vmatprep.mubr.f32.mxu0 0.0
  %620 = vmatmul.mubr.f32.gmra.mrb[0].mxu0 %v437
  %v621 = vpop.f32.mrb[0].mxu0
  %v622 = vadd.f32 %v298, %v621
  %v623 = vpop.f32.mrb[0].mxu0
  %624 = vmatprep.mubr.f32.mxu0 0.0
  %625 = vmatmul.mubr.f32.gmra.mrb[0].mxu0 %v440
  %v626 = vpop.f32.mrb[0].mxu0
  %v627 = vadd.f32 %v303, %v626
  %v628 = vpop.f32.mrb[0].mxu0
  %629 = vmatprep.mubr.f32.mxu0 0.0
  %630 = vmatmul.mubr.f32.gmra.mrb[0].mxu0 %v443
  %v631 = vpop.f32.mrb[0].mxu0
  %v632 = vadd.f32 %v308, %v631
  %v633 = vpop.f32.mrb[0].mxu0
  %634 = vmatprep.mubr.f32.mxu0 0.0
  %635 = vmatmul.mubr.f32.gmra.mrb[0].mxu0 %v446
  %v636 = vpop.f32.mrb[0].mxu0
  %v637 = vadd.f32 %v313, %v636
  %v638 = vpop.f32.mrb[0].mxu0
  %639 = vmatprep.mubr.f32.mxu0 0.0
  %640 = vmatmul.mubr.f32.gmra.mrb[0].mxu0 %v449
  %v641 = vpop.f32.mrb[0].mxu0
  %v642 = vadd.f32 %v318, %v641
  %v643 = vpop.f32.mrb[0].mxu0
  %644 = vmatprep.mubr.f32.mxu0 0.0
  %645 = vmatmul.mubr.f32.gmra.mrb[0].mxu0 %v452
  %v646 = vpop.f32.mrb[0].mxu0
  %v647 = vadd.f32 %v323, %v646
  %v648 = vpop.f32.mrb[0].mxu0
  %649 = vmatprep.mubr.f32.mxu0 0.0
  %650 = vmatmul.mubr.f32.gmra.mrb[0].mxu0 %v455
  %v651 = vpop.f32.mrb[0].mxu0
  %v652 = vadd.f32 %v328, %v651
  %v653 = vpop.f32.mrb[0].mxu0
  %654 = vmatprep.mubr.f32.mxu0 0.0
  %655 = vmatmul.mubr.f32.gmra.mrb[0].mxu0 %v458
  %v656 = vpop.f32.mrb[0].mxu0
  %v657 = vadd.f32 %v333, %v656
  %v658 = vpop.f32.mrb[0].mxu0
  %659 = vmatprep.mubr.f32.mxu0 0.0
  %660 = vmatmul.mubr.f32.gmra.mrb[0].mxu0 %v461
  %v661 = vpop.f32.mrb[0].mxu0
  %v662 = vadd.f32 %v338, %v661
  %v663 = vpop.f32.mrb[0].mxu0
  %664 = vmatprep.mubr.f32.mxu0 0.0
  %665 = vmatmul.mubr.f32.gmra.mrb[0].mxu0 %v464
  %v666 = vpop.f32.mrb[0].mxu0
  %v667 = vadd.f32 %v343, %v666
  %v668 = vpop.f32.mrb[0].mxu0
  %669 = vmatprep.mubr.f32.mxu0 0.0
  %670 = vmatmul.mubr.f32.gmra.mrb[0].mxu0 %v467
  %v671 = vpop.f32.mrb[0].mxu0
  %v672 = vadd.f32 %v348, %v671
  %v673 = vpop.f32.mrb[0].mxu0
  %674 = vmatprep.mubr.f32.mxu0 0.0
  %675 = vmatmul.mubr.f32.gmra.mrb[0].mxu0 %v470
  %v676 = vpop.f32.mrb[0].mxu0
  %v677 = vadd.f32 %v353, %v676
  %v678 = vpop.f32.mrb[0].mxu0
  %679 = vmatprep.mubr.f32.mxu0 0.0
  %680 = vmatmul.mubr.f32.gmra.mrb[0].mxu0 %v473
  %v681 = vpop.f32.mrb[0].mxu0
  %v682 = vadd.f32 %v358, %v681
  %v683 = vpop.f32.mrb[0].mxu0
  %684 = vmatprep.mubr.f32.mxu0 0.0
  %685 = vmatmul.mubr.f32.gmra.mrb[0].mxu0 %v476
  %v686 = vpop.f32.mrb[0].mxu0
  %v687 = vadd.f32 %v363, %v686
  %v688 = vpop.f32.mrb[0].mxu0
  %689 = vmatprep.mubr.f32.mxu0 0.0
  %690 = vmatmul.mubr.f32.gmra.mrb[0].mxu0 %v479
  %v691 = vpop.f32.mrb[0].mxu0
  %v692 = vadd.f32 %v368, %v691
  %v693 = vpop.f32.mrb[0].mxu0
  %694 = vmatprep.mubr.f32.mxu0 0.0
  %695 = vmatmul.mubr.f32.gmra.mrb[0].mxu0 %v482
  %v696 = vpop.f32.mrb[0].mxu0
  %v697 = vadd.f32 %v373, %v696
  %v698 = vpop.f32.mrb[0].mxu0
  %699 = vmatprep.mubr.f32.mxu0 0.0
  %700 = vmatmul.mubr.f32.gmra.mrb[0].mxu0 %v485
  %v701 = vpop.f32.mrb[0].mxu0
  %v702 = vadd.f32 %v378, %v701
  %v703 = vpop.f32.mrb[0].mxu0
  %704 = vmatprep.mubr.f32.mxu0 0.0
  %705 = vmatmul.mubr.f32.gmra.mrb[0].mxu0 %v488
  %v706 = vpop.f32.mrb[0].mxu0
  %v707 = vadd.f32 %v383, %v706
  %v708 = vpop.f32.mrb[0].mxu0
  %709 = vmatprep.mubr.f32.mxu0 0.0
  %710 = vmatmul.mubr.f32.gmra.mrb[0].mxu0 %v491
  %v711 = vpop.f32.mrb[0].mxu0
  %v712 = vadd.f32 %v388, %v711
  %v713 = vpop.f32.mrb[0].mxu0
  %714 = vmatprep.mubr.f32.mxu0 0.0
  %715 = vmatmul.mubr.f32.gmra.mrb[0].mxu0 %v494
  %v716 = vpop.f32.mrb[0].mxu0
  %v717 = vadd.f32 %v393, %v716
  %v718 = vpop.f32.mrb[0].mxu0
  %719 = vmatprep.mubr.f32.mxu0 0.0
  %720 = vmatmul.mubr.f32.gmra.mrb[0].mxu0 %v497
  %v721 = vpop.f32.mrb[0].mxu0
  %v722 = vadd.f32 %v398, %v721
  %v723 = vpop.f32.mrb[0].mxu0
  %724 = vmatprep.mubr.f32.mxu0 0.0
  %725 = vmatmul.mubr.f32.gmra.mrb[0].mxu0 %v500
  %v726 = vpop.f32.mrb[0].mxu0
  %v727 = vadd.f32 %v403, %v726
  %v728 = vpop.f32.mrb[0].mxu0
  %729 = vdwg.mxu0
  %v730 = vld [vmem:[%s0 + $0x2] sm:$0xff]
  %v731 = vld [vmem:[%s0 + $0xa] sm:$0xff]
  %v732 = vld [vmem:[%s0 + $0x1a] sm:$0xff]
  %v733 = vld [vmem:[%s0 + $0x22] sm:$0xff]
  %v734 = vld [vmem:[%s0 + $0x32] sm:$0xff]
  %v735 = vld [vmem:[%s0 + $0x3a] sm:$0xff]
  %v736 = vld [vmem:[%s0 + $0x4a] sm:$0xff]
  %v737 = vld [vmem:[%s0 + $0x52] sm:$0xff]
  %v738 = vld [vmem:[%s0 + $0x62] sm:$0xff]
  %v739 = vld [vmem:[%s0 + $0x6a] sm:$0xff]
  %v740 = vld [vmem:[%s0 + $0x7a] sm:$0xff]
  %v741 = vld [vmem:[%s0 + $0x82] sm:$0xff]
  %v742 = vld [vmem:[%s0 + $0x92] sm:$0xff]
  %v743 = vld [vmem:[%s0 + $0x9a] sm:$0xff]
  %v744 = vld [vmem:[%s0 + $0xaa] sm:$0xff]
  %v745 = vld [vmem:[%s0 + $0xb2] sm:$0xff]
  %v746 = vld [vmem:[%s0 + $0xc2] sm:$0xff]
  %v747 = vld [vmem:[%s0 + $0xca] sm:$0xff]
  %v748 = vld [vmem:[%s0 + $0xda] sm:$0xff]
  %v749 = vld [vmem:[%s0 + $0xe2] sm:$0xff]
  %v750 = vld [vmem:[%s0 + $0xf2] sm:$0xff]
  %v751 = vld [vmem:[%s0 + $0xfa] sm:$0xff]
  %v752 = vld [vmem:[%s0 + $0x10a] sm:$0xff]
  %v753 = vld [vmem:[%s0 + $0x112] sm:$0xff]
  %v754 = vld [vmem:[%s0 + $0x122] sm:$0xff]
  %v755 = vld [vmem:[%s0 + $0x12a] sm:$0xff]
  %v756 = vld [vmem:[%s0 + $0x13a] sm:$0xff]
  %v757 = vld [vmem:[%s0 + $0x142] sm:$0xff]
  %v758 = vld [vmem:[%s0 + $0x152] sm:$0xff]
  %v759 = vld [vmem:[%s0 + $0x15a] sm:$0xff]
  %v760 = vld [vmem:[%s0 + $0x16a] sm:$0xff]
  %v761 = vld [vmem:[%s0 + $0x172] sm:$0xff]
  %v762 = vld [vmem:[%s1 + $0x8] sm:$0xf]
  %v764 = vsel %vm80, %v730, 0
  %v767 = vsel %vm80, %v731, 0
  %v770 = vsel %vm80, %v732, 0
  %v773 = vsel %vm80, %v733, 0
  %v776 = vsel %vm80, %v734, 0
  %v779 = vsel %vm80, %v735, 0
  %v782 = vsel %vm80, %v736, 0
  %v785 = vsel %vm80, %v737, 0
  %v788 = vsel %vm80, %v738, 0
  %v791 = vsel %vm80, %v739, 0
  %v794 = vsel %vm80, %v740, 0
  %v797 = vsel %vm80, %v741, 0
  %v800 = vsel %vm80, %v742, 0
  %v803 = vsel %vm80, %v743, 0
  %v806 = vsel %vm80, %v744, 0
  %v809 = vsel %vm80, %v745, 0
  %v812 = vsel %vm80, %v746, 0
  %v815 = vsel %vm80, %v747, 0
  %v818 = vsel %vm80, %v748, 0
  %v821 = vsel %vm80, %v749, 0
  %v824 = vsel %vm80, %v750, 0
  %v827 = vsel %vm80, %v751, 0
  %v830 = vsel %vm80, %v752, 0
  %v833 = vsel %vm80, %v753, 0
  %v836 = vsel %vm80, %v754, 0
  %v839 = vsel %vm80, %v755, 0
  %v842 = vsel %vm80, %v756, 0
  %v845 = vsel %vm80, %v757, 0
  %v848 = vsel %vm80, %v758, 0
  %v851 = vsel %vm80, %v759, 0
  %v854 = vsel %vm80, %v760, 0
  %v857 = vsel %vm80, %v761, 0
  %v860 = vsel %vm177, %v762, 0
  %862 = vmatprep.subr.mxu0 0.0
  %863 = vmatpush1.msra.mxu0 %v860
  %864 = vmatprep.subr.mxu0 0.0
  %865 = vmatpush1.msra.mxu0 0.0
  %866 = vmatprep.subr.mxu0 0.0
  %867 = vmatpush1.msra.mxu0 0.0
  %868 = vmatprep.subr.mxu0 0.0
  %869 = vmatpush1.msra.mxu0 0.0
  %870 = vmatprep.subr.mxu0 0.0
  %871 = vmatpush1.msra.mxu0 0.0
  %872 = vmatprep.subr.mxu0 0.0
  %873 = vmatpush1.msra.mxu0 0.0
  %874 = vmatprep.subr.mxu0 0.0
  %875 = vmatpush1.msra.mxu0 0.0
  %876 = vmatprep.subr.mxu0 0.0
  %877 = vmatpush1.msra.mxu0 0.0
  %878 = vmatprep.subr.mxu0 0.0
  %879 = vmatpush1.msra.mxu0 0.0
  %880 = vmatprep.subr.mxu0 0.0
  %881 = vmatpush1.msra.mxu0 0.0
  %882 = vmatprep.subr.mxu0 0.0
  %883 = vmatpush1.msra.mxu0 0.0
  %884 = vmatprep.subr.mxu0 0.0
  %885 = vmatpush1.msra.mxu0 0.0
  %886 = vmatprep.subr.mxu0 0.0
  %887 = vmatpush1.msra.mxu0 0.0
  %888 = vmatprep.subr.mxu0 0.0
  %889 = vmatpush1.msra.mxu0 0.0
  %890 = vmatprep.subr.mxu0 0.0
  %891 = vmatpush1.msra.mxu0 0.0
  %892 = vmatprep.subr.mxu0 0.0
  %893 = vmatpush1.msra.mxu0 0.0
  %894 = vmatprep.subr.mxu0 0.0
  %895 = vmatpush1.msra.mxu0 0.0
  %896 = vmatprep.subr.mxu0 0.0
  %897 = vmatpush1.msra.mxu0 0.0
  %898 = vmatprep.subr.mxu0 0.0
  %899 = vmatpush1.msra.mxu0 0.0
  %900 = vmatprep.subr.mxu0 0.0
  %901 = vmatpush1.msra.mxu0 0.0
  %902 = vmatprep.subr.mxu0 0.0
  %903 = vmatpush1.msra.mxu0 0.0
  %904 = vmatprep.subr.mxu0 0.0
  %905 = vmatpush1.msra.mxu0 0.0
  %906 = vmatprep.subr.mxu0 0.0
  %907 = vmatpush1.msra.mxu0 0.0
  %908 = vmatprep.subr.mxu0 0.0
  %909 = vmatpush1.msra.mxu0 0.0
  %910 = vmatprep.subr.mxu0 0.0
  %911 = vmatpush1.msra.mxu0 0.0
  %912 = vmatprep.subr.mxu0 0.0
  %913 = vmatpush1.msra.mxu0 0.0
  %914 = vmatprep.subr.mxu0 0.0
  %915 = vmatpush1.msra.mxu0 0.0
  %916 = vmatprep.subr.mxu0 0.0
  %917 = vmatpush1.msra.mxu0 0.0
  %918 = vmatprep.subr.mxu0 0.0
  %919 = vmatpush1.msra.mxu0 0.0
  %920 = vmatprep.subr.mxu0 0.0
  %921 = vmatpush1.msra.mxu0 0.0
  %922 = vmatprep.subr.mxu0 0.0
  %923 = vmatpush1.msra.mxu0 0.0
  %924 = vmatprep.subr.mxu0 0.0
  %925 = vmatpush1.msra.mxu0 0.0
  %926 = vmatprep.mubr.f32.mxu0 0.0
  %927 = vmatmul.mubr.f32.gmra.mrb[0].mxu0 %v764
  %v928 = vpop.f32.mrb[0].mxu0
  %v929 = vadd.f32 0.0, %v928
  %v930 = vpop.f32.mrb[0].mxu0
  %931 = vmatprep.mubr.f32.mxu0 0.0
  %932 = vmatmul.mubr.f32.gmra.mrb[0].mxu0 %v767
  %v933 = vpop.f32.mrb[0].mxu0
  %v934 = vadd.f32 0.0, %v933
  %v935 = vpop.f32.mrb[0].mxu0
  %936 = vmatprep.mubr.f32.mxu0 0.0
  %937 = vmatmul.mubr.f32.gmra.mrb[0].mxu0 %v770
  %v938 = vpop.f32.mrb[0].mxu0
  %v939 = vadd.f32 0.0, %v938
  %v940 = vpop.f32.mrb[0].mxu0
  %941 = vmatprep.mubr.f32.mxu0 0.0
  %942 = vmatmul.mubr.f32.gmra.mrb[0].mxu0 %v773
  %v943 = vpop.f32.mrb[0].mxu0
  %v944 = vadd.f32 0.0, %v943
  %v945 = vpop.f32.mrb[0].mxu0
  %946 = vmatprep.mubr.f32.mxu0 0.0
  %947 = vmatmul.mubr.f32.gmra.mrb[0].mxu0 %v776
  %v948 = vpop.f32.mrb[0].mxu0
  %v949 = vadd.f32 0.0, %v948
  %v950 = vpop.f32.mrb[0].mxu0
  %951 = vmatprep.mubr.f32.mxu0 0.0
  %952 = vmatmul.mubr.f32.gmra.mrb[0].mxu0 %v779
  %v953 = vpop.f32.mrb[0].mxu0
  %v954 = vadd.f32 0.0, %v953
  %v955 = vpop.f32.mrb[0].mxu0
  %956 = vmatprep.mubr.f32.mxu0 0.0
  %957 = vmatmul.mubr.f32.gmra.mrb[0].mxu0 %v782
  %v958 = vpop.f32.mrb[0].mxu0
  %v959 = vadd.f32 0.0, %v958
  %v960 = vpop.f32.mrb[0].mxu0
  %961 = vmatprep.mubr.f32.mxu0 0.0
  %962 = vmatmul.mubr.f32.gmra.mrb[0].mxu0 %v785
  %v963 = vpop.f32.mrb[0].mxu0
  %v964 = vadd.f32 0.0, %v963
  %v965 = vpop.f32.mrb[0].mxu0
  %966 = vmatprep.mubr.f32.mxu0 0.0
  %967 = vmatmul.mubr.f32.gmra.mrb[0].mxu0 %v788
  %v968 = vpop.f32.mrb[0].mxu0
  %v969 = vadd.f32 0.0, %v968
  %v970 = vpop.f32.mrb[0].mxu0
  %971 = vmatprep.mubr.f32.mxu0 0.0
  %972 = vmatmul.mubr.f32.gmra.mrb[0].mxu0 %v791
  %v973 = vpop.f32.mrb[0].mxu0
  %v974 = vadd.f32 0.0, %v973
  %v975 = vpop.f32.mrb[0].mxu0
  %976 = vmatprep.mubr.f32.mxu0 0.0
  %977 = vmatmul.mubr.f32.gmra.mrb[0].mxu0 %v794
  %v978 = vpop.f32.mrb[0].mxu0
  %v979 = vadd.f32 0.0, %v978
  %v980 = vpop.f32.mrb[0].mxu0
  %981 = vmatprep.mubr.f32.mxu0 0.0
  %982 = vmatmul.mubr.f32.gmra.mrb[0].mxu0 %v797
  %v983 = vpop.f32.mrb[0].mxu0
  %v984 = vadd.f32 0.0, %v983
  %v985 = vpop.f32.mrb[0].mxu0
  %986 = vmatprep.mubr.f32.mxu0 0.0
  %987 = vmatmul.mubr.f32.gmra.mrb[0].mxu0 %v800
  %v988 = vpop.f32.mrb[0].mxu0
  %v989 = vadd.f32 0.0, %v988
  %v990 = vpop.f32.mrb[0].mxu0
  %991 = vmatprep.mubr.f32.mxu0 0.0
  %992 = vmatmul.mubr.f32.gmra.mrb[0].mxu0 %v803
  %v993 = vpop.f32.mrb[0].mxu0
  %v994 = vadd.f32 0.0, %v993
  %v995 = vpop.f32.mrb[0].mxu0
  %996 = vmatprep.mubr.f32.mxu0 0.0
  %997 = vmatmul.mubr.f32.gmra.mrb[0].mxu0 %v806
  %v998 = vpop.f32.mrb[0].mxu0
  %v999 = vadd.f32 0.0, %v998
  %v1000 = vpop.f32.mrb[0].mxu0
  %1001 = vmatprep.mubr.f32.mxu0 0.0
  %1002 = vmatmul.mubr.f32.gmra.mrb[0].mxu0 %v809
  %v1003 = vpop.f32.mrb[0].mxu0
  %v1004 = vadd.f32 0.0, %v1003
  %v1005 = vpop.f32.mrb[0].mxu0
  %1006 = vmatprep.mubr.f32.mxu0 0.0
  %1007 = vmatmul.mubr.f32.gmra.mrb[0].mxu0 %v812
  %v1008 = vpop.f32.mrb[0].mxu0
  %v1009 = vadd.f32 0.0, %v1008
  %v1010 = vpop.f32.mrb[0].mxu0
  %1011 = vmatprep.mubr.f32.mxu0 0.0
  %1012 = vmatmul.mubr.f32.gmra.mrb[0].mxu0 %v815
  %v1013 = vpop.f32.mrb[0].mxu0
  %v1014 = vadd.f32 0.0, %v1013
  %v1015 = vpop.f32.mrb[0].mxu0
  %1016 = vmatprep.mubr.f32.mxu0 0.0
  %1017 = vmatmul.mubr.f32.gmra.mrb[0].mxu0 %v818
  %v1018 = vpop.f32.mrb[0].mxu0
  %v1019 = vadd.f32 0.0, %v1018
  %v1020 = vpop.f32.mrb[0].mxu0
  %1021 = vmatprep.mubr.f32.mxu0 0.0
  %1022 = vmatmul.mubr.f32.gmra.mrb[0].mxu0 %v821
  %v1023 = vpop.f32.mrb[0].mxu0
  %v1024 = vadd.f32 0.0, %v1023
  %v1025 = vpop.f32.mrb[0].mxu0
  %1026 = vmatprep.mubr.f32.mxu0 0.0
  %1027 = vmatmul.mubr.f32.gmra.mrb[0].mxu0 %v824
  %v1028 = vpop.f32.mrb[0].mxu0
  %v1029 = vadd.f32 0.0, %v1028
  %v1030 = vpop.f32.mrb[0].mxu0
  %1031 = vmatprep.mubr.f32.mxu0 0.0
  %1032 = vmatmul.mubr.f32.gmra.mrb[0].mxu0 %v827
  %v1033 = vpop.f32.mrb[0].mxu0
  %v1034 = vadd.f32 0.0, %v1033
  %v1035 = vpop.f32.mrb[0].mxu0
  %1036 = vmatprep.mubr.f32.mxu0 0.0
  %1037 = vmatmul.mubr.f32.gmra.mrb[0].mxu0 %v830
  %v1038 = vpop.f32.mrb[0].mxu0
  %v1039 = vadd.f32 0.0, %v1038
  %v1040 = vpop.f32.mrb[0].mxu0
  %1041 = vmatprep.mubr.f32.mxu0 0.0
  %1042 = vmatmul.mubr.f32.gmra.mrb[0].mxu0 %v833
  %v1043 = vpop.f32.mrb[0].mxu0
  %v1044 = vadd.f32 0.0, %v1043
  %v1045 = vpop.f32.mrb[0].mxu0
  %1046 = vmatprep.mubr.f32.mxu0 0.0
  %1047 = vmatmul.mubr.f32.gmra.mrb[0].mxu0 %v836
  %v1048 = vpop.f32.mrb[0].mxu0
  %v1049 = vadd.f32 0.0, %v1048
  %v1050 = vpop.f32.mrb[0].mxu0
  %1051 = vmatprep.mubr.f32.mxu0 0.0
  %1052 = vmatmul.mubr.f32.gmra.mrb[0].mxu0 %v839
  %v1053 = vpop.f32.mrb[0].mxu0
  %v1054 = vadd.f32 0.0, %v1053
  %v1055 = vpop.f32.mrb[0].mxu0
  %1056 = vmatprep.mubr.f32.mxu0 0.0
  %1057 = vmatmul.mubr.f32.gmra.mrb[0].mxu0 %v842
  %v1058 = vpop.f32.mrb[0].mxu0
  %v1059 = vadd.f32 0.0, %v1058
  %v1060 = vpop.f32.mrb[0].mxu0
  %1061 = vmatprep.mubr.f32.mxu0 0.0
  %1062 = vmatmul.mubr.f32.gmra.mrb[0].mxu0 %v845
  %v1063 = vpop.f32.mrb[0].mxu0
  %v1064 = vadd.f32 0.0, %v1063
  %v1065 = vpop.f32.mrb[0].mxu0
  %1066 = vmatprep.mubr.f32.mxu0 0.0
  %1067 = vmatmul.mubr.f32.gmra.mrb[0].mxu0 %v848
  %v1068 = vpop.f32.mrb[0].mxu0
  %v1069 = vadd.f32 0.0, %v1068
  %v1070 = vpop.f32.mrb[0].mxu0
  %1071 = vmatprep.mubr.f32.mxu0 0.0
  %1072 = vmatmul.mubr.f32.gmra.mrb[0].mxu0 %v851
  %v1073 = vpop.f32.mrb[0].mxu0
  %v1074 = vadd.f32 0.0, %v1073
  %v1075 = vpop.f32.mrb[0].mxu0
  %1076 = vmatprep.mubr.f32.mxu0 0.0
  %1077 = vmatmul.mubr.f32.gmra.mrb[0].mxu0 %v854
  %v1078 = vpop.f32.mrb[0].mxu0
  %v1079 = vadd.f32 0.0, %v1078
  %v1080 = vpop.f32.mrb[0].mxu0
  %1081 = vmatprep.mubr.f32.mxu0 0.0
  %1082 = vmatmul.mubr.f32.gmra.mrb[0].mxu0 %v857
  %v1083 = vpop.f32.mrb[0].mxu0
  %v1084 = vadd.f32 0.0, %v1083
  %v1085 = vpop.f32.mrb[0].mxu0
  %1086 = vdwg.mxu0
  %v1087 = vadd.f32 %v572, %v929
  %v1088 = vadd.f32 %v577, %v934
  %v1089 = vadd.f32 %v582, %v939
  %v1090 = vadd.f32 %v587, %v944
  %v1091 = vadd.f32 %v592, %v949
  %v1092 = vadd.f32 %v597, %v954
  %v1093 = vadd.f32 %v602, %v959
  %v1094 = vadd.f32 %v607, %v964
  %v1095 = vadd.f32 %v612, %v969
  %v1096 = vadd.f32 %v617, %v974
  %v1097 = vadd.f32 %v622, %v979
  %v1098 = vadd.f32 %v627, %v984
  %v1099 = vadd.f32 %v632, %v989
  %v1100 = vadd.f32 %v637, %v994
  %v1101 = vadd.f32 %v642, %v999
  %v1102 = vadd.f32 %v647, %v1004
  %v1103 = vadd.f32 %v652, %v1009
  %v1104 = vadd.f32 %v657, %v1014
  %v1105 = vadd.f32 %v662, %v1019
  %v1106 = vadd.f32 %v667, %v1024
  %v1107 = vadd.f32 %v672, %v1029
  %v1108 = vadd.f32 %v677, %v1034
  %v1109 = vadd.f32 %v682, %v1039
  %v1110 = vadd.f32 %v687, %v1044
  %v1111 = vadd.f32 %v692, %v1049
  %v1112 = vadd.f32 %v697, %v1054
  %v1113 = vadd.f32 %v702, %v1059
  %v1114 = vadd.f32 %v707, %v1064
  %v1115 = vadd.f32 %v712, %v1069
  %v1116 = vadd.f32 %v717, %v1074
  %v1117 = vadd.f32 %v722, %v1079
  %v1118 = vadd.f32 %v727, %v1084
  %s1119 = scalar_lea.vmem %s0, 24
  %v1120 = vld [vmem:[%s1119] sm:$0xff]
  %v1121 = vld [vmem:[%s1119 + $0x8] sm:$0xff]
  %v1122 = vld [vmem:[%s1119 + $0x18] sm:$0xff]
  %v1123 = vld [vmem:[%s1119 + $0x20] sm:$0xff]
  %v1124 = vld [vmem:[%s1119 + $0x30] sm:$0xff]
  %v1125 = vld [vmem:[%s1119 + $0x38] sm:$0xff]
  %v1126 = vld [vmem:[%s1119 + $0x48] sm:$0xff]
  %v1127 = vld [vmem:[%s1119 + $0x50] sm:$0xff]
  %v1128 = vld [vmem:[%s1119 + $0x60] sm:$0xff]
  %v1129 = vld [vmem:[%s1119 + $0x68] sm:$0xff]
  %v1130 = vld [vmem:[%s1119 + $0x78] sm:$0xff]
  %v1131 = vld [vmem:[%s1119 + $0x80] sm:$0xff]
  %v1132 = vld [vmem:[%s1119 + $0x90] sm:$0xff]
  %v1133 = vld [vmem:[%s1119 + $0x98] sm:$0xff]
  %v1134 = vld [vmem:[%s1119 + $0xa8] sm:$0xff]
  %v1135 = vld [vmem:[%s1119 + $0xb0] sm:$0xff]
  %v1136 = vld [vmem:[%s1119 + $0xc0] sm:$0xff]
  %v1137 = vld [vmem:[%s1119 + $0xc8] sm:$0xff]
  %v1138 = vld [vmem:[%s1119 + $0xd8] sm:$0xff]
  %v1139 = vld [vmem:[%s1119 + $0xe0] sm:$0xff]
  %v1140 = vld [vmem:[%s1119 + $0xf0] sm:$0xff]
  %v1141 = vld [vmem:[%s1119 + $0xf8] sm:$0xff]
  %v1142 = vld [vmem:[%s1119 + $0x108] sm:$0xff]
  %v1143 = vld [vmem:[%s1119 + $0x110] sm:$0xff]
  %v1144 = vld [vmem:[%s1119 + $0x120] sm:$0xff]
  %v1145 = vld [vmem:[%s1119 + $0x128] sm:$0xff]
  %v1146 = vld [vmem:[%s1119 + $0x138] sm:$0xff]
  %v1147 = vld [vmem:[%s1119 + $0x140] sm:$0xff]
  %v1148 = vld [vmem:[%s1119 + $0x150] sm:$0xff]
  %v1149 = vld [vmem:[%s1119 + $0x158] sm:$0xff]
  %v1150 = vld [vmem:[%s1119 + $0x168] sm:$0xff]
  %v1151 = vld [vmem:[%s1119 + $0x170] sm:$0xff]
  %v1152 = vld [vmem:[%s1 + $0xc] sm:$0xf]
  %v1154 = vsel %vm80, %v1120, 0
  %v1157 = vsel %vm80, %v1121, 0
  %v1160 = vsel %vm80, %v1122, 0
  %v1163 = vsel %vm80, %v1123, 0
  %v1166 = vsel %vm80, %v1124, 0
  %v1169 = vsel %vm80, %v1125, 0
  %v1172 = vsel %vm80, %v1126, 0
  %v1175 = vsel %vm80, %v1127, 0
  %v1178 = vsel %vm80, %v1128, 0
  %v1181 = vsel %vm80, %v1129, 0
  %v1184 = vsel %vm80, %v1130, 0
  %v1187 = vsel %vm80, %v1131, 0
  %v1190 = vsel %vm80, %v1132, 0
  %v1193 = vsel %vm80, %v1133, 0
  %v1196 = vsel %vm80, %v1134, 0
  %v1199 = vsel %vm80, %v1135, 0
  %v1202 = vsel %vm80, %v1136, 0
  %v1205 = vsel %vm80, %v1137, 0
  %v1208 = vsel %vm80, %v1138, 0
  %v1211 = vsel %vm80, %v1139, 0
  %v1214 = vsel %vm80, %v1140, 0
  %v1217 = vsel %vm80, %v1141, 0
  %v1220 = vsel %vm80, %v1142, 0
  %v1223 = vsel %vm80, %v1143, 0
  %v1226 = vsel %vm80, %v1144, 0
  %v1229 = vsel %vm80, %v1145, 0
  %v1232 = vsel %vm80, %v1146, 0
  %v1235 = vsel %vm80, %v1147, 0
  %v1238 = vsel %vm80, %v1148, 0
  %v1241 = vsel %vm80, %v1149, 0
  %v1244 = vsel %vm80, %v1150, 0
  %v1247 = vsel %vm80, %v1151, 0
  %v1250 = vsel %vm177, %v1152, 0
  %1252 = vmatprep.subr.mxu0 0.0
  %1253 = vmatpush1.msra.mxu0 %v1250
  %1254 = vmatprep.subr.mxu0 0.0
  %1255 = vmatpush1.msra.mxu0 0.0
  %1256 = vmatprep.subr.mxu0 0.0
  %1257 = vmatpush1.msra.mxu0 0.0
  %1258 = vmatprep.subr.mxu0 0.0
  %1259 = vmatpush1.msra.mxu0 0.0
  %1260 = vmatprep.subr.mxu0 0.0
  %1261 = vmatpush1.msra.mxu0 0.0
  %1262 = vmatprep.subr.mxu0 0.0
  %1263 = vmatpush1.msra.mxu0 0.0
  %1264 = vmatprep.subr.mxu0 0.0
  %1265 = vmatpush1.msra.mxu0 0.0
  %1266 = vmatprep.subr.mxu0 0.0
  %1267 = vmatpush1.msra.mxu0 0.0
  %1268 = vmatprep.subr.mxu0 0.0
  %1269 = vmatpush1.msra.mxu0 0.0
  %1270 = vmatprep.subr.mxu0 0.0
  %1271 = vmatpush1.msra.mxu0 0.0
  %1272 = vmatprep.subr.mxu0 0.0
  %1273 = vmatpush1.msra.mxu0 0.0
  %1274 = vmatprep.subr.mxu0 0.0
  %1275 = vmatpush1.msra.mxu0 0.0
  %1276 = vmatprep.subr.mxu0 0.0
  %1277 = vmatpush1.msra.mxu0 0.0
  %1278 = vmatprep.subr.mxu0 0.0
  %1279 = vmatpush1.msra.mxu0 0.0
  %1280 = vmatprep.subr.mxu0 0.0
  %1281 = vmatpush1.msra.mxu0 0.0
  %1282 = vmatprep.subr.mxu0 0.0
  %1283 = vmatpush1.msra.mxu0 0.0
  %1284 = vmatprep.subr.mxu0 0.0
  %1285 = vmatpush1.msra.mxu0 0.0
  %1286 = vmatprep.subr.mxu0 0.0
  %1287 = vmatpush1.msra.mxu0 0.0
  %1288 = vmatprep.subr.mxu0 0.0
  %1289 = vmatpush1.msra.mxu0 0.0
  %1290 = vmatprep.subr.mxu0 0.0
  %1291 = vmatpush1.msra.mxu0 0.0
  %1292 = vmatprep.subr.mxu0 0.0
  %1293 = vmatpush1.msra.mxu0 0.0
  %1294 = vmatprep.subr.mxu0 0.0
  %1295 = vmatpush1.msra.mxu0 0.0
  %1296 = vmatprep.subr.mxu0 0.0
  %1297 = vmatpush1.msra.mxu0 0.0
  %1298 = vmatprep.subr.mxu0 0.0
  %1299 = vmatpush1.msra.mxu0 0.0
  %1300 = vmatprep.subr.mxu0 0.0
  %1301 = vmatpush1.msra.mxu0 0.0
  %1302 = vmatprep.subr.mxu0 0.0
  %1303 = vmatpush1.msra.mxu0 0.0
  %1304 = vmatprep.subr.mxu0 0.0
  %1305 = vmatpush1.msra.mxu0 0.0
  %1306 = vmatprep.subr.mxu0 0.0
  %1307 = vmatpush1.msra.mxu0 0.0
  %1308 = vmatprep.subr.mxu0 0.0
  %1309 = vmatpush1.msra.mxu0 0.0
  %1310 = vmatprep.subr.mxu0 0.0
  %1311 = vmatpush1.msra.mxu0 0.0
  %1312 = vmatprep.subr.mxu0 0.0
  %1313 = vmatpush1.msra.mxu0 0.0
  %1314 = vmatprep.subr.mxu0 0.0
  %1315 = vmatpush1.msra.mxu0 0.0
  %1316 = vmatprep.mubr.f32.mxu0 0.0
  %1317 = vmatmul.mubr.f32.gmra.mrb[0].mxu0 %v1154
  %v1318 = vpop.f32.mrb[0].mxu0
  %v1319 = vadd.f32 0.0, %v1318
  %v1320 = vpop.f32.mrb[0].mxu0
  %1321 = vmatprep.mubr.f32.mxu0 0.0
  %1322 = vmatmul.mubr.f32.gmra.mrb[0].mxu0 %v1157
  %v1323 = vpop.f32.mrb[0].mxu0
  %v1324 = vadd.f32 0.0, %v1323
  %v1325 = vpop.f32.mrb[0].mxu0
  %1326 = vmatprep.mubr.f32.mxu0 0.0
  %1327 = vmatmul.mubr.f32.gmra.mrb[0].mxu0 %v1160
  %v1328 = vpop.f32.mrb[0].mxu0
  %v1329 = vadd.f32 0.0, %v1328
  %v1330 = vpop.f32.mrb[0].mxu0
  %1331 = vmatprep.mubr.f32.mxu0 0.0
  %1332 = vmatmul.mubr.f32.gmra.mrb[0].mxu0 %v1163
  %v1333 = vpop.f32.mrb[0].mxu0
  %v1334 = vadd.f32 0.0, %v1333
  %v1335 = vpop.f32.mrb[0].mxu0
  %1336 = vmatprep.mubr.f32.mxu0 0.0
  %1337 = vmatmul.mubr.f32.gmra.mrb[0].mxu0 %v1166
  %v1338 = vpop.f32.mrb[0].mxu0
  %v1339 = vadd.f32 0.0, %v1338
  %v1340 = vpop.f32.mrb[0].mxu0
  %1341 = vmatprep.mubr.f32.mxu0 0.0
  %1342 = vmatmul.mubr.f32.gmra.mrb[0].mxu0 %v1169
  %v1343 = vpop.f32.mrb[0].mxu0
  %v1344 = vadd.f32 0.0, %v1343
  %v1345 = vpop.f32.mrb[0].mxu0
  %1346 = vmatprep.mubr.f32.mxu0 0.0
  %1347 = vmatmul.mubr.f32.gmra.mrb[0].mxu0 %v1172
  %v1348 = vpop.f32.mrb[0].mxu0
  %v1349 = vadd.f32 0.0, %v1348
  %v1350 = vpop.f32.mrb[0].mxu0
  %1351 = vmatprep.mubr.f32.mxu0 0.0
  %1352 = vmatmul.mubr.f32.gmra.mrb[0].mxu0 %v1175
  %v1353 = vpop.f32.mrb[0].mxu0
  %v1354 = vadd.f32 0.0, %v1353
  %v1355 = vpop.f32.mrb[0].mxu0
  %1356 = vmatprep.mubr.f32.mxu0 0.0
  %1357 = vmatmul.mubr.f32.gmra.mrb[0].mxu0 %v1178
  %v1358 = vpop.f32.mrb[0].mxu0
  %v1359 = vadd.f32 0.0, %v1358
  %v1360 = vpop.f32.mrb[0].mxu0
  %1361 = vmatprep.mubr.f32.mxu0 0.0
  %1362 = vmatmul.mubr.f32.gmra.mrb[0].mxu0 %v1181
  %v1363 = vpop.f32.mrb[0].mxu0
  %v1364 = vadd.f32 0.0, %v1363
  %v1365 = vpop.f32.mrb[0].mxu0
  %1366 = vmatprep.mubr.f32.mxu0 0.0
  %1367 = vmatmul.mubr.f32.gmra.mrb[0].mxu0 %v1184
  %v1368 = vpop.f32.mrb[0].mxu0
  %v1369 = vadd.f32 0.0, %v1368
  %v1370 = vpop.f32.mrb[0].mxu0
  %1371 = vmatprep.mubr.f32.mxu0 0.0
  %1372 = vmatmul.mubr.f32.gmra.mrb[0].mxu0 %v1187
  %v1373 = vpop.f32.mrb[0].mxu0
  %v1374 = vadd.f32 0.0, %v1373
  %v1375 = vpop.f32.mrb[0].mxu0
  %1376 = vmatprep.mubr.f32.mxu0 0.0
  %1377 = vmatmul.mubr.f32.gmra.mrb[0].mxu0 %v1190
  %v1378 = vpop.f32.mrb[0].mxu0
  %v1379 = vadd.f32 0.0, %v1378
  %v1380 = vpop.f32.mrb[0].mxu0
  %1381 = vmatprep.mubr.f32.mxu0 0.0
  %1382 = vmatmul.mubr.f32.gmra.mrb[0].mxu0 %v1193
  %v1383 = vpop.f32.mrb[0].mxu0
  %v1384 = vadd.f32 0.0, %v1383
  %v1385 = vpop.f32.mrb[0].mxu0
  %1386 = vmatprep.mubr.f32.mxu0 0.0
  %1387 = vmatmul.mubr.f32.gmra.mrb[0].mxu0 %v1196
  %v1388 = vpop.f32.mrb[0].mxu0
  %v1389 = vadd.f32 0.0, %v1388
  %v1390 = vpop.f32.mrb[0].mxu0
  %1391 = vmatprep.mubr.f32.mxu0 0.0
  %1392 = vmatmul.mubr.f32.gmra.mrb[0].mxu0 %v1199
  %v1393 = vpop.f32.mrb[0].mxu0
  %v1394 = vadd.f32 0.0, %v1393
  %v1395 = vpop.f32.mrb[0].mxu0
  %1396 = vmatprep.mubr.f32.mxu0 0.0
  %1397 = vmatmul.mubr.f32.gmra.mrb[0].mxu0 %v1202
  %v1398 = vpop.f32.mrb[0].mxu0
  %v1399 = vadd.f32 0.0, %v1398
  %v1400 = vpop.f32.mrb[0].mxu0
  %1401 = vmatprep.mubr.f32.mxu0 0.0
  %1402 = vmatmul.mubr.f32.gmra.mrb[0].mxu0 %v1205
  %v1403 = vpop.f32.mrb[0].mxu0
  %v1404 = vadd.f32 0.0, %v1403
  %v1405 = vpop.f32.mrb[0].mxu0
  %1406 = vmatprep.mubr.f32.mxu0 0.0
  %1407 = vmatmul.mubr.f32.gmra.mrb[0].mxu0 %v1208
  %v1408 = vpop.f32.mrb[0].mxu0
  %v1409 = vadd.f32 0.0, %v1408
  %v1410 = vpop.f32.mrb[0].mxu0
  %1411 = vmatprep.mubr.f32.mxu0 0.0
  %1412 = vmatmul.mubr.f32.gmra.mrb[0].mxu0 %v1211
  %v1413 = vpop.f32.mrb[0].mxu0
  %v1414 = vadd.f32 0.0, %v1413
  %v1415 = vpop.f32.mrb[0].mxu0
  %1416 = vmatprep.mubr.f32.mxu0 0.0
  %1417 = vmatmul.mubr.f32.gmra.mrb[0].mxu0 %v1214
  %v1418 = vpop.f32.mrb[0].mxu0
  %v1419 = vadd.f32 0.0, %v1418
  %v1420 = vpop.f32.mrb[0].mxu0
  %1421 = vmatprep.mubr.f32.mxu0 0.0
  %1422 = vmatmul.mubr.f32.gmra.mrb[0].mxu0 %v1217
  %v1423 = vpop.f32.mrb[0].mxu0
  %v1424 = vadd.f32 0.0, %v1423
  %v1425 = vpop.f32.mrb[0].mxu0
  %1426 = vmatprep.mubr.f32.mxu0 0.0
  %1427 = vmatmul.mubr.f32.gmra.mrb[0].mxu0 %v1220
  %v1428 = vpop.f32.mrb[0].mxu0
  %v1429 = vadd.f32 0.0, %v1428
  %v1430 = vpop.f32.mrb[0].mxu0
  %1431 = vmatprep.mubr.f32.mxu0 0.0
  %1432 = vmatmul.mubr.f32.gmra.mrb[0].mxu0 %v1223
  %v1433 = vpop.f32.mrb[0].mxu0
  %v1434 = vadd.f32 0.0, %v1433
  %v1435 = vpop.f32.mrb[0].mxu0
  %1436 = vmatprep.mubr.f32.mxu0 0.0
  %1437 = vmatmul.mubr.f32.gmra.mrb[0].mxu0 %v1226
  %v1438 = vpop.f32.mrb[0].mxu0
  %v1439 = vadd.f32 0.0, %v1438
  %v1440 = vpop.f32.mrb[0].mxu0
  %1441 = vmatprep.mubr.f32.mxu0 0.0
  %1442 = vmatmul.mubr.f32.gmra.mrb[0].mxu0 %v1229
  %v1443 = vpop.f32.mrb[0].mxu0
  %v1444 = vadd.f32 0.0, %v1443
  %v1445 = vpop.f32.mrb[0].mxu0
  %1446 = vmatprep.mubr.f32.mxu0 0.0
  %1447 = vmatmul.mubr.f32.gmra.mrb[0].mxu0 %v1232
  %v1448 = vpop.f32.mrb[0].mxu0
  %v1449 = vadd.f32 0.0, %v1448
  %v1450 = vpop.f32.mrb[0].mxu0
  %1451 = vmatprep.mubr.f32.mxu0 0.0
  %1452 = vmatmul.mubr.f32.gmra.mrb[0].mxu0 %v1235
  %v1453 = vpop.f32.mrb[0].mxu0
  %v1454 = vadd.f32 0.0, %v1453
  %v1455 = vpop.f32.mrb[0].mxu0
  %1456 = vmatprep.mubr.f32.mxu0 0.0
  %1457 = vmatmul.mubr.f32.gmra.mrb[0].mxu0 %v1238
  %v1458 = vpop.f32.mrb[0].mxu0
  %v1459 = vadd.f32 0.0, %v1458
  %v1460 = vpop.f32.mrb[0].mxu0
  %1461 = vmatprep.mubr.f32.mxu0 0.0
  %1462 = vmatmul.mubr.f32.gmra.mrb[0].mxu0 %v1241
  %v1463 = vpop.f32.mrb[0].mxu0
  %v1464 = vadd.f32 0.0, %v1463
  %v1465 = vpop.f32.mrb[0].mxu0
  %1466 = vmatprep.mubr.f32.mxu0 0.0
  %1467 = vmatmul.mubr.f32.gmra.mrb[0].mxu0 %v1244
  %v1468 = vpop.f32.mrb[0].mxu0
  %v1469 = vadd.f32 0.0, %v1468
  %v1470 = vpop.f32.mrb[0].mxu0
  %1471 = vmatprep.mubr.f32.mxu0 0.0
  %1472 = vmatmul.mubr.f32.gmra.mrb[0].mxu0 %v1247
  %v1473 = vpop.f32.mrb[0].mxu0
  %v1474 = vadd.f32 0.0, %v1473
  %v1475 = vpop.f32.mrb[0].mxu0
  %1476 = vdwg.mxu0
  %v1477 = vadd.f32 %v1087, %v1319
  %v1478 = vadd.f32 %v1088, %v1324
  %v1479 = vadd.f32 %v1089, %v1329
  %v1480 = vadd.f32 %v1090, %v1334
  %v1481 = vadd.f32 %v1091, %v1339
  %v1482 = vadd.f32 %v1092, %v1344
  %v1483 = vadd.f32 %v1093, %v1349
  %v1484 = vadd.f32 %v1094, %v1354
  %v1485 = vadd.f32 %v1095, %v1359
  %v1486 = vadd.f32 %v1096, %v1364
  %v1487 = vadd.f32 %v1097, %v1369
  %v1488 = vadd.f32 %v1098, %v1374
  %v1489 = vadd.f32 %v1099, %v1379
  %v1490 = vadd.f32 %v1100, %v1384
  %v1491 = vadd.f32 %v1101, %v1389
  %v1492 = vadd.f32 %v1102, %v1394
  %v1493 = vadd.f32 %v1103, %v1399
  %v1494 = vadd.f32 %v1104, %v1404
  %v1495 = vadd.f32 %v1105, %v1409
  %v1496 = vadd.f32 %v1106, %v1414
  %v1497 = vadd.f32 %v1107, %v1419
  %v1498 = vadd.f32 %v1108, %v1424
  %v1499 = vadd.f32 %v1109, %v1429
  %v1500 = vadd.f32 %v1110, %v1434
  %v1501 = vadd.f32 %v1111, %v1439
  %v1502 = vadd.f32 %v1112, %v1444
  %v1503 = vadd.f32 %v1113, %v1449
  %v1504 = vadd.f32 %v1114, %v1454
  %v1505 = vadd.f32 %v1115, %v1459
  %v1506 = vadd.f32 %v1116, %v1464
  %v1507 = vadd.f32 %v1117, %v1469
  %v1508 = vadd.f32 %v1118, %v1474
  %v1509 = vld [vmem:[%s1119 + $0x1] sm:$0xff]
  %v1510 = vld [vmem:[%s1119 + $0x9] sm:$0xff]
  %v1511 = vld [vmem:[%s1119 + $0x19] sm:$0xff]
  %v1512 = vld [vmem:[%s1119 + $0x21] sm:$0xff]
  %v1513 = vld [vmem:[%s1119 + $0x31] sm:$0xff]
  %v1514 = vld [vmem:[%s1119 + $0x39] sm:$0xff]
  %v1515 = vld [vmem:[%s1119 + $0x49] sm:$0xff]
  %v1516 = vld [vmem:[%s1119 + $0x51] sm:$0xff]
  %v1517 = vld [vmem:[%s1119 + $0x61] sm:$0xff]
  %v1518 = vld [vmem:[%s1119 + $0x69] sm:$0xff]
  %v1519 = vld [vmem:[%s1119 + $0x79] sm:$0xff]
  %v1520 = vld [vmem:[%s1119 + $0x81] sm:$0xff]
  %v1521 = vld [vmem:[%s1119 + $0x91] sm:$0xff]
  %v1522 = vld [vmem:[%s1119 + $0x99] sm:$0xff]
  %v1523 = vld [vmem:[%s1119 + $0xa9] sm:$0xff]
  %v1524 = vld [vmem:[%s1119 + $0xb1] sm:$0xff]
  %v1525 = vld [vmem:[%s1119 + $0xc1] sm:$0xff]
  %v1526 = vld [vmem:[%s1119 + $0xc9] sm:$0xff]
  %v1527 = vld [vmem:[%s1119 + $0xd9] sm:$0xff]
  %v1528 = vld [vmem:[%s1119 + $0xe1] sm:$0xff]
  %v1529 = vld [vmem:[%s1119 + $0xf1] sm:$0xff]
  %v1530 = vld [vmem:[%s1119 + $0xf9] sm:$0xff]
  %v1531 = vld [vmem:[%s1119 + $0x109] sm:$0xff]
  %v1532 = vld [vmem:[%s1119 + $0x111] sm:$0xff]
  %v1533 = vld [vmem:[%s1119 + $0x121] sm:$0xff]
  %v1534 = vld [vmem:[%s1119 + $0x129] sm:$0xff]
  %v1535 = vld [vmem:[%s1119 + $0x139] sm:$0xff]
  %v1536 = vld [vmem:[%s1119 + $0x141] sm:$0xff]
  %v1537 = vld [vmem:[%s1119 + $0x151] sm:$0xff]
  %v1538 = vld [vmem:[%s1119 + $0x159] sm:$0xff]
  %v1539 = vld [vmem:[%s1119 + $0x169] sm:$0xff]
  %v1540 = vld [vmem:[%s1119 + $0x171] sm:$0xff]
  %v1541 = vld [vmem:[%s1 + $0x10] sm:$0xf]
  %v1543 = vsel %vm80, %v1509, 0
  %v1546 = vsel %vm80, %v1510, 0
  %v1549 = vsel %vm80, %v1511, 0
  %v1552 = vsel %vm80, %v1512, 0
  %v1555 = vsel %vm80, %v1513, 0
  %v1558 = vsel %vm80, %v1514, 0
  %v1561 = vsel %vm80, %v1515, 0
  %v1564 = vsel %vm80, %v1516, 0
  %v1567 = vsel %vm80, %v1517, 0
  %v1570 = vsel %vm80, %v1518, 0
  %v1573 = vsel %vm80, %v1519, 0
  %v1576 = vsel %vm80, %v1520, 0
  %v1579 = vsel %vm80, %v1521, 0
  %v1582 = vsel %vm80, %v1522, 0
  %v1585 = vsel %vm80, %v1523, 0
  %v1588 = vsel %vm80, %v1524, 0
  %v1591 = vsel %vm80, %v1525, 0
  %v1594 = vsel %vm80, %v1526, 0
  %v1597 = vsel %vm80, %v1527, 0
  %v1600 = vsel %vm80, %v1528, 0
  %v1603 = vsel %vm80, %v1529, 0
  %v1606 = vsel %vm80, %v1530, 0
  %v1609 = vsel %vm80, %v1531, 0
  %v1612 = vsel %vm80, %v1532, 0
  %v1615 = vsel %vm80, %v1533, 0
  %v1618 = vsel %vm80, %v1534, 0
  %v1621 = vsel %vm80, %v1535, 0
  %v1624 = vsel %vm80, %v1536, 0
  %v1627 = vsel %vm80, %v1537, 0
  %v1630 = vsel %vm80, %v1538, 0
  %v1633 = vsel %vm80, %v1539, 0
  %v1636 = vsel %vm80, %v1540, 0
  %v1639 = vsel %vm177, %v1541, 0
  %1641 = vmatprep.subr.mxu0 0.0
  %1642 = vmatpush1.msra.mxu0 %v1639
  %1643 = vmatprep.subr.mxu0 0.0
  %1644 = vmatpush1.msra.mxu0 0.0
  %1645 = vmatprep.subr.mxu0 0.0
  %1646 = vmatpush1.msra.mxu0 0.0
  %1647 = vmatprep.subr.mxu0 0.0
  %1648 = vmatpush1.msra.mxu0 0.0
  %1649 = vmatprep.subr.mxu0 0.0
  %1650 = vmatpush1.msra.mxu0 0.0
  %1651 = vmatprep.subr.mxu0 0.0
  %1652 = vmatpush1.msra.mxu0 0.0
  %1653 = vmatprep.subr.mxu0 0.0
  %1654 = vmatpush1.msra.mxu0 0.0
  %1655 = vmatprep.subr.mxu0 0.0
  %1656 = vmatpush1.msra.mxu0 0.0
  %1657 = vmatprep.subr.mxu0 0.0
  %1658 = vmatpush1.msra.mxu0 0.0
  %1659 = vmatprep.subr.mxu0 0.0
  %1660 = vmatpush1.msra.mxu0 0.0
  %1661 = vmatprep.subr.mxu0 0.0
  %1662 = vmatpush1.msra.mxu0 0.0
  %1663 = vmatprep.subr.mxu0 0.0
  %1664 = vmatpush1.msra.mxu0 0.0
  %1665 = vmatprep.subr.mxu0 0.0
  %1666 = vmatpush1.msra.mxu0 0.0
  %1667 = vmatprep.subr.mxu0 0.0
  %1668 = vmatpush1.msra.mxu0 0.0
  %1669 = vmatprep.subr.mxu0 0.0
  %1670 = vmatpush1.msra.mxu0 0.0
  %1671 = vmatprep.subr.mxu0 0.0
  %1672 = vmatpush1.msra.mxu0 0.0
  %1673 = vmatprep.subr.mxu0 0.0
  %1674 = vmatpush1.msra.mxu0 0.0
  %1675 = vmatprep.subr.mxu0 0.0
  %1676 = vmatpush1.msra.mxu0 0.0
  %1677 = vmatprep.subr.mxu0 0.0
  %1678 = vmatpush1.msra.mxu0 0.0
  %1679 = vmatprep.subr.mxu0 0.0
  %1680 = vmatpush1.msra.mxu0 0.0
  %1681 = vmatprep.subr.mxu0 0.0
  %1682 = vmatpush1.msra.mxu0 0.0
  %1683 = vmatprep.subr.mxu0 0.0
  %1684 = vmatpush1.msra.mxu0 0.0
  %1685 = vmatprep.subr.mxu0 0.0
  %1686 = vmatpush1.msra.mxu0 0.0
  %1687 = vmatprep.subr.mxu0 0.0
  %1688 = vmatpush1.msra.mxu0 0.0
  %1689 = vmatprep.subr.mxu0 0.0
  %1690 = vmatpush1.msra.mxu0 0.0
  %1691 = vmatprep.subr.mxu0 0.0
  %1692 = vmatpush1.msra.mxu0 0.0
  %1693 = vmatprep.subr.mxu0 0.0
  %1694 = vmatpush1.msra.mxu0 0.0
  %1695 = vmatprep.subr.mxu0 0.0
  %1696 = vmatpush1.msra.mxu0 0.0
  %1697 = vmatprep.subr.mxu0 0.0
  %1698 = vmatpush1.msra.mxu0 0.0
  %1699 = vmatprep.subr.mxu0 0.0
  %1700 = vmatpush1.msra.mxu0 0.0
  %1701 = vmatprep.subr.mxu0 0.0
  %1702 = vmatpush1.msra.mxu0 0.0
  %1703 = vmatprep.subr.mxu0 0.0
  %1704 = vmatpush1.msra.mxu0 0.0
  %1705 = vmatprep.mubr.f32.mxu0 0.0
  %1706 = vmatmul.mubr.f32.gmra.mrb[0].mxu0 %v1543
  %v1707 = vpop.f32.mrb[0].mxu0
  %v1708 = vadd.f32 0.0, %v1707
  %v1709 = vpop.f32.mrb[0].mxu0
  %1710 = vmatprep.mubr.f32.mxu0 0.0
  %1711 = vmatmul.mubr.f32.gmra.mrb[0].mxu0 %v1546
  %v1712 = vpop.f32.mrb[0].mxu0
  %v1713 = vadd.f32 0.0, %v1712
  %v1714 = vpop.f32.mrb[0].mxu0
  %1715 = vmatprep.mubr.f32.mxu0 0.0
  %1716 = vmatmul.mubr.f32.gmra.mrb[0].mxu0 %v1549
  %v1717 = vpop.f32.mrb[0].mxu0
  %v1718 = vadd.f32 0.0, %v1717
  %v1719 = vpop.f32.mrb[0].mxu0
  %1720 = vmatprep.mubr.f32.mxu0 0.0
  %1721 = vmatmul.mubr.f32.gmra.mrb[0].mxu0 %v1552
  %v1722 = vpop.f32.mrb[0].mxu0
  %v1723 = vadd.f32 0.0, %v1722
  %v1724 = vpop.f32.mrb[0].mxu0
  %1725 = vmatprep.mubr.f32.mxu0 0.0
  %1726 = vmatmul.mubr.f32.gmra.mrb[0].mxu0 %v1555
  %v1727 = vpop.f32.mrb[0].mxu0
  %v1728 = vadd.f32 0.0, %v1727
  %v1729 = vpop.f32.mrb[0].mxu0
  %1730 = vmatprep.mubr.f32.mxu0 0.0
  %1731 = vmatmul.mubr.f32.gmra.mrb[0].mxu0 %v1558
  %v1732 = vpop.f32.mrb[0].mxu0
  %v1733 = vadd.f32 0.0, %v1732
  %v1734 = vpop.f32.mrb[0].mxu0
  %1735 = vmatprep.mubr.f32.mxu0 0.0
  %1736 = vmatmul.mubr.f32.gmra.mrb[0].mxu0 %v1561
  %v1737 = vpop.f32.mrb[0].mxu0
  %v1738 = vadd.f32 0.0, %v1737
  %v1739 = vpop.f32.mrb[0].mxu0
  %1740 = vmatprep.mubr.f32.mxu0 0.0
  %1741 = vmatmul.mubr.f32.gmra.mrb[0].mxu0 %v1564
  %v1742 = vpop.f32.mrb[0].mxu0
  %v1743 = vadd.f32 0.0, %v1742
  %v1744 = vpop.f32.mrb[0].mxu0
  %1745 = vmatprep.mubr.f32.mxu0 0.0
  %1746 = vmatmul.mubr.f32.gmra.mrb[0].mxu0 %v1567
  %v1747 = vpop.f32.mrb[0].mxu0
  %v1748 = vadd.f32 0.0, %v1747
  %v1749 = vpop.f32.mrb[0].mxu0
  %1750 = vmatprep.mubr.f32.mxu0 0.0
  %1751 = vmatmul.mubr.f32.gmra.mrb[0].mxu0 %v1570
  %v1752 = vpop.f32.mrb[0].mxu0
  %v1753 = vadd.f32 0.0, %v1752
  %v1754 = vpop.f32.mrb[0].mxu0
  %1755 = vmatprep.mubr.f32.mxu0 0.0
  %1756 = vmatmul.mubr.f32.gmra.mrb[0].mxu0 %v1573
  %v1757 = vpop.f32.mrb[0].mxu0
  %v1758 = vadd.f32 0.0, %v1757
  %v1759 = vpop.f32.mrb[0].mxu0
  %1760 = vmatprep.mubr.f32.mxu0 0.0
  %1761 = vmatmul.mubr.f32.gmra.mrb[0].mxu0 %v1576
  %v1762 = vpop.f32.mrb[0].mxu0
  %v1763 = vadd.f32 0.0, %v1762
  %v1764 = vpop.f32.mrb[0].mxu0
  %1765 = vmatprep.mubr.f32.mxu0 0.0
  %1766 = vmatmul.mubr.f32.gmra.mrb[0].mxu0 %v1579
  %v1767 = vpop.f32.mrb[0].mxu0
  %v1768 = vadd.f32 0.0, %v1767
  %v1769 = vpop.f32.mrb[0].mxu0
  %1770 = vmatprep.mubr.f32.mxu0 0.0
  %1771 = vmatmul.mubr.f32.gmra.mrb[0].mxu0 %v1582
  %v1772 = vpop.f32.mrb[0].mxu0
  %v1773 = vadd.f32 0.0, %v1772
  %v1774 = vpop.f32.mrb[0].mxu0
  %1775 = vmatprep.mubr.f32.mxu0 0.0
  %1776 = vmatmul.mubr.f32.gmra.mrb[0].mxu0 %v1585
  %v1777 = vpop.f32.mrb[0].mxu0
  %v1778 = vadd.f32 0.0, %v1777
  %v1779 = vpop.f32.mrb[0].mxu0
  %1780 = vmatprep.mubr.f32.mxu0 0.0
  %1781 = vmatmul.mubr.f32.gmra.mrb[0].mxu0 %v1588
  %v1782 = vpop.f32.mrb[0].mxu0
  %v1783 = vadd.f32 0.0, %v1782
  %v1784 = vpop.f32.mrb[0].mxu0
  %1785 = vmatprep.mubr.f32.mxu0 0.0
  %1786 = vmatmul.mubr.f32.gmra.mrb[0].mxu0 %v1591
  %v1787 = vpop.f32.mrb[0].mxu0
  %v1788 = vadd.f32 0.0, %v1787
  %v1789 = vpop.f32.mrb[0].mxu0
  %1790 = vmatprep.mubr.f32.mxu0 0.0
  %1791 = vmatmul.mubr.f32.gmra.mrb[0].mxu0 %v1594
  %v1792 = vpop.f32.mrb[0].mxu0
  %v1793 = vadd.f32 0.0, %v1792
  %v1794 = vpop.f32.mrb[0].mxu0
  %1795 = vmatprep.mubr.f32.mxu0 0.0
  %1796 = vmatmul.mubr.f32.gmra.mrb[0].mxu0 %v1597
  %v1797 = vpop.f32.mrb[0].mxu0
  %v1798 = vadd.f32 0.0, %v1797
  %v1799 = vpop.f32.mrb[0].mxu0
  %1800 = vmatprep.mubr.f32.mxu0 0.0
  %1801 = vmatmul.mubr.f32.gmra.mrb[0].mxu0 %v1600
  %v1802 = vpop.f32.mrb[0].mxu0
  %v1803 = vadd.f32 0.0, %v1802
  %v1804 = vpop.f32.mrb[0].mxu0
  %1805 = vmatprep.mubr.f32.mxu0 0.0
  %1806 = vmatmul.mubr.f32.gmra.mrb[0].mxu0 %v1603
  %v1807 = vpop.f32.mrb[0].mxu0
  %v1808 = vadd.f32 0.0, %v1807
  %v1809 = vpop.f32.mrb[0].mxu0
  %1810 = vmatprep.mubr.f32.mxu0 0.0
  %1811 = vmatmul.mubr.f32.gmra.mrb[0].mxu0 %v1606
  %v1812 = vpop.f32.mrb[0].mxu0
  %v1813 = vadd.f32 0.0, %v1812
  %v1814 = vpop.f32.mrb[0].mxu0
  %1815 = vmatprep.mubr.f32.mxu0 0.0
  %1816 = vmatmul.mubr.f32.gmra.mrb[0].mxu0 %v1609
  %v1817 = vpop.f32.mrb[0].mxu0
  %v1818 = vadd.f32 0.0, %v1817
  %v1819 = vpop.f32.mrb[0].mxu0
  %1820 = vmatprep.mubr.f32.mxu0 0.0
  %1821 = vmatmul.mubr.f32.gmra.mrb[0].mxu0 %v1612
  %v1822 = vpop.f32.mrb[0].mxu0
  %v1823 = vadd.f32 0.0, %v1822
  %v1824 = vpop.f32.mrb[0].mxu0
  %1825 = vmatprep.mubr.f32.mxu0 0.0
  %1826 = vmatmul.mubr.f32.gmra.mrb[0].mxu0 %v1615
  %v1827 = vpop.f32.mrb[0].mxu0
  %v1828 = vadd.f32 0.0, %v1827
  %v1829 = vpop.f32.mrb[0].mxu0
  %1830 = vmatprep.mubr.f32.mxu0 0.0
  %1831 = vmatmul.mubr.f32.gmra.mrb[0].mxu0 %v1618
  %v1832 = vpop.f32.mrb[0].mxu0
  %v1833 = vadd.f32 0.0, %v1832
  %v1834 = vpop.f32.mrb[0].mxu0
  %1835 = vmatprep.mubr.f32.mxu0 0.0
  %1836 = vmatmul.mubr.f32.gmra.mrb[0].mxu0 %v1621
  %v1837 = vpop.f32.mrb[0].mxu0
  %v1838 = vadd.f32 0.0, %v1837
  %v1839 = vpop.f32.mrb[0].mxu0
  %1840 = vmatprep.mubr.f32.mxu0 0.0
  %1841 = vmatmul.mubr.f32.gmra.mrb[0].mxu0 %v1624
  %v1842 = vpop.f32.mrb[0].mxu0
  %v1843 = vadd.f32 0.0, %v1842
  %v1844 = vpop.f32.mrb[0].mxu0
  %1845 = vmatprep.mubr.f32.mxu0 0.0
  %1846 = vmatmul.mubr.f32.gmra.mrb[0].mxu0 %v1627
  %v1847 = vpop.f32.mrb[0].mxu0
  %v1848 = vadd.f32 0.0, %v1847
  %v1849 = vpop.f32.mrb[0].mxu0
  %1850 = vmatprep.mubr.f32.mxu0 0.0
  %1851 = vmatmul.mubr.f32.gmra.mrb[0].mxu0 %v1630
  %v1852 = vpop.f32.mrb[0].mxu0
  %v1853 = vadd.f32 0.0, %v1852
  %v1854 = vpop.f32.mrb[0].mxu0
  %1855 = vmatprep.mubr.f32.mxu0 0.0
  %1856 = vmatmul.mubr.f32.gmra.mrb[0].mxu0 %v1633
  %v1857 = vpop.f32.mrb[0].mxu0
  %v1858 = vadd.f32 0.0, %v1857
  %v1859 = vpop.f32.mrb[0].mxu0
  %1860 = vmatprep.mubr.f32.mxu0 0.0
  %1861 = vmatmul.mubr.f32.gmra.mrb[0].mxu0 %v1636
  %v1862 = vpop.f32.mrb[0].mxu0
  %v1863 = vadd.f32 0.0, %v1862
  %v1864 = vpop.f32.mrb[0].mxu0
  %1865 = vdwg.mxu0
  %v1866 = vadd.f32 %v1477, %v1708
  %v1867 = vadd.f32 %v1478, %v1713
  %v1868 = vadd.f32 %v1479, %v1718
  %v1869 = vadd.f32 %v1480, %v1723
  %v1870 = vadd.f32 %v1481, %v1728
  %v1871 = vadd.f32 %v1482, %v1733
  %v1872 = vadd.f32 %v1483, %v1738
  %v1873 = vadd.f32 %v1484, %v1743
  %v1874 = vadd.f32 %v1485, %v1748
  %v1875 = vadd.f32 %v1486, %v1753
  %v1876 = vadd.f32 %v1487, %v1758
  %v1877 = vadd.f32 %v1488, %v1763
  %v1878 = vadd.f32 %v1489, %v1768
  %v1879 = vadd.f32 %v1490, %v1773
  %v1880 = vadd.f32 %v1491, %v1778
  %v1881 = vadd.f32 %v1492, %v1783
  %v1882 = vadd.f32 %v1493, %v1788
  %v1883 = vadd.f32 %v1494, %v1793
  %v1884 = vadd.f32 %v1495, %v1798
  %v1885 = vadd.f32 %v1496, %v1803
  %v1886 = vadd.f32 %v1497, %v1808
  %v1887 = vadd.f32 %v1498, %v1813
  %v1888 = vadd.f32 %v1499, %v1818
  %v1889 = vadd.f32 %v1500, %v1823
  %v1890 = vadd.f32 %v1501, %v1828
  %v1891 = vadd.f32 %v1502, %v1833
  %v1892 = vadd.f32 %v1503, %v1838
  %v1893 = vadd.f32 %v1504, %v1843
  %v1894 = vadd.f32 %v1505, %v1848
  %v1895 = vadd.f32 %v1506, %v1853
  %v1896 = vadd.f32 %v1507, %v1858
  %v1897 = vadd.f32 %v1508, %v1863
  %v1898 = vld [vmem:[%s1119 + $0x2] sm:$0xff]
  %v1899 = vld [vmem:[%s1119 + $0xa] sm:$0xff]
  %v1900 = vld [vmem:[%s1119 + $0x1a] sm:$0xff]
  %v1901 = vld [vmem:[%s1119 + $0x22] sm:$0xff]
  %v1902 = vld [vmem:[%s1119 + $0x32] sm:$0xff]
  %v1903 = vld [vmem:[%s1119 + $0x3a] sm:$0xff]
  %v1904 = vld [vmem:[%s1119 + $0x4a] sm:$0xff]
  %v1905 = vld [vmem:[%s1119 + $0x52] sm:$0xff]
  %v1906 = vld [vmem:[%s1119 + $0x62] sm:$0xff]
  %v1907 = vld [vmem:[%s1119 + $0x6a] sm:$0xff]
  %v1908 = vld [vmem:[%s1119 + $0x7a] sm:$0xff]
  %v1909 = vld [vmem:[%s1119 + $0x82] sm:$0xff]
  %v1910 = vld [vmem:[%s1119 + $0x92] sm:$0xff]
  %v1911 = vld [vmem:[%s1119 + $0x9a] sm:$0xff]
  %v1912 = vld [vmem:[%s1119 + $0xaa] sm:$0xff]
  %v1913 = vld [vmem:[%s1119 + $0xb2] sm:$0xff]
  %v1914 = vld [vmem:[%s1119 + $0xc2] sm:$0xff]
  %v1915 = vld [vmem:[%s1119 + $0xca] sm:$0xff]
  %v1916 = vld [vmem:[%s1119 + $0xda] sm:$0xff]
  %v1917 = vld [vmem:[%s1119 + $0xe2] sm:$0xff]
  %v1918 = vld [vmem:[%s1119 + $0xf2] sm:$0xff]
  %v1919 = vld [vmem:[%s1119 + $0xfa] sm:$0xff]
  %v1920 = vld [vmem:[%s1119 + $0x10a] sm:$0xff]
  %v1921 = vld [vmem:[%s1119 + $0x112] sm:$0xff]
  %v1922 = vld [vmem:[%s1119 + $0x122] sm:$0xff]
  %v1923 = vld [vmem:[%s1119 + $0x12a] sm:$0xff]
  %v1924 = vld [vmem:[%s1119 + $0x13a] sm:$0xff]
  %v1925 = vld [vmem:[%s1119 + $0x142] sm:$0xff]
  %v1926 = vld [vmem:[%s1119 + $0x152] sm:$0xff]
  %v1927 = vld [vmem:[%s1119 + $0x15a] sm:$0xff]
  %v1928 = vld [vmem:[%s1119 + $0x16a] sm:$0xff]
  %v1929 = vld [vmem:[%s1119 + $0x172] sm:$0xff]
  %v1930 = vld [vmem:[%s1 + $0x14] sm:$0xf]
  %v1932 = vsel %vm80, %v1898, 0
  %v1935 = vsel %vm80, %v1899, 0
  %v1938 = vsel %vm80, %v1900, 0
  %v1941 = vsel %vm80, %v1901, 0
  %v1944 = vsel %vm80, %v1902, 0
  %v1947 = vsel %vm80, %v1903, 0
  %v1950 = vsel %vm80, %v1904, 0
  %v1953 = vsel %vm80, %v1905, 0
  %v1956 = vsel %vm80, %v1906, 0
  %v1959 = vsel %vm80, %v1907, 0
  %v1962 = vsel %vm80, %v1908, 0
  %v1965 = vsel %vm80, %v1909, 0
  %v1968 = vsel %vm80, %v1910, 0
  %v1971 = vsel %vm80, %v1911, 0
  %v1974 = vsel %vm80, %v1912, 0
  %v1977 = vsel %vm80, %v1913, 0
  %v1980 = vsel %vm80, %v1914, 0
  %v1983 = vsel %vm80, %v1915, 0
  %v1986 = vsel %vm80, %v1916, 0
  %v1989 = vsel %vm80, %v1917, 0
  %v1992 = vsel %vm80, %v1918, 0
  %v1995 = vsel %vm80, %v1919, 0
  %v1998 = vsel %vm80, %v1920, 0
  %v2001 = vsel %vm80, %v1921, 0
  %v2004 = vsel %vm80, %v1922, 0
  %v2007 = vsel %vm80, %v1923, 0
  %v2010 = vsel %vm80, %v1924, 0
  %v2013 = vsel %vm80, %v1925, 0
  %v2016 = vsel %vm80, %v1926, 0
  %v2019 = vsel %vm80, %v1927, 0
  %v2022 = vsel %vm80, %v1928, 0
  %v2025 = vsel %vm80, %v1929, 0
  %v2028 = vsel %vm177, %v1930, 0
  %2030 = vmatprep.subr.mxu0 0.0
  %2031 = vmatpush1.msra.mxu0 %v2028
  %2032 = vmatprep.subr.mxu0 0.0
  %2033 = vmatpush1.msra.mxu0 0.0
  %2034 = vmatprep.subr.mxu0 0.0
  %2035 = vmatpush1.msra.mxu0 0.0
  %2036 = vmatprep.subr.mxu0 0.0
  %2037 = vmatpush1.msra.mxu0 0.0
  %2038 = vmatprep.subr.mxu0 0.0
  %2039 = vmatpush1.msra.mxu0 0.0
  %2040 = vmatprep.subr.mxu0 0.0
  %2041 = vmatpush1.msra.mxu0 0.0
  %2042 = vmatprep.subr.mxu0 0.0
  %2043 = vmatpush1.msra.mxu0 0.0
  %2044 = vmatprep.subr.mxu0 0.0
  %2045 = vmatpush1.msra.mxu0 0.0
  %2046 = vmatprep.subr.mxu0 0.0
  %2047 = vmatpush1.msra.mxu0 0.0
  %2048 = vmatprep.subr.mxu0 0.0
  %2049 = vmatpush1.msra.mxu0 0.0
  %2050 = vmatprep.subr.mxu0 0.0
  %2051 = vmatpush1.msra.mxu0 0.0
  %2052 = vmatprep.subr.mxu0 0.0
  %2053 = vmatpush1.msra.mxu0 0.0
  %2054 = vmatprep.subr.mxu0 0.0
  %2055 = vmatpush1.msra.mxu0 0.0
  %2056 = vmatprep.subr.mxu0 0.0
  %2057 = vmatpush1.msra.mxu0 0.0
  %2058 = vmatprep.subr.mxu0 0.0
  %2059 = vmatpush1.msra.mxu0 0.0
  %2060 = vmatprep.subr.mxu0 0.0
  %2061 = vmatpush1.msra.mxu0 0.0
  %2062 = vmatprep.subr.mxu0 0.0
  %2063 = vmatpush1.msra.mxu0 0.0
  %2064 = vmatprep.subr.mxu0 0.0
  %2065 = vmatpush1.msra.mxu0 0.0
  %2066 = vmatprep.subr.mxu0 0.0
  %2067 = vmatpush1.msra.mxu0 0.0
  %2068 = vmatprep.subr.mxu0 0.0
  %2069 = vmatpush1.msra.mxu0 0.0
  %2070 = vmatprep.subr.mxu0 0.0
  %2071 = vmatpush1.msra.mxu0 0.0
  %2072 = vmatprep.subr.mxu0 0.0
  %2073 = vmatpush1.msra.mxu0 0.0
  %2074 = vmatprep.subr.mxu0 0.0
  %2075 = vmatpush1.msra.mxu0 0.0
  %2076 = vmatprep.subr.mxu0 0.0
  %2077 = vmatpush1.msra.mxu0 0.0
  %2078 = vmatprep.subr.mxu0 0.0
  %2079 = vmatpush1.msra.mxu0 0.0
  %2080 = vmatprep.subr.mxu0 0.0
  %2081 = vmatpush1.msra.mxu0 0.0
  %2082 = vmatprep.subr.mxu0 0.0
  %2083 = vmatpush1.msra.mxu0 0.0
  %2084 = vmatprep.subr.mxu0 0.0
  %2085 = vmatpush1.msra.mxu0 0.0
  %2086 = vmatprep.subr.mxu0 0.0
  %2087 = vmatpush1.msra.mxu0 0.0
  %2088 = vmatprep.subr.mxu0 0.0
  %2089 = vmatpush1.msra.mxu0 0.0
  %2090 = vmatprep.subr.mxu0 0.0
  %2091 = vmatpush1.msra.mxu0 0.0
  %2092 = vmatprep.subr.mxu0 0.0
  %2093 = vmatpush1.msra.mxu0 0.0
  %2094 = vmatprep.mubr.f32.mxu0 0.0
  %2095 = vmatmul.mubr.f32.gmra.mrb[0].mxu0 %v1932
  %v2096 = vpop.f32.mrb[0].mxu0
  %v2097 = vadd.f32 0.0, %v2096
  %v2098 = vpop.f32.mrb[0].mxu0
  %2099 = vmatprep.mubr.f32.mxu0 0.0
  %2100 = vmatmul.mubr.f32.gmra.mrb[0].mxu0 %v1935
  %v2101 = vpop.f32.mrb[0].mxu0
  %v2102 = vadd.f32 0.0, %v2101
  %v2103 = vpop.f32.mrb[0].mxu0
  %2104 = vmatprep.mubr.f32.mxu0 0.0
  %2105 = vmatmul.mubr.f32.gmra.mrb[0].mxu0 %v1938
  %v2106 = vpop.f32.mrb[0].mxu0
  %v2107 = vadd.f32 0.0, %v2106
  %v2108 = vpop.f32.mrb[0].mxu0
  %2109 = vmatprep.mubr.f32.mxu0 0.0
  %2110 = vmatmul.mubr.f32.gmra.mrb[0].mxu0 %v1941
  %v2111 = vpop.f32.mrb[0].mxu0
  %v2112 = vadd.f32 0.0, %v2111
  %v2113 = vpop.f32.mrb[0].mxu0
  %2114 = vmatprep.mubr.f32.mxu0 0.0
  %2115 = vmatmul.mubr.f32.gmra.mrb[0].mxu0 %v1944
  %v2116 = vpop.f32.mrb[0].mxu0
  %v2117 = vadd.f32 0.0, %v2116
  %v2118 = vpop.f32.mrb[0].mxu0
  %2119 = vmatprep.mubr.f32.mxu0 0.0
  %2120 = vmatmul.mubr.f32.gmra.mrb[0].mxu0 %v1947
  %v2121 = vpop.f32.mrb[0].mxu0
  %v2122 = vadd.f32 0.0, %v2121
  %v2123 = vpop.f32.mrb[0].mxu0
  %2124 = vmatprep.mubr.f32.mxu0 0.0
  %2125 = vmatmul.mubr.f32.gmra.mrb[0].mxu0 %v1950
  %v2126 = vpop.f32.mrb[0].mxu0
  %v2127 = vadd.f32 0.0, %v2126
  %v2128 = vpop.f32.mrb[0].mxu0
  %2129 = vmatprep.mubr.f32.mxu0 0.0
  %2130 = vmatmul.mubr.f32.gmra.mrb[0].mxu0 %v1953
  %v2131 = vpop.f32.mrb[0].mxu0
  %v2132 = vadd.f32 0.0, %v2131
  %v2133 = vpop.f32.mrb[0].mxu0
  %2134 = vmatprep.mubr.f32.mxu0 0.0
  %2135 = vmatmul.mubr.f32.gmra.mrb[0].mxu0 %v1956
  %v2136 = vpop.f32.mrb[0].mxu0
  %v2137 = vadd.f32 0.0, %v2136
  %v2138 = vpop.f32.mrb[0].mxu0
  %2139 = vmatprep.mubr.f32.mxu0 0.0
  %2140 = vmatmul.mubr.f32.gmra.mrb[0].mxu0 %v1959
  %v2141 = vpop.f32.mrb[0].mxu0
  %v2142 = vadd.f32 0.0, %v2141
  %v2143 = vpop.f32.mrb[0].mxu0
  %2144 = vmatprep.mubr.f32.mxu0 0.0
  %2145 = vmatmul.mubr.f32.gmra.mrb[0].mxu0 %v1962
  %v2146 = vpop.f32.mrb[0].mxu0
  %v2147 = vadd.f32 0.0, %v2146
  %v2148 = vpop.f32.mrb[0].mxu0
  %2149 = vmatprep.mubr.f32.mxu0 0.0
  %2150 = vmatmul.mubr.f32.gmra.mrb[0].mxu0 %v1965
  %v2151 = vpop.f32.mrb[0].mxu0
  %v2152 = vadd.f32 0.0, %v2151
  %v2153 = vpop.f32.mrb[0].mxu0
  %2154 = vmatprep.mubr.f32.mxu0 0.0
  %2155 = vmatmul.mubr.f32.gmra.mrb[0].mxu0 %v1968
  %v2156 = vpop.f32.mrb[0].mxu0
  %v2157 = vadd.f32 0.0, %v2156
  %v2158 = vpop.f32.mrb[0].mxu0
  %2159 = vmatprep.mubr.f32.mxu0 0.0
  %2160 = vmatmul.mubr.f32.gmra.mrb[0].mxu0 %v1971
  %v2161 = vpop.f32.mrb[0].mxu0
  %v2162 = vadd.f32 0.0, %v2161
  %v2163 = vpop.f32.mrb[0].mxu0
  %2164 = vmatprep.mubr.f32.mxu0 0.0
  %2165 = vmatmul.mubr.f32.gmra.mrb[0].mxu0 %v1974
  %v2166 = vpop.f32.mrb[0].mxu0
  %v2167 = vadd.f32 0.0, %v2166
  %v2168 = vpop.f32.mrb[0].mxu0
  %2169 = vmatprep.mubr.f32.mxu0 0.0
  %2170 = vmatmul.mubr.f32.gmra.mrb[0].mxu0 %v1977
  %v2171 = vpop.f32.mrb[0].mxu0
  %v2172 = vadd.f32 0.0, %v2171
  %v2173 = vpop.f32.mrb[0].mxu0
  %2174 = vmatprep.mubr.f32.mxu0 0.0
  %2175 = vmatmul.mubr.f32.gmra.mrb[0].mxu0 %v1980
  %v2176 = vpop.f32.mrb[0].mxu0
  %v2177 = vadd.f32 0.0, %v2176
  %v2178 = vpop.f32.mrb[0].mxu0
  %2179 = vmatprep.mubr.f32.mxu0 0.0
  %2180 = vmatmul.mubr.f32.gmra.mrb[0].mxu0 %v1983
  %v2181 = vpop.f32.mrb[0].mxu0
  %v2182 = vadd.f32 0.0, %v2181
  %v2183 = vpop.f32.mrb[0].mxu0
  %2184 = vmatprep.mubr.f32.mxu0 0.0
  %2185 = vmatmul.mubr.f32.gmra.mrb[0].mxu0 %v1986
  %v2186 = vpop.f32.mrb[0].mxu0
  %v2187 = vadd.f32 0.0, %v2186
  %v2188 = vpop.f32.mrb[0].mxu0
  %2189 = vmatprep.mubr.f32.mxu0 0.0
  %2190 = vmatmul.mubr.f32.gmra.mrb[0].mxu0 %v1989
  %v2191 = vpop.f32.mrb[0].mxu0
  %v2192 = vadd.f32 0.0, %v2191
  %v2193 = vpop.f32.mrb[0].mxu0
  %2194 = vmatprep.mubr.f32.mxu0 0.0
  %2195 = vmatmul.mubr.f32.gmra.mrb[0].mxu0 %v1992
  %v2196 = vpop.f32.mrb[0].mxu0
  %v2197 = vadd.f32 0.0, %v2196
  %v2198 = vpop.f32.mrb[0].mxu0
  %2199 = vmatprep.mubr.f32.mxu0 0.0
  %2200 = vmatmul.mubr.f32.gmra.mrb[0].mxu0 %v1995
  %v2201 = vpop.f32.mrb[0].mxu0
  %v2202 = vadd.f32 0.0, %v2201
  %v2203 = vpop.f32.mrb[0].mxu0
  %2204 = vmatprep.mubr.f32.mxu0 0.0
  %2205 = vmatmul.mubr.f32.gmra.mrb[0].mxu0 %v1998
  %v2206 = vpop.f32.mrb[0].mxu0
  %v2207 = vadd.f32 0.0, %v2206
  %v2208 = vpop.f32.mrb[0].mxu0
  %2209 = vmatprep.mubr.f32.mxu0 0.0
  %2210 = vmatmul.mubr.f32.gmra.mrb[0].mxu0 %v2001
  %v2211 = vpop.f32.mrb[0].mxu0
  %v2212 = vadd.f32 0.0, %v2211
  %v2213 = vpop.f32.mrb[0].mxu0
  %2214 = vmatprep.mubr.f32.mxu0 0.0
  %2215 = vmatmul.mubr.f32.gmra.mrb[0].mxu0 %v2004
  %v2216 = vpop.f32.mrb[0].mxu0
  %v2217 = vadd.f32 0.0, %v2216
  %v2218 = vpop.f32.mrb[0].mxu0
  %2219 = vmatprep.mubr.f32.mxu0 0.0
  %2220 = vmatmul.mubr.f32.gmra.mrb[0].mxu0 %v2007
  %v2221 = vpop.f32.mrb[0].mxu0
  %v2222 = vadd.f32 0.0, %v2221
  %v2223 = vpop.f32.mrb[0].mxu0
  %2224 = vmatprep.mubr.f32.mxu0 0.0
  %2225 = vmatmul.mubr.f32.gmra.mrb[0].mxu0 %v2010
  %v2226 = vpop.f32.mrb[0].mxu0
  %v2227 = vadd.f32 0.0, %v2226
  %v2228 = vpop.f32.mrb[0].mxu0
  %2229 = vmatprep.mubr.f32.mxu0 0.0
  %2230 = vmatmul.mubr.f32.gmra.mrb[0].mxu0 %v2013
  %v2231 = vpop.f32.mrb[0].mxu0
  %v2232 = vadd.f32 0.0, %v2231
  %v2233 = vpop.f32.mrb[0].mxu0
  %2234 = vmatprep.mubr.f32.mxu0 0.0
  %2235 = vmatmul.mubr.f32.gmra.mrb[0].mxu0 %v2016
  %v2236 = vpop.f32.mrb[0].mxu0
  %v2237 = vadd.f32 0.0, %v2236
  %v2238 = vpop.f32.mrb[0].mxu0
  %2239 = vmatprep.mubr.f32.mxu0 0.0
  %2240 = vmatmul.mubr.f32.gmra.mrb[0].mxu0 %v2019
  %v2241 = vpop.f32.mrb[0].mxu0
  %v2242 = vadd.f32 0.0, %v2241
  %v2243 = vpop.f32.mrb[0].mxu0
  %2244 = vmatprep.mubr.f32.mxu0 0.0
  %2245 = vmatmul.mubr.f32.gmra.mrb[0].mxu0 %v2022
  %v2246 = vpop.f32.mrb[0].mxu0
  %v2247 = vadd.f32 0.0, %v2246
  %v2248 = vpop.f32.mrb[0].mxu0
  %2249 = vmatprep.mubr.f32.mxu0 0.0
  %2250 = vmatmul.mubr.f32.gmra.mrb[0].mxu0 %v2025
  %v2251 = vpop.f32.mrb[0].mxu0
  %v2252 = vadd.f32 0.0, %v2251
  %v2253 = vpop.f32.mrb[0].mxu0
  %2254 = vdwg.mxu0
  %v2255 = vadd.f32 %v1866, %v2097
  %v2256 = vadd.f32 %v1867, %v2102
  %v2257 = vadd.f32 %v1868, %v2107
  %v2258 = vadd.f32 %v1869, %v2112
  %v2259 = vadd.f32 %v1870, %v2117
  %v2260 = vadd.f32 %v1871, %v2122
  %v2261 = vadd.f32 %v1872, %v2127
  %v2262 = vadd.f32 %v1873, %v2132
  %v2263 = vadd.f32 %v1874, %v2137
  %v2264 = vadd.f32 %v1875, %v2142
  %v2265 = vadd.f32 %v1876, %v2147
  %v2266 = vadd.f32 %v1877, %v2152
  %v2267 = vadd.f32 %v1878, %v2157
  %v2268 = vadd.f32 %v1879, %v2162
  %v2269 = vadd.f32 %v1880, %v2167
  %v2270 = vadd.f32 %v1881, %v2172
  %v2271 = vadd.f32 %v1882, %v2177
  %v2272 = vadd.f32 %v1883, %v2182
  %v2273 = vadd.f32 %v1884, %v2187
  %v2274 = vadd.f32 %v1885, %v2192
  %v2275 = vadd.f32 %v1886, %v2197
  %v2276 = vadd.f32 %v1887, %v2202
  %v2277 = vadd.f32 %v1888, %v2207
  %v2278 = vadd.f32 %v1889, %v2212
  %v2279 = vadd.f32 %v1890, %v2217
  %v2280 = vadd.f32 %v1891, %v2222
  %v2281 = vadd.f32 %v1892, %v2227
  %v2282 = vadd.f32 %v1893, %v2232
  %v2283 = vadd.f32 %v1894, %v2237
  %v2284 = vadd.f32 %v1895, %v2242
  %v2285 = vadd.f32 %v1896, %v2247
  %v2286 = vadd.f32 %v1897, %v2252
  %s2287 = scalar_lea.vmem %s0, 48
  %v2288 = vld [vmem:[%s2287] sm:$0xff]
  %v2289 = vld [vmem:[%s2287 + $0x8] sm:$0xff]
  %v2290 = vld [vmem:[%s2287 + $0x18] sm:$0xff]
  %v2291 = vld [vmem:[%s2287 + $0x20] sm:$0xff]
  %v2292 = vld [vmem:[%s2287 + $0x30] sm:$0xff]
  %v2293 = vld [vmem:[%s2287 + $0x38] sm:$0xff]
  %v2294 = vld [vmem:[%s2287 + $0x48] sm:$0xff]
  %v2295 = vld [vmem:[%s2287 + $0x50] sm:$0xff]
  %v2296 = vld [vmem:[%s2287 + $0x60] sm:$0xff]
  %v2297 = vld [vmem:[%s2287 + $0x68] sm:$0xff]
  %v2298 = vld [vmem:[%s2287 + $0x78] sm:$0xff]
  %v2299 = vld [vmem:[%s2287 + $0x80] sm:$0xff]
  %v2300 = vld [vmem:[%s2287 + $0x90] sm:$0xff]
  %v2301 = vld [vmem:[%s2287 + $0x98] sm:$0xff]
  %v2302 = vld [vmem:[%s2287 + $0xa8] sm:$0xff]
  %v2303 = vld [vmem:[%s2287 + $0xb0] sm:$0xff]
  %v2304 = vld [vmem:[%s2287 + $0xc0] sm:$0xff]
  %v2305 = vld [vmem:[%s2287 + $0xc8] sm:$0xff]
  %v2306 = vld [vmem:[%s2287 + $0xd8] sm:$0xff]
  %v2307 = vld [vmem:[%s2287 + $0xe0] sm:$0xff]
  %v2308 = vld [vmem:[%s2287 + $0xf0] sm:$0xff]
  %v2309 = vld [vmem:[%s2287 + $0xf8] sm:$0xff]
  %v2310 = vld [vmem:[%s2287 + $0x108] sm:$0xff]
  %v2311 = vld [vmem:[%s2287 + $0x110] sm:$0xff]
  %v2312 = vld [vmem:[%s2287 + $0x120] sm:$0xff]
  %v2313 = vld [vmem:[%s2287 + $0x128] sm:$0xff]
  %v2314 = vld [vmem:[%s2287 + $0x138] sm:$0xff]
  %v2315 = vld [vmem:[%s2287 + $0x140] sm:$0xff]
  %v2316 = vld [vmem:[%s2287 + $0x150] sm:$0xff]
  %v2317 = vld [vmem:[%s2287 + $0x158] sm:$0xff]
  %v2318 = vld [vmem:[%s2287 + $0x168] sm:$0xff]
  %v2319 = vld [vmem:[%s2287 + $0x170] sm:$0xff]
  %v2320 = vld [vmem:[%s1 + $0x18] sm:$0xf]
  %v2322 = vsel %vm80, %v2288, 0
  %v2325 = vsel %vm80, %v2289, 0
  %v2328 = vsel %vm80, %v2290, 0
  %v2331 = vsel %vm80, %v2291, 0
  %v2334 = vsel %vm80, %v2292, 0
  %v2337 = vsel %vm80, %v2293, 0
  %v2340 = vsel %vm80, %v2294, 0
  %v2343 = vsel %vm80, %v2295, 0
  %v2346 = vsel %vm80, %v2296, 0
  %v2349 = vsel %vm80, %v2297, 0
  %v2352 = vsel %vm80, %v2298, 0
  %v2355 = vsel %vm80, %v2299, 0
  %v2358 = vsel %vm80, %v2300, 0
  %v2361 = vsel %vm80, %v2301, 0
  %v2364 = vsel %vm80, %v2302, 0
  %v2367 = vsel %vm80, %v2303, 0
  %v2370 = vsel %vm80, %v2304, 0
  %v2373 = vsel %vm80, %v2305, 0
  %v2376 = vsel %vm80, %v2306, 0
  %v2379 = vsel %vm80, %v2307, 0
  %v2382 = vsel %vm80, %v2308, 0
  %v2385 = vsel %vm80, %v2309, 0
  %v2388 = vsel %vm80, %v2310, 0
  %v2391 = vsel %vm80, %v2311, 0
  %v2394 = vsel %vm80, %v2312, 0
  %v2397 = vsel %vm80, %v2313, 0
  %v2400 = vsel %vm80, %v2314, 0
  %v2403 = vsel %vm80, %v2315, 0
  %v2406 = vsel %vm80, %v2316, 0
  %v2409 = vsel %vm80, %v2317, 0
  %v2412 = vsel %vm80, %v2318, 0
  %v2415 = vsel %vm80, %v2319, 0
  %v2418 = vsel %vm177, %v2320, 0
  %2420 = vmatprep.subr.mxu0 0.0
  %2421 = vmatpush1.msra.mxu0 %v2418
  %2422 = vmatprep.subr.mxu0 0.0
  %2423 = vmatpush1.msra.mxu0 0.0
  %2424 = vmatprep.subr.mxu0 0.0
  %2425 = vmatpush1.msra.mxu0 0.0
  %2426 = vmatprep.subr.mxu0 0.0
  %2427 = vmatpush1.msra.mxu0 0.0
  %2428 = vmatprep.subr.mxu0 0.0
  %2429 = vmatpush1.msra.mxu0 0.0
  %2430 = vmatprep.subr.mxu0 0.0
  %2431 = vmatpush1.msra.mxu0 0.0
  %2432 = vmatprep.subr.mxu0 0.0
  %2433 = vmatpush1.msra.mxu0 0.0
  %2434 = vmatprep.subr.mxu0 0.0
  %2435 = vmatpush1.msra.mxu0 0.0
  %2436 = vmatprep.subr.mxu0 0.0
  %2437 = vmatpush1.msra.mxu0 0.0
  %2438 = vmatprep.subr.mxu0 0.0
  %2439 = vmatpush1.msra.mxu0 0.0
  %2440 = vmatprep.subr.mxu0 0.0
  %2441 = vmatpush1.msra.mxu0 0.0
  %2442 = vmatprep.subr.mxu0 0.0
  %2443 = vmatpush1.msra.mxu0 0.0
  %2444 = vmatprep.subr.mxu0 0.0
  %2445 = vmatpush1.msra.mxu0 0.0
  %2446 = vmatprep.subr.mxu0 0.0
  %2447 = vmatpush1.msra.mxu0 0.0
  %2448 = vmatprep.subr.mxu0 0.0
  %2449 = vmatpush1.msra.mxu0 0.0
  %2450 = vmatprep.subr.mxu0 0.0
  %2451 = vmatpush1.msra.mxu0 0.0
  %2452 = vmatprep.subr.mxu0 0.0
  %2453 = vmatpush1.msra.mxu0 0.0
  %2454 = vmatprep.subr.mxu0 0.0
  %2455 = vmatpush1.msra.mxu0 0.0
  %2456 = vmatprep.subr.mxu0 0.0
  %2457 = vmatpush1.msra.mxu0 0.0
  %2458 = vmatprep.subr.mxu0 0.0
  %2459 = vmatpush1.msra.mxu0 0.0
  %2460 = vmatprep.subr.mxu0 0.0
  %2461 = vmatpush1.msra.mxu0 0.0
  %2462 = vmatprep.subr.mxu0 0.0
  %2463 = vmatpush1.msra.mxu0 0.0
  %2464 = vmatprep.subr.mxu0 0.0
  %2465 = vmatpush1.msra.mxu0 0.0
  %2466 = vmatprep.subr.mxu0 0.0
  %2467 = vmatpush1.msra.mxu0 0.0
  %2468 = vmatprep.subr.mxu0 0.0
  %2469 = vmatpush1.msra.mxu0 0.0
  %2470 = vmatprep.subr.mxu0 0.0
  %2471 = vmatpush1.msra.mxu0 0.0
  %2472 = vmatprep.subr.mxu0 0.0
  %2473 = vmatpush1.msra.mxu0 0.0
  %2474 = vmatprep.subr.mxu0 0.0
  %2475 = vmatpush1.msra.mxu0 0.0
  %2476 = vmatprep.subr.mxu0 0.0
  %2477 = vmatpush1.msra.mxu0 0.0
  %2478 = vmatprep.subr.mxu0 0.0
  %2479 = vmatpush1.msra.mxu0 0.0
  %2480 = vmatprep.subr.mxu0 0.0
  %2481 = vmatpush1.msra.mxu0 0.0
  %2482 = vmatprep.subr.mxu0 0.0
  %2483 = vmatpush1.msra.mxu0 0.0
  %2484 = vmatprep.mubr.f32.mxu0 0.0
  %2485 = vmatmul.mubr.f32.gmra.mrb[0].mxu0 %v2322
  %v2486 = vpop.f32.mrb[0].mxu0
  %v2487 = vadd.f32 0.0, %v2486
  %v2488 = vpop.f32.mrb[0].mxu0
  %2489 = vmatprep.mubr.f32.mxu0 0.0
  %2490 = vmatmul.mubr.f32.gmra.mrb[0].mxu0 %v2325
  %v2491 = vpop.f32.mrb[0].mxu0
  %v2492 = vadd.f32 0.0, %v2491
  %v2493 = vpop.f32.mrb[0].mxu0
  %2494 = vmatprep.mubr.f32.mxu0 0.0
  %2495 = vmatmul.mubr.f32.gmra.mrb[0].mxu0 %v2328
  %v2496 = vpop.f32.mrb[0].mxu0
  %v2497 = vadd.f32 0.0, %v2496
  %v2498 = vpop.f32.mrb[0].mxu0
  %2499 = vmatprep.mubr.f32.mxu0 0.0
  %2500 = vmatmul.mubr.f32.gmra.mrb[0].mxu0 %v2331
  %v2501 = vpop.f32.mrb[0].mxu0
  %v2502 = vadd.f32 0.0, %v2501
  %v2503 = vpop.f32.mrb[0].mxu0
  %2504 = vmatprep.mubr.f32.mxu0 0.0
  %2505 = vmatmul.mubr.f32.gmra.mrb[0].mxu0 %v2334
  %v2506 = vpop.f32.mrb[0].mxu0
  %v2507 = vadd.f32 0.0, %v2506
  %v2508 = vpop.f32.mrb[0].mxu0
  %2509 = vmatprep.mubr.f32.mxu0 0.0
  %2510 = vmatmul.mubr.f32.gmra.mrb[0].mxu0 %v2337
  %v2511 = vpop.f32.mrb[0].mxu0
  %v2512 = vadd.f32 0.0, %v2511
  %v2513 = vpop.f32.mrb[0].mxu0
  %2514 = vmatprep.mubr.f32.mxu0 0.0
  %2515 = vmatmul.mubr.f32.gmra.mrb[0].mxu0 %v2340
  %v2516 = vpop.f32.mrb[0].mxu0
  %v2517 = vadd.f32 0.0, %v2516
  %v2518 = vpop.f32.mrb[0].mxu0
  %2519 = vmatprep.mubr.f32.mxu0 0.0
  %2520 = vmatmul.mubr.f32.gmra.mrb[0].mxu0 %v2343
  %v2521 = vpop.f32.mrb[0].mxu0
  %v2522 = vadd.f32 0.0, %v2521
  %v2523 = vpop.f32.mrb[0].mxu0
  %2524 = vmatprep.mubr.f32.mxu0 0.0
  %2525 = vmatmul.mubr.f32.gmra.mrb[0].mxu0 %v2346
  %v2526 = vpop.f32.mrb[0].mxu0
  %v2527 = vadd.f32 0.0, %v2526
  %v2528 = vpop.f32.mrb[0].mxu0
  %2529 = vmatprep.mubr.f32.mxu0 0.0
  %2530 = vmatmul.mubr.f32.gmra.mrb[0].mxu0 %v2349
  %v2531 = vpop.f32.mrb[0].mxu0
  %v2532 = vadd.f32 0.0, %v2531
  %v2533 = vpop.f32.mrb[0].mxu0
  %2534 = vmatprep.mubr.f32.mxu0 0.0
  %2535 = vmatmul.mubr.f32.gmra.mrb[0].mxu0 %v2352
  %v2536 = vpop.f32.mrb[0].mxu0
  %v2537 = vadd.f32 0.0, %v2536
  %v2538 = vpop.f32.mrb[0].mxu0
  %2539 = vmatprep.mubr.f32.mxu0 0.0
  %2540 = vmatmul.mubr.f32.gmra.mrb[0].mxu0 %v2355
  %v2541 = vpop.f32.mrb[0].mxu0
  %v2542 = vadd.f32 0.0, %v2541
  %v2543 = vpop.f32.mrb[0].mxu0
  %2544 = vmatprep.mubr.f32.mxu0 0.0
  %2545 = vmatmul.mubr.f32.gmra.mrb[0].mxu0 %v2358
  %v2546 = vpop.f32.mrb[0].mxu0
  %v2547 = vadd.f32 0.0, %v2546
  %v2548 = vpop.f32.mrb[0].mxu0
  %2549 = vmatprep.mubr.f32.mxu0 0.0
  %2550 = vmatmul.mubr.f32.gmra.mrb[0].mxu0 %v2361
  %v2551 = vpop.f32.mrb[0].mxu0
  %v2552 = vadd.f32 0.0, %v2551
  %v2553 = vpop.f32.mrb[0].mxu0
  %2554 = vmatprep.mubr.f32.mxu0 0.0
  %2555 = vmatmul.mubr.f32.gmra.mrb[0].mxu0 %v2364
  %v2556 = vpop.f32.mrb[0].mxu0
  %v2557 = vadd.f32 0.0, %v2556
  %v2558 = vpop.f32.mrb[0].mxu0
  %2559 = vmatprep.mubr.f32.mxu0 0.0
  %2560 = vmatmul.mubr.f32.gmra.mrb[0].mxu0 %v2367
  %v2561 = vpop.f32.mrb[0].mxu0
  %v2562 = vadd.f32 0.0, %v2561
  %v2563 = vpop.f32.mrb[0].mxu0
  %2564 = vmatprep.mubr.f32.mxu0 0.0
  %2565 = vmatmul.mubr.f32.gmra.mrb[0].mxu0 %v2370
  %v2566 = vpop.f32.mrb[0].mxu0
  %v2567 = vadd.f32 0.0, %v2566
  %v2568 = vpop.f32.mrb[0].mxu0
  %2569 = vmatprep.mubr.f32.mxu0 0.0
  %2570 = vmatmul.mubr.f32.gmra.mrb[0].mxu0 %v2373
  %v2571 = vpop.f32.mrb[0].mxu0
  %v2572 = vadd.f32 0.0, %v2571
  %v2573 = vpop.f32.mrb[0].mxu0
  %2574 = vmatprep.mubr.f32.mxu0 0.0
  %2575 = vmatmul.mubr.f32.gmra.mrb[0].mxu0 %v2376
  %v2576 = vpop.f32.mrb[0].mxu0
  %v2577 = vadd.f32 0.0, %v2576
  %v2578 = vpop.f32.mrb[0].mxu0
  %2579 = vmatprep.mubr.f32.mxu0 0.0
  %2580 = vmatmul.mubr.f32.gmra.mrb[0].mxu0 %v2379
  %v2581 = vpop.f32.mrb[0].mxu0
  %v2582 = vadd.f32 0.0, %v2581
  %v2583 = vpop.f32.mrb[0].mxu0
  %2584 = vmatprep.mubr.f32.mxu0 0.0
  %2585 = vmatmul.mubr.f32.gmra.mrb[0].mxu0 %v2382
  %v2586 = vpop.f32.mrb[0].mxu0
  %v2587 = vadd.f32 0.0, %v2586
  %v2588 = vpop.f32.mrb[0].mxu0
  %2589 = vmatprep.mubr.f32.mxu0 0.0
  %2590 = vmatmul.mubr.f32.gmra.mrb[0].mxu0 %v2385
  %v2591 = vpop.f32.mrb[0].mxu0
  %v2592 = vadd.f32 0.0, %v2591
  %v2593 = vpop.f32.mrb[0].mxu0
  %2594 = vmatprep.mubr.f32.mxu0 0.0
  %2595 = vmatmul.mubr.f32.gmra.mrb[0].mxu0 %v2388
  %v2596 = vpop.f32.mrb[0].mxu0
  %v2597 = vadd.f32 0.0, %v2596
  %v2598 = vpop.f32.mrb[0].mxu0
  %2599 = vmatprep.mubr.f32.mxu0 0.0
  %2600 = vmatmul.mubr.f32.gmra.mrb[0].mxu0 %v2391
  %v2601 = vpop.f32.mrb[0].mxu0
  %v2602 = vadd.f32 0.0, %v2601
  %v2603 = vpop.f32.mrb[0].mxu0
  %2604 = vmatprep.mubr.f32.mxu0 0.0
  %2605 = vmatmul.mubr.f32.gmra.mrb[0].mxu0 %v2394
  %v2606 = vpop.f32.mrb[0].mxu0
  %v2607 = vadd.f32 0.0, %v2606
  %v2608 = vpop.f32.mrb[0].mxu0
  %2609 = vmatprep.mubr.f32.mxu0 0.0
  %2610 = vmatmul.mubr.f32.gmra.mrb[0].mxu0 %v2397
  %v2611 = vpop.f32.mrb[0].mxu0
  %v2612 = vadd.f32 0.0, %v2611
  %v2613 = vpop.f32.mrb[0].mxu0
  %2614 = vmatprep.mubr.f32.mxu0 0.0
  %2615 = vmatmul.mubr.f32.gmra.mrb[0].mxu0 %v2400
  %v2616 = vpop.f32.mrb[0].mxu0
  %v2617 = vadd.f32 0.0, %v2616
  %v2618 = vpop.f32.mrb[0].mxu0
  %2619 = vmatprep.mubr.f32.mxu0 0.0
  %2620 = vmatmul.mubr.f32.gmra.mrb[0].mxu0 %v2403
  %v2621 = vpop.f32.mrb[0].mxu0
  %v2622 = vadd.f32 0.0, %v2621
  %v2623 = vpop.f32.mrb[0].mxu0
  %2624 = vmatprep.mubr.f32.mxu0 0.0
  %2625 = vmatmul.mubr.f32.gmra.mrb[0].mxu0 %v2406
  %v2626 = vpop.f32.mrb[0].mxu0
  %v2627 = vadd.f32 0.0, %v2626
  %v2628 = vpop.f32.mrb[0].mxu0
  %2629 = vmatprep.mubr.f32.mxu0 0.0
  %2630 = vmatmul.mubr.f32.gmra.mrb[0].mxu0 %v2409
  %v2631 = vpop.f32.mrb[0].mxu0
  %v2632 = vadd.f32 0.0, %v2631
  %v2633 = vpop.f32.mrb[0].mxu0
  %2634 = vmatprep.mubr.f32.mxu0 0.0
  %2635 = vmatmul.mubr.f32.gmra.mrb[0].mxu0 %v2412
  %v2636 = vpop.f32.mrb[0].mxu0
  %v2637 = vadd.f32 0.0, %v2636
  %v2638 = vpop.f32.mrb[0].mxu0
  %2639 = vmatprep.mubr.f32.mxu0 0.0
  %2640 = vmatmul.mubr.f32.gmra.mrb[0].mxu0 %v2415
  %v2641 = vpop.f32.mrb[0].mxu0
  %v2642 = vadd.f32 0.0, %v2641
  %v2643 = vpop.f32.mrb[0].mxu0
  %2644 = vdwg.mxu0
  %v2645 = vadd.f32 %v2255, %v2487
  %v2646 = vadd.f32 %v2256, %v2492
  %v2647 = vadd.f32 %v2257, %v2497
  %v2648 = vadd.f32 %v2258, %v2502
  %v2649 = vadd.f32 %v2259, %v2507
  %v2650 = vadd.f32 %v2260, %v2512
  %v2651 = vadd.f32 %v2261, %v2517
  %v2652 = vadd.f32 %v2262, %v2522
  %v2653 = vadd.f32 %v2263, %v2527
  %v2654 = vadd.f32 %v2264, %v2532
  %v2655 = vadd.f32 %v2265, %v2537
  %v2656 = vadd.f32 %v2266, %v2542
  %v2657 = vadd.f32 %v2267, %v2547
  %v2658 = vadd.f32 %v2268, %v2552
  %v2659 = vadd.f32 %v2269, %v2557
  %v2660 = vadd.f32 %v2270, %v2562
  %v2661 = vadd.f32 %v2271, %v2567
  %v2662 = vadd.f32 %v2272, %v2572
  %v2663 = vadd.f32 %v2273, %v2577
  %v2664 = vadd.f32 %v2274, %v2582
  %v2665 = vadd.f32 %v2275, %v2587
  %v2666 = vadd.f32 %v2276, %v2592
  %v2667 = vadd.f32 %v2277, %v2597
  %v2668 = vadd.f32 %v2278, %v2602
  %v2669 = vadd.f32 %v2279, %v2607
  %v2670 = vadd.f32 %v2280, %v2612
  %v2671 = vadd.f32 %v2281, %v2617
  %v2672 = vadd.f32 %v2282, %v2622
  %v2673 = vadd.f32 %v2283, %v2627
  %v2674 = vadd.f32 %v2284, %v2632
  %v2675 = vadd.f32 %v2285, %v2637
  %v2676 = vadd.f32 %v2286, %v2642
  %v2677 = vld [vmem:[%s2287 + $0x1] sm:$0xff]
  %v2678 = vld [vmem:[%s2287 + $0x9] sm:$0xff]
  %v2679 = vld [vmem:[%s2287 + $0x19] sm:$0xff]
  %v2680 = vld [vmem:[%s2287 + $0x21] sm:$0xff]
  %v2681 = vld [vmem:[%s2287 + $0x31] sm:$0xff]
  %v2682 = vld [vmem:[%s2287 + $0x39] sm:$0xff]
  %v2683 = vld [vmem:[%s2287 + $0x49] sm:$0xff]
  %v2684 = vld [vmem:[%s2287 + $0x51] sm:$0xff]
  %v2685 = vld [vmem:[%s2287 + $0x61] sm:$0xff]
  %v2686 = vld [vmem:[%s2287 + $0x69] sm:$0xff]
  %v2687 = vld [vmem:[%s2287 + $0x79] sm:$0xff]
  %v2688 = vld [vmem:[%s2287 + $0x81] sm:$0xff]
  %v2689 = vld [vmem:[%s2287 + $0x91] sm:$0xff]
  %v2690 = vld [vmem:[%s2287 + $0x99] sm:$0xff]
  %v2691 = vld [vmem:[%s2287 + $0xa9] sm:$0xff]
  %v2692 = vld [vmem:[%s2287 + $0xb1] sm:$0xff]
  %v2693 = vld [vmem:[%s2287 + $0xc1] sm:$0xff]
  %v2694 = vld [vmem:[%s2287 + $0xc9] sm:$0xff]
  %v2695 = vld [vmem:[%s2287 + $0xd9] sm:$0xff]
  %v2696 = vld [vmem:[%s2287 + $0xe1] sm:$0xff]
  %v2697 = vld [vmem:[%s2287 + $0xf1] sm:$0xff]
  %v2698 = vld [vmem:[%s2287 + $0xf9] sm:$0xff]
  %v2699 = vld [vmem:[%s2287 + $0x109] sm:$0xff]
  %v2700 = vld [vmem:[%s2287 + $0x111] sm:$0xff]
  %v2701 = vld [vmem:[%s2287 + $0x121] sm:$0xff]
  %v2702 = vld [vmem:[%s2287 + $0x129] sm:$0xff]
  %v2703 = vld [vmem:[%s2287 + $0x139] sm:$0xff]
  %v2704 = vld [vmem:[%s2287 + $0x141] sm:$0xff]
  %v2705 = vld [vmem:[%s2287 + $0x151] sm:$0xff]
  %v2706 = vld [vmem:[%s2287 + $0x159] sm:$0xff]
  %v2707 = vld [vmem:[%s2287 + $0x169] sm:$0xff]
  %v2708 = vld [vmem:[%s2287 + $0x171] sm:$0xff]
  %v2709 = vld [vmem:[%s1 + $0x1c] sm:$0xf]
  %v2711 = vsel %vm80, %v2677, 0
  %v2714 = vsel %vm80, %v2678, 0
  %v2717 = vsel %vm80, %v2679, 0
  %v2720 = vsel %vm80, %v2680, 0
  %v2723 = vsel %vm80, %v2681, 0
  %v2726 = vsel %vm80, %v2682, 0
  %v2729 = vsel %vm80, %v2683, 0
  %v2732 = vsel %vm80, %v2684, 0
  %v2735 = vsel %vm80, %v2685, 0
  %v2738 = vsel %vm80, %v2686, 0
  %v2741 = vsel %vm80, %v2687, 0
  %v2744 = vsel %vm80, %v2688, 0
  %v2747 = vsel %vm80, %v2689, 0
  %v2750 = vsel %vm80, %v2690, 0
  %v2753 = vsel %vm80, %v2691, 0
  %v2756 = vsel %vm80, %v2692, 0
  %v2759 = vsel %vm80, %v2693, 0
  %v2762 = vsel %vm80, %v2694, 0
  %v2765 = vsel %vm80, %v2695, 0
  %v2768 = vsel %vm80, %v2696, 0
  %v2771 = vsel %vm80, %v2697, 0
  %v2774 = vsel %vm80, %v2698, 0
  %v2777 = vsel %vm80, %v2699, 0
  %v2780 = vsel %vm80, %v2700, 0
  %v2783 = vsel %vm80, %v2701, 0
  %v2786 = vsel %vm80, %v2702, 0
  %v2789 = vsel %vm80, %v2703, 0
  %v2792 = vsel %vm80, %v2704, 0
  %v2795 = vsel %vm80, %v2705, 0
  %v2798 = vsel %vm80, %v2706, 0
  %v2801 = vsel %vm80, %v2707, 0
  %v2804 = vsel %vm80, %v2708, 0
  %v2807 = vsel %vm177, %v2709, 0
  %2809 = vmatprep.subr.mxu0 0.0
  %2810 = vmatpush1.msra.mxu0 %v2807
  %2811 = vmatprep.subr.mxu0 0.0
  %2812 = vmatpush1.msra.mxu0 0.0
  %2813 = vmatprep.subr.mxu0 0.0
  %2814 = vmatpush1.msra.mxu0 0.0
  %2815 = vmatprep.subr.mxu0 0.0
  %2816 = vmatpush1.msra.mxu0 0.0
  %2817 = vmatprep.subr.mxu0 0.0
  %2818 = vmatpush1.msra.mxu0 0.0
  %2819 = vmatprep.subr.mxu0 0.0
  %2820 = vmatpush1.msra.mxu0 0.0
  %2821 = vmatprep.subr.mxu0 0.0
  %2822 = vmatpush1.msra.mxu0 0.0
  %2823 = vmatprep.subr.mxu0 0.0
  %2824 = vmatpush1.msra.mxu0 0.0
  %2825 = vmatprep.subr.mxu0 0.0
  %2826 = vmatpush1.msra.mxu0 0.0
  %2827 = vmatprep.subr.mxu0 0.0
  %2828 = vmatpush1.msra.mxu0 0.0
  %2829 = vmatprep.subr.mxu0 0.0
  %2830 = vmatpush1.msra.mxu0 0.0
  %2831 = vmatprep.subr.mxu0 0.0
  %2832 = vmatpush1.msra.mxu0 0.0
  %2833 = vmatprep.subr.mxu0 0.0
  %2834 = vmatpush1.msra.mxu0 0.0
  %2835 = vmatprep.subr.mxu0 0.0
  %2836 = vmatpush1.msra.mxu0 0.0
  %2837 = vmatprep.subr.mxu0 0.0
  %2838 = vmatpush1.msra.mxu0 0.0
  %2839 = vmatprep.subr.mxu0 0.0
  %2840 = vmatpush1.msra.mxu0 0.0
  %2841 = vmatprep.subr.mxu0 0.0
  %2842 = vmatpush1.msra.mxu0 0.0
  %2843 = vmatprep.subr.mxu0 0.0
  %2844 = vmatpush1.msra.mxu0 0.0
  %2845 = vmatprep.subr.mxu0 0.0
  %2846 = vmatpush1.msra.mxu0 0.0
  %2847 = vmatprep.subr.mxu0 0.0
  %2848 = vmatpush1.msra.mxu0 0.0
  %2849 = vmatprep.subr.mxu0 0.0
  %2850 = vmatpush1.msra.mxu0 0.0
  %2851 = vmatprep.subr.mxu0 0.0
  %2852 = vmatpush1.msra.mxu0 0.0
  %2853 = vmatprep.subr.mxu0 0.0
  %2854 = vmatpush1.msra.mxu0 0.0
  %2855 = vmatprep.subr.mxu0 0.0
  %2856 = vmatpush1.msra.mxu0 0.0
  %2857 = vmatprep.subr.mxu0 0.0
  %2858 = vmatpush1.msra.mxu0 0.0
  %2859 = vmatprep.subr.mxu0 0.0
  %2860 = vmatpush1.msra.mxu0 0.0
  %2861 = vmatprep.subr.mxu0 0.0
  %2862 = vmatpush1.msra.mxu0 0.0
  %2863 = vmatprep.subr.mxu0 0.0
  %2864 = vmatpush1.msra.mxu0 0.0
  %2865 = vmatprep.subr.mxu0 0.0
  %2866 = vmatpush1.msra.mxu0 0.0
  %2867 = vmatprep.subr.mxu0 0.0
  %2868 = vmatpush1.msra.mxu0 0.0
  %2869 = vmatprep.subr.mxu0 0.0
  %2870 = vmatpush1.msra.mxu0 0.0
  %2871 = vmatprep.subr.mxu0 0.0
  %2872 = vmatpush1.msra.mxu0 0.0
  %2873 = vmatprep.mubr.f32.mxu0 0.0
  %2874 = vmatmul.mubr.f32.gmra.mrb[0].mxu0 %v2711
  %v2875 = vpop.f32.mrb[0].mxu0
  %v2876 = vadd.f32 0.0, %v2875
  %v2877 = vpop.f32.mrb[0].mxu0
  %2878 = vmatprep.mubr.f32.mxu0 0.0
  %2879 = vmatmul.mubr.f32.gmra.mrb[0].mxu0 %v2714
  %v2880 = vpop.f32.mrb[0].mxu0
  %v2881 = vadd.f32 0.0, %v2880
  %v2882 = vpop.f32.mrb[0].mxu0
  %2883 = vmatprep.mubr.f32.mxu0 0.0
  %2884 = vmatmul.mubr.f32.gmra.mrb[0].mxu0 %v2717
  %v2885 = vpop.f32.mrb[0].mxu0
  %v2886 = vadd.f32 0.0, %v2885
  %v2887 = vpop.f32.mrb[0].mxu0
  %2888 = vmatprep.mubr.f32.mxu0 0.0
  %2889 = vmatmul.mubr.f32.gmra.mrb[0].mxu0 %v2720
  %v2890 = vpop.f32.mrb[0].mxu0
  %v2891 = vadd.f32 0.0, %v2890
  %v2892 = vpop.f32.mrb[0].mxu0
  %2893 = vmatprep.mubr.f32.mxu0 0.0
  %2894 = vmatmul.mubr.f32.gmra.mrb[0].mxu0 %v2723
  %v2895 = vpop.f32.mrb[0].mxu0
  %v2896 = vadd.f32 0.0, %v2895
  %v2897 = vpop.f32.mrb[0].mxu0
  %2898 = vmatprep.mubr.f32.mxu0 0.0
  %2899 = vmatmul.mubr.f32.gmra.mrb[0].mxu0 %v2726
  %v2900 = vpop.f32.mrb[0].mxu0
  %v2901 = vadd.f32 0.0, %v2900
  %v2902 = vpop.f32.mrb[0].mxu0
  %2903 = vmatprep.mubr.f32.mxu0 0.0
  %2904 = vmatmul.mubr.f32.gmra.mrb[0].mxu0 %v2729
  %v2905 = vpop.f32.mrb[0].mxu0
  %v2906 = vadd.f32 0.0, %v2905
  %v2907 = vpop.f32.mrb[0].mxu0
  %2908 = vmatprep.mubr.f32.mxu0 0.0
  %2909 = vmatmul.mubr.f32.gmra.mrb[0].mxu0 %v2732
  %v2910 = vpop.f32.mrb[0].mxu0
  %v2911 = vadd.f32 0.0, %v2910
  %v2912 = vpop.f32.mrb[0].mxu0
  %2913 = vmatprep.mubr.f32.mxu0 0.0
  %2914 = vmatmul.mubr.f32.gmra.mrb[0].mxu0 %v2735
  %v2915 = vpop.f32.mrb[0].mxu0
  %v2916 = vadd.f32 0.0, %v2915
  %v2917 = vpop.f32.mrb[0].mxu0
  %2918 = vmatprep.mubr.f32.mxu0 0.0
  %2919 = vmatmul.mubr.f32.gmra.mrb[0].mxu0 %v2738
  %v2920 = vpop.f32.mrb[0].mxu0
  %v2921 = vadd.f32 0.0, %v2920
  %v2922 = vpop.f32.mrb[0].mxu0
  %2923 = vmatprep.mubr.f32.mxu0 0.0
  %2924 = vmatmul.mubr.f32.gmra.mrb[0].mxu0 %v2741
  %v2925 = vpop.f32.mrb[0].mxu0
  %v2926 = vadd.f32 0.0, %v2925
  %v2927 = vpop.f32.mrb[0].mxu0
  %2928 = vmatprep.mubr.f32.mxu0 0.0
  %2929 = vmatmul.mubr.f32.gmra.mrb[0].mxu0 %v2744
  %v2930 = vpop.f32.mrb[0].mxu0
  %v2931 = vadd.f32 0.0, %v2930
  %v2932 = vpop.f32.mrb[0].mxu0
  %2933 = vmatprep.mubr.f32.mxu0 0.0
  %2934 = vmatmul.mubr.f32.gmra.mrb[0].mxu0 %v2747
  %v2935 = vpop.f32.mrb[0].mxu0
  %v2936 = vadd.f32 0.0, %v2935
  %v2937 = vpop.f32.mrb[0].mxu0
  %2938 = vmatprep.mubr.f32.mxu0 0.0
  %2939 = vmatmul.mubr.f32.gmra.mrb[0].mxu0 %v2750
  %v2940 = vpop.f32.mrb[0].mxu0
  %v2941 = vadd.f32 0.0, %v2940
  %v2942 = vpop.f32.mrb[0].mxu0
  %2943 = vmatprep.mubr.f32.mxu0 0.0
  %2944 = vmatmul.mubr.f32.gmra.mrb[0].mxu0 %v2753
  %v2945 = vpop.f32.mrb[0].mxu0
  %v2946 = vadd.f32 0.0, %v2945
  %v2947 = vpop.f32.mrb[0].mxu0
  %2948 = vmatprep.mubr.f32.mxu0 0.0
  %2949 = vmatmul.mubr.f32.gmra.mrb[0].mxu0 %v2756
  %v2950 = vpop.f32.mrb[0].mxu0
  %v2951 = vadd.f32 0.0, %v2950
  %v2952 = vpop.f32.mrb[0].mxu0
  %2953 = vmatprep.mubr.f32.mxu0 0.0
  %2954 = vmatmul.mubr.f32.gmra.mrb[0].mxu0 %v2759
  %v2955 = vpop.f32.mrb[0].mxu0
  %v2956 = vadd.f32 0.0, %v2955
  %v2957 = vpop.f32.mrb[0].mxu0
  %2958 = vmatprep.mubr.f32.mxu0 0.0
  %2959 = vmatmul.mubr.f32.gmra.mrb[0].mxu0 %v2762
  %v2960 = vpop.f32.mrb[0].mxu0
  %v2961 = vadd.f32 0.0, %v2960
  %v2962 = vpop.f32.mrb[0].mxu0
  %2963 = vmatprep.mubr.f32.mxu0 0.0
  %2964 = vmatmul.mubr.f32.gmra.mrb[0].mxu0 %v2765
  %v2965 = vpop.f32.mrb[0].mxu0
  %v2966 = vadd.f32 0.0, %v2965
  %v2967 = vpop.f32.mrb[0].mxu0
  %2968 = vmatprep.mubr.f32.mxu0 0.0
  %2969 = vmatmul.mubr.f32.gmra.mrb[0].mxu0 %v2768
  %v2970 = vpop.f32.mrb[0].mxu0
  %v2971 = vadd.f32 0.0, %v2970
  %v2972 = vpop.f32.mrb[0].mxu0
  %2973 = vmatprep.mubr.f32.mxu0 0.0
  %2974 = vmatmul.mubr.f32.gmra.mrb[0].mxu0 %v2771
  %v2975 = vpop.f32.mrb[0].mxu0
  %v2976 = vadd.f32 0.0, %v2975
  %v2977 = vpop.f32.mrb[0].mxu0
  %2978 = vmatprep.mubr.f32.mxu0 0.0
  %2979 = vmatmul.mubr.f32.gmra.mrb[0].mxu0 %v2774
  %v2980 = vpop.f32.mrb[0].mxu0
  %v2981 = vadd.f32 0.0, %v2980
  %v2982 = vpop.f32.mrb[0].mxu0
  %2983 = vmatprep.mubr.f32.mxu0 0.0
  %2984 = vmatmul.mubr.f32.gmra.mrb[0].mxu0 %v2777
  %v2985 = vpop.f32.mrb[0].mxu0
  %v2986 = vadd.f32 0.0, %v2985
  %v2987 = vpop.f32.mrb[0].mxu0
  %2988 = vmatprep.mubr.f32.mxu0 0.0
  %2989 = vmatmul.mubr.f32.gmra.mrb[0].mxu0 %v2780
  %v2990 = vpop.f32.mrb[0].mxu0
  %v2991 = vadd.f32 0.0, %v2990
  %v2992 = vpop.f32.mrb[0].mxu0
  %2993 = vmatprep.mubr.f32.mxu0 0.0
  %2994 = vmatmul.mubr.f32.gmra.mrb[0].mxu0 %v2783
  %v2995 = vpop.f32.mrb[0].mxu0
  %v2996 = vadd.f32 0.0, %v2995
  %v2997 = vpop.f32.mrb[0].mxu0
  %2998 = vmatprep.mubr.f32.mxu0 0.0
  %2999 = vmatmul.mubr.f32.gmra.mrb[0].mxu0 %v2786
  %v3000 = vpop.f32.mrb[0].mxu0
  %v3001 = vadd.f32 0.0, %v3000
  %v3002 = vpop.f32.mrb[0].mxu0
  %3003 = vmatprep.mubr.f32.mxu0 0.0
  %3004 = vmatmul.mubr.f32.gmra.mrb[0].mxu0 %v2789
  %v3005 = vpop.f32.mrb[0].mxu0
  %v3006 = vadd.f32 0.0, %v3005
  %v3007 = vpop.f32.mrb[0].mxu0
  %3008 = vmatprep.mubr.f32.mxu0 0.0
  %3009 = vmatmul.mubr.f32.gmra.mrb[0].mxu0 %v2792
  %v3010 = vpop.f32.mrb[0].mxu0
  %v3011 = vadd.f32 0.0, %v3010
  %v3012 = vpop.f32.mrb[0].mxu0
  %3013 = vmatprep.mubr.f32.mxu0 0.0
  %3014 = vmatmul.mubr.f32.gmra.mrb[0].mxu0 %v2795
  %v3015 = vpop.f32.mrb[0].mxu0
  %v3016 = vadd.f32 0.0, %v3015
  %v3017 = vpop.f32.mrb[0].mxu0
  %3018 = vmatprep.mubr.f32.mxu0 0.0
  %3019 = vmatmul.mubr.f32.gmra.mrb[0].mxu0 %v2798
  %v3020 = vpop.f32.mrb[0].mxu0
  %v3021 = vadd.f32 0.0, %v3020
  %v3022 = vpop.f32.mrb[0].mxu0
  %3023 = vmatprep.mubr.f32.mxu0 0.0
  %3024 = vmatmul.mubr.f32.gmra.mrb[0].mxu0 %v2801
  %v3025 = vpop.f32.mrb[0].mxu0
  %v3026 = vadd.f32 0.0, %v3025
  %v3027 = vpop.f32.mrb[0].mxu0
  %3028 = vmatprep.mubr.f32.mxu0 0.0
  %3029 = vmatmul.mubr.f32.gmra.mrb[0].mxu0 %v2804
  %v3030 = vpop.f32.mrb[0].mxu0
  %v3031 = vadd.f32 0.0, %v3030
  %v3032 = vpop.f32.mrb[0].mxu0
  %3033 = vdwg.mxu0
  %v3034 = vadd.f32 %v2645, %v2876
  %v3035 = vadd.f32 %v2646, %v2881
  %v3036 = vadd.f32 %v2647, %v2886
  %v3037 = vadd.f32 %v2648, %v2891
  %v3038 = vadd.f32 %v2649, %v2896
  %v3039 = vadd.f32 %v2650, %v2901
  %v3040 = vadd.f32 %v2651, %v2906
  %v3041 = vadd.f32 %v2652, %v2911
  %v3042 = vadd.f32 %v2653, %v2916
  %v3043 = vadd.f32 %v2654, %v2921
  %v3044 = vadd.f32 %v2655, %v2926
  %v3045 = vadd.f32 %v2656, %v2931
  %v3046 = vadd.f32 %v2657, %v2936
  %v3047 = vadd.f32 %v2658, %v2941
  %v3048 = vadd.f32 %v2659, %v2946
  %v3049 = vadd.f32 %v2660, %v2951
  %v3050 = vadd.f32 %v2661, %v2956
  %v3051 = vadd.f32 %v2662, %v2961
  %v3052 = vadd.f32 %v2663, %v2966
  %v3053 = vadd.f32 %v2664, %v2971
  %v3054 = vadd.f32 %v2665, %v2976
  %v3055 = vadd.f32 %v2666, %v2981
  %v3056 = vadd.f32 %v2667, %v2986
  %v3057 = vadd.f32 %v2668, %v2991
  %v3058 = vadd.f32 %v2669, %v2996
  %v3059 = vadd.f32 %v2670, %v3001
  %v3060 = vadd.f32 %v2671, %v3006
  %v3061 = vadd.f32 %v2672, %v3011
  %v3062 = vadd.f32 %v2673, %v3016
  %v3063 = vadd.f32 %v2674, %v3021
  %v3064 = vadd.f32 %v2675, %v3026
  %v3065 = vadd.f32 %v2676, %v3031
  %v3066 = vld [vmem:[%s2287 + $0x2] sm:$0xff]
  %v3067 = vld [vmem:[%s2287 + $0xa] sm:$0xff]
  %v3068 = vld [vmem:[%s2287 + $0x1a] sm:$0xff]
  %v3069 = vld [vmem:[%s2287 + $0x22] sm:$0xff]
  %v3070 = vld [vmem:[%s2287 + $0x32] sm:$0xff]
  %v3071 = vld [vmem:[%s2287 + $0x3a] sm:$0xff]
  %v3072 = vld [vmem:[%s2287 + $0x4a] sm:$0xff]
  %v3073 = vld [vmem:[%s2287 + $0x52] sm:$0xff]
  %v3074 = vld [vmem:[%s2287 + $0x62] sm:$0xff]
  %v3075 = vld [vmem:[%s2287 + $0x6a] sm:$0xff]
  %v3076 = vld [vmem:[%s2287 + $0x7a] sm:$0xff]
  %v3077 = vld [vmem:[%s2287 + $0x82] sm:$0xff]
  %v3078 = vld [vmem:[%s2287 + $0x92] sm:$0xff]
  %v3079 = vld [vmem:[%s2287 + $0x9a] sm:$0xff]
  %v3080 = vld [vmem:[%s2287 + $0xaa] sm:$0xff]
  %v3081 = vld [vmem:[%s2287 + $0xb2] sm:$0xff]
  %v3082 = vld [vmem:[%s2287 + $0xc2] sm:$0xff]
  %v3083 = vld [vmem:[%s2287 + $0xca] sm:$0xff]
  %v3084 = vld [vmem:[%s2287 + $0xda] sm:$0xff]
  %v3085 = vld [vmem:[%s2287 + $0xe2] sm:$0xff]
  %v3086 = vld [vmem:[%s2287 + $0xf2] sm:$0xff]
  %v3087 = vld [vmem:[%s2287 + $0xfa] sm:$0xff]
  %v3088 = vld [vmem:[%s2287 + $0x10a] sm:$0xff]
  %v3089 = vld [vmem:[%s2287 + $0x112] sm:$0xff]
  %v3090 = vld [vmem:[%s2287 + $0x122] sm:$0xff]
  %v3091 = vld [vmem:[%s2287 + $0x12a] sm:$0xff]
  %v3092 = vld [vmem:[%s2287 + $0x13a] sm:$0xff]
  %v3093 = vld [vmem:[%s2287 + $0x142] sm:$0xff]
  %v3094 = vld [vmem:[%s2287 + $0x152] sm:$0xff]
  %v3095 = vld [vmem:[%s2287 + $0x15a] sm:$0xff]
  %v3096 = vld [vmem:[%s2287 + $0x16a] sm:$0xff]
  %v3097 = vld [vmem:[%s2287 + $0x172] sm:$0xff]
  %v3098 = vld [vmem:[%s1 + $0x20] sm:$0xf]
  %v3100 = vsel %vm80, %v3066, 0
  %v3103 = vsel %vm80, %v3067, 0
  %v3106 = vsel %vm80, %v3068, 0
  %v3109 = vsel %vm80, %v3069, 0
  %v3112 = vsel %vm80, %v3070, 0
  %v3115 = vsel %vm80, %v3071, 0
  %v3118 = vsel %vm80, %v3072, 0
  %v3121 = vsel %vm80, %v3073, 0
  %v3124 = vsel %vm80, %v3074, 0
  %v3127 = vsel %vm80, %v3075, 0
  %v3130 = vsel %vm80, %v3076, 0
  %v3133 = vsel %vm80, %v3077, 0
  %v3136 = vsel %vm80, %v3078, 0
  %v3139 = vsel %vm80, %v3079, 0
  %v3142 = vsel %vm80, %v3080, 0
  %v3145 = vsel %vm80, %v3081, 0
  %v3148 = vsel %vm80, %v3082, 0
  %v3151 = vsel %vm80, %v3083, 0
  %v3154 = vsel %vm80, %v3084, 0
  %v3157 = vsel %vm80, %v3085, 0
  %v3160 = vsel %vm80, %v3086, 0
  %v3163 = vsel %vm80, %v3087, 0
  %v3166 = vsel %vm80, %v3088, 0
  %v3169 = vsel %vm80, %v3089, 0
  %v3172 = vsel %vm80, %v3090, 0
  %v3175 = vsel %vm80, %v3091, 0
  %v3178 = vsel %vm80, %v3092, 0
  %v3181 = vsel %vm80, %v3093, 0
  %v3184 = vsel %vm80, %v3094, 0
  %v3187 = vsel %vm80, %v3095, 0
  %v3190 = vsel %vm80, %v3096, 0
  %v3193 = vsel %vm80, %v3097, 0
  %v3196 = vsel %vm177, %v3098, 0
  %3198 = vmatprep.subr.mxu0 0.0
  %3199 = vmatpush1.msra.mxu0 %v3196
  %3200 = vmatprep.subr.mxu0 0.0
  %3201 = vmatpush1.msra.mxu0 0.0
  %3202 = vmatprep.subr.mxu0 0.0
  %3203 = vmatpush1.msra.mxu0 0.0
  %3204 = vmatprep.subr.mxu0 0.0
  %3205 = vmatpush1.msra.mxu0 0.0
  %3206 = vmatprep.subr.mxu0 0.0
  %3207 = vmatpush1.msra.mxu0 0.0
  %3208 = vmatprep.subr.mxu0 0.0
  %3209 = vmatpush1.msra.mxu0 0.0
  %3210 = vmatprep.subr.mxu0 0.0
  %3211 = vmatpush1.msra.mxu0 0.0
  %3212 = vmatprep.subr.mxu0 0.0
  %3213 = vmatpush1.msra.mxu0 0.0
  %3214 = vmatprep.subr.mxu0 0.0
  %3215 = vmatpush1.msra.mxu0 0.0
  %3216 = vmatprep.subr.mxu0 0.0
  %3217 = vmatpush1.msra.mxu0 0.0
  %3218 = vmatprep.subr.mxu0 0.0
  %3219 = vmatpush1.msra.mxu0 0.0
  %3220 = vmatprep.subr.mxu0 0.0
  %3221 = vmatpush1.msra.mxu0 0.0
  %3222 = vmatprep.subr.mxu0 0.0
  %3223 = vmatpush1.msra.mxu0 0.0
  %3224 = vmatprep.subr.mxu0 0.0
  %3225 = vmatpush1.msra.mxu0 0.0
  %3226 = vmatprep.subr.mxu0 0.0
  %3227 = vmatpush1.msra.mxu0 0.0
  %3228 = vmatprep.subr.mxu0 0.0
  %3229 = vmatpush1.msra.mxu0 0.0
  %3230 = vmatprep.subr.mxu0 0.0
  %3231 = vmatpush1.msra.mxu0 0.0
  %3232 = vmatprep.subr.mxu0 0.0
  %3233 = vmatpush1.msra.mxu0 0.0
  %3234 = vmatprep.subr.mxu0 0.0
  %3235 = vmatpush1.msra.mxu0 0.0
  %3236 = vmatprep.subr.mxu0 0.0
  %3237 = vmatpush1.msra.mxu0 0.0
  %3238 = vmatprep.subr.mxu0 0.0
  %3239 = vmatpush1.msra.mxu0 0.0
  %3240 = vmatprep.subr.mxu0 0.0
  %3241 = vmatpush1.msra.mxu0 0.0
  %3242 = vmatprep.subr.mxu0 0.0
  %3243 = vmatpush1.msra.mxu0 0.0
  %3244 = vmatprep.subr.mxu0 0.0
  %3245 = vmatpush1.msra.mxu0 0.0
  %3246 = vmatprep.subr.mxu0 0.0
  %3247 = vmatpush1.msra.mxu0 0.0
  %3248 = vmatprep.subr.mxu0 0.0
  %3249 = vmatpush1.msra.mxu0 0.0
  %3250 = vmatprep.subr.mxu0 0.0
  %3251 = vmatpush1.msra.mxu0 0.0
  %3252 = vmatprep.subr.mxu0 0.0
  %3253 = vmatpush1.msra.mxu0 0.0
  %3254 = vmatprep.subr.mxu0 0.0
  %3255 = vmatpush1.msra.mxu0 0.0
  %3256 = vmatprep.subr.mxu0 0.0
  %3257 = vmatpush1.msra.mxu0 0.0
  %3258 = vmatprep.subr.mxu0 0.0
  %3259 = vmatpush1.msra.mxu0 0.0
  %3260 = vmatprep.subr.mxu0 0.0
  %3261 = vmatpush1.msra.mxu0 0.0
  %3262 = vmatprep.mubr.f32.mxu0 0.0
  %3263 = vmatmul.mubr.f32.gmra.mrb[0].mxu0 %v3100
  %v3264 = vpop.f32.mrb[0].mxu0
  %v3265 = vadd.f32 0.0, %v3264
  %v3266 = vpop.f32.mrb[0].mxu0
  %3267 = vmatprep.mubr.f32.mxu0 0.0
  %3268 = vmatmul.mubr.f32.gmra.mrb[0].mxu0 %v3103
  %v3269 = vpop.f32.mrb[0].mxu0
  %v3270 = vadd.f32 0.0, %v3269
  %v3271 = vpop.f32.mrb[0].mxu0
  %3272 = vmatprep.mubr.f32.mxu0 0.0
  %3273 = vmatmul.mubr.f32.gmra.mrb[0].mxu0 %v3106
  %v3274 = vpop.f32.mrb[0].mxu0
  %v3275 = vadd.f32 0.0, %v3274
  %v3276 = vpop.f32.mrb[0].mxu0
  %3277 = vmatprep.mubr.f32.mxu0 0.0
  %3278 = vmatmul.mubr.f32.gmra.mrb[0].mxu0 %v3109
  %v3279 = vpop.f32.mrb[0].mxu0
  %v3280 = vadd.f32 0.0, %v3279
  %v3281 = vpop.f32.mrb[0].mxu0
  %3282 = vmatprep.mubr.f32.mxu0 0.0
  %3283 = vmatmul.mubr.f32.gmra.mrb[0].mxu0 %v3112
  %v3284 = vpop.f32.mrb[0].mxu0
  %v3285 = vadd.f32 0.0, %v3284
  %v3286 = vpop.f32.mrb[0].mxu0
  %3287 = vmatprep.mubr.f32.mxu0 0.0
  %3288 = vmatmul.mubr.f32.gmra.mrb[0].mxu0 %v3115
  %v3289 = vpop.f32.mrb[0].mxu0
  %v3290 = vadd.f32 0.0, %v3289
  %v3291 = vpop.f32.mrb[0].mxu0
  %3292 = vmatprep.mubr.f32.mxu0 0.0
  %3293 = vmatmul.mubr.f32.gmra.mrb[0].mxu0 %v3118
  %v3294 = vpop.f32.mrb[0].mxu0
  %v3295 = vadd.f32 0.0, %v3294
  %v3296 = vpop.f32.mrb[0].mxu0
  %3297 = vmatprep.mubr.f32.mxu0 0.0
  %3298 = vmatmul.mubr.f32.gmra.mrb[0].mxu0 %v3121
  %v3299 = vpop.f32.mrb[0].mxu0
  %v3300 = vadd.f32 0.0, %v3299
  %v3301 = vpop.f32.mrb[0].mxu0
  %3302 = vmatprep.mubr.f32.mxu0 0.0
  %3303 = vmatmul.mubr.f32.gmra.mrb[0].mxu0 %v3124
  %v3304 = vpop.f32.mrb[0].mxu0
  %v3305 = vadd.f32 0.0, %v3304
  %v3306 = vpop.f32.mrb[0].mxu0
  %3307 = vmatprep.mubr.f32.mxu0 0.0
  %3308 = vmatmul.mubr.f32.gmra.mrb[0].mxu0 %v3127
  %v3309 = vpop.f32.mrb[0].mxu0
  %v3310 = vadd.f32 0.0, %v3309
  %v3311 = vpop.f32.mrb[0].mxu0
  %3312 = vmatprep.mubr.f32.mxu0 0.0
  %3313 = vmatmul.mubr.f32.gmra.mrb[0].mxu0 %v3130
  %v3314 = vpop.f32.mrb[0].mxu0
  %v3315 = vadd.f32 0.0, %v3314
  %v3316 = vpop.f32.mrb[0].mxu0
  %3317 = vmatprep.mubr.f32.mxu0 0.0
  %3318 = vmatmul.mubr.f32.gmra.mrb[0].mxu0 %v3133
  %v3319 = vpop.f32.mrb[0].mxu0
  %v3320 = vadd.f32 0.0, %v3319
  %v3321 = vpop.f32.mrb[0].mxu0
  %3322 = vmatprep.mubr.f32.mxu0 0.0
  %3323 = vmatmul.mubr.f32.gmra.mrb[0].mxu0 %v3136
  %v3324 = vpop.f32.mrb[0].mxu0
  %v3325 = vadd.f32 0.0, %v3324
  %v3326 = vpop.f32.mrb[0].mxu0
  %3327 = vmatprep.mubr.f32.mxu0 0.0
  %3328 = vmatmul.mubr.f32.gmra.mrb[0].mxu0 %v3139
  %v3329 = vpop.f32.mrb[0].mxu0
  %v3330 = vadd.f32 0.0, %v3329
  %v3331 = vpop.f32.mrb[0].mxu0
  %3332 = vmatprep.mubr.f32.mxu0 0.0
  %3333 = vmatmul.mubr.f32.gmra.mrb[0].mxu0 %v3142
  %v3334 = vpop.f32.mrb[0].mxu0
  %v3335 = vadd.f32 0.0, %v3334
  %v3336 = vpop.f32.mrb[0].mxu0
  %3337 = vmatprep.mubr.f32.mxu0 0.0
  %3338 = vmatmul.mubr.f32.gmra.mrb[0].mxu0 %v3145
  %v3339 = vpop.f32.mrb[0].mxu0
  %v3340 = vadd.f32 0.0, %v3339
  %v3341 = vpop.f32.mrb[0].mxu0
  %3342 = vmatprep.mubr.f32.mxu0 0.0
  %3343 = vmatmul.mubr.f32.gmra.mrb[0].mxu0 %v3148
  %v3344 = vpop.f32.mrb[0].mxu0
  %v3345 = vadd.f32 0.0, %v3344
  %v3346 = vpop.f32.mrb[0].mxu0
  %3347 = vmatprep.mubr.f32.mxu0 0.0
  %3348 = vmatmul.mubr.f32.gmra.mrb[0].mxu0 %v3151
  %v3349 = vpop.f32.mrb[0].mxu0
  %v3350 = vadd.f32 0.0, %v3349
  %v3351 = vpop.f32.mrb[0].mxu0
  %3352 = vmatprep.mubr.f32.mxu0 0.0
  %3353 = vmatmul.mubr.f32.gmra.mrb[0].mxu0 %v3154
  %v3354 = vpop.f32.mrb[0].mxu0
  %v3355 = vadd.f32 0.0, %v3354
  %v3356 = vpop.f32.mrb[0].mxu0
  %3357 = vmatprep.mubr.f32.mxu0 0.0
  %3358 = vmatmul.mubr.f32.gmra.mrb[0].mxu0 %v3157
  %v3359 = vpop.f32.mrb[0].mxu0
  %v3360 = vadd.f32 0.0, %v3359
  %v3361 = vpop.f32.mrb[0].mxu0
  %3362 = vmatprep.mubr.f32.mxu0 0.0
  %3363 = vmatmul.mubr.f32.gmra.mrb[0].mxu0 %v3160
  %v3364 = vpop.f32.mrb[0].mxu0
  %v3365 = vadd.f32 0.0, %v3364
  %v3366 = vpop.f32.mrb[0].mxu0
  %3367 = vmatprep.mubr.f32.mxu0 0.0
  %3368 = vmatmul.mubr.f32.gmra.mrb[0].mxu0 %v3163
  %v3369 = vpop.f32.mrb[0].mxu0
  %v3370 = vadd.f32 0.0, %v3369
  %v3371 = vpop.f32.mrb[0].mxu0
  %3372 = vmatprep.mubr.f32.mxu0 0.0
  %3373 = vmatmul.mubr.f32.gmra.mrb[0].mxu0 %v3166
  %v3374 = vpop.f32.mrb[0].mxu0
  %v3375 = vadd.f32 0.0, %v3374
  %v3376 = vpop.f32.mrb[0].mxu0
  %3377 = vmatprep.mubr.f32.mxu0 0.0
  %3378 = vmatmul.mubr.f32.gmra.mrb[0].mxu0 %v3169
  %v3379 = vpop.f32.mrb[0].mxu0
  %v3380 = vadd.f32 0.0, %v3379
  %v3381 = vpop.f32.mrb[0].mxu0
  %3382 = vmatprep.mubr.f32.mxu0 0.0
  %3383 = vmatmul.mubr.f32.gmra.mrb[0].mxu0 %v3172
  %v3384 = vpop.f32.mrb[0].mxu0
  %v3385 = vadd.f32 0.0, %v3384
  %v3386 = vpop.f32.mrb[0].mxu0
  %3387 = vmatprep.mubr.f32.mxu0 0.0
  %3388 = vmatmul.mubr.f32.gmra.mrb[0].mxu0 %v3175
  %v3389 = vpop.f32.mrb[0].mxu0
  %v3390 = vadd.f32 0.0, %v3389
  %v3391 = vpop.f32.mrb[0].mxu0
  %3392 = vmatprep.mubr.f32.mxu0 0.0
  %3393 = vmatmul.mubr.f32.gmra.mrb[0].mxu0 %v3178
  %v3394 = vpop.f32.mrb[0].mxu0
  %v3395 = vadd.f32 0.0, %v3394
  %v3396 = vpop.f32.mrb[0].mxu0
  %3397 = vmatprep.mubr.f32.mxu0 0.0
  %3398 = vmatmul.mubr.f32.gmra.mrb[0].mxu0 %v3181
  %v3399 = vpop.f32.mrb[0].mxu0
  %v3400 = vadd.f32 0.0, %v3399
  %v3401 = vpop.f32.mrb[0].mxu0
  %3402 = vmatprep.mubr.f32.mxu0 0.0
  %3403 = vmatmul.mubr.f32.gmra.mrb[0].mxu0 %v3184
  %v3404 = vpop.f32.mrb[0].mxu0
  %v3405 = vadd.f32 0.0, %v3404
  %v3406 = vpop.f32.mrb[0].mxu0
  %3407 = vmatprep.mubr.f32.mxu0 0.0
  %3408 = vmatmul.mubr.f32.gmra.mrb[0].mxu0 %v3187
  %v3409 = vpop.f32.mrb[0].mxu0
  %v3410 = vadd.f32 0.0, %v3409
  %v3411 = vpop.f32.mrb[0].mxu0
  %3412 = vmatprep.mubr.f32.mxu0 0.0
  %3413 = vmatmul.mubr.f32.gmra.mrb[0].mxu0 %v3190
  %v3414 = vpop.f32.mrb[0].mxu0
  %v3415 = vadd.f32 0.0, %v3414
  %v3416 = vpop.f32.mrb[0].mxu0
  %3417 = vmatprep.mubr.f32.mxu0 0.0
  %3418 = vmatmul.mubr.f32.gmra.mrb[0].mxu0 %v3193
  %v3419 = vpop.f32.mrb[0].mxu0
  %v3420 = vadd.f32 0.0, %v3419
  %v3421 = vpop.f32.mrb[0].mxu0
  %3422 = vdwg.mxu0
  %v3423 = vadd.f32 %v3034, %v3265
  %v3424 = vadd.f32 %v3035, %v3270
  %v3425 = vadd.f32 %v3036, %v3275
  %v3426 = vadd.f32 %v3037, %v3280
  %v3427 = vadd.f32 %v3038, %v3285
  %v3428 = vadd.f32 %v3039, %v3290
  %v3429 = vadd.f32 %v3040, %v3295
  %v3430 = vadd.f32 %v3041, %v3300
  %v3431 = vadd.f32 %v3042, %v3305
  %v3432 = vadd.f32 %v3043, %v3310
  %v3433 = vadd.f32 %v3044, %v3315
  %v3434 = vadd.f32 %v3045, %v3320
  %v3435 = vadd.f32 %v3046, %v3325
  %v3436 = vadd.f32 %v3047, %v3330
  %v3437 = vadd.f32 %v3048, %v3335
  %v3438 = vadd.f32 %v3049, %v3340
  %v3439 = vadd.f32 %v3050, %v3345
  %v3440 = vadd.f32 %v3051, %v3350
  %v3441 = vadd.f32 %v3052, %v3355
  %v3442 = vadd.f32 %v3053, %v3360
  %v3443 = vadd.f32 %v3054, %v3365
  %v3444 = vadd.f32 %v3055, %v3370
  %v3445 = vadd.f32 %v3056, %v3375
  %v3446 = vadd.f32 %v3057, %v3380
  %v3447 = vadd.f32 %v3058, %v3385
  %v3448 = vadd.f32 %v3059, %v3390
  %v3449 = vadd.f32 %v3060, %v3395
  %v3450 = vadd.f32 %v3061, %v3400
  %v3451 = vadd.f32 %v3062, %v3405
  %v3452 = vadd.f32 %v3063, %v3410
  %v3453 = vadd.f32 %v3064, %v3415
  %v3454 = vadd.f32 %v3065, %v3420
  %v3455 = vld [vmem:[%s2] sm:$0x1]
  %v3457 = vlaneseq
  %v3458 = vshrl.u32 %v3457, 7
  %v3459 = vsub.s32 0, %v3458
  %v3460 = vrot.slane %v3455, %v3459
  %v3462 = vadd.f32 %v3423, %v3460
  %v3463 = vadd.f32 %v3424, %v3460
  %v3464 = vadd.f32 %v3425, %v3460
  %v3465 = vadd.f32 %v3426, %v3460
  %v3466 = vadd.f32 %v3427, %v3460
  %v3467 = vadd.f32 %v3428, %v3460
  %v3468 = vadd.f32 %v3429, %v3460
  %v3469 = vadd.f32 %v3430, %v3460
  %v3470 = vadd.f32 %v3431, %v3460
  %v3471 = vadd.f32 %v3432, %v3460
  %v3472 = vadd.f32 %v3433, %v3460
  %v3473 = vadd.f32 %v3434, %v3460
  %v3474 = vadd.f32 %v3435, %v3460
  %v3475 = vadd.f32 %v3436, %v3460
  %v3476 = vadd.f32 %v3437, %v3460
  %v3477 = vadd.f32 %v3438, %v3460
  %v3478 = vadd.f32 %v3439, %v3460
  %v3479 = vadd.f32 %v3440, %v3460
  %v3480 = vadd.f32 %v3441, %v3460
  %v3481 = vadd.f32 %v3442, %v3460
  %v3482 = vadd.f32 %v3443, %v3460
  %v3483 = vadd.f32 %v3444, %v3460
  %v3484 = vadd.f32 %v3445, %v3460
  %v3485 = vadd.f32 %v3446, %v3460
  %v3486 = vadd.f32 %v3447, %v3460
  %v3487 = vadd.f32 %v3448, %v3460
  %v3488 = vadd.f32 %v3449, %v3460
  %v3489 = vadd.f32 %v3450, %v3460
  %v3490 = vadd.f32 %v3451, %v3460
  %v3491 = vadd.f32 %v3452, %v3460
  %v3492 = vadd.f32 %v3453, %v3460
  %v3493 = vadd.f32 %v3454, %v3460
  %v3494 = vmax.f32 %v3462, 0.0
  %v3495 = vmax.f32 %v3463, 0.0
  %v3496 = vmax.f32 %v3464, 0.0
  %v3497 = vmax.f32 %v3465, 0.0
  %v3498 = vmax.f32 %v3466, 0.0
  %v3499 = vmax.f32 %v3467, 0.0
  %v3500 = vmax.f32 %v3468, 0.0
  %v3501 = vmax.f32 %v3469, 0.0
  %v3502 = vmax.f32 %v3470, 0.0
  %v3503 = vmax.f32 %v3471, 0.0
  %v3504 = vmax.f32 %v3472, 0.0
  %v3505 = vmax.f32 %v3473, 0.0
  %v3506 = vmax.f32 %v3474, 0.0
  %v3507 = vmax.f32 %v3475, 0.0
  %v3508 = vmax.f32 %v3476, 0.0
  %v3509 = vmax.f32 %v3477, 0.0
  %v3510 = vmax.f32 %v3478, 0.0
  %v3511 = vmax.f32 %v3479, 0.0
  %v3512 = vmax.f32 %v3480, 0.0
  %v3513 = vmax.f32 %v3481, 0.0
  %v3514 = vmax.f32 %v3482, 0.0
  %v3515 = vmax.f32 %v3483, 0.0
  %v3516 = vmax.f32 %v3484, 0.0
  %v3517 = vmax.f32 %v3485, 0.0
  %v3518 = vmax.f32 %v3486, 0.0
  %v3519 = vmax.f32 %v3487, 0.0
  %v3520 = vmax.f32 %v3488, 0.0
  %v3521 = vmax.f32 %v3489, 0.0
  %v3522 = vmax.f32 %v3490, 0.0
  %v3523 = vmax.f32 %v3491, 0.0
  %v3524 = vmax.f32 %v3492, 0.0
  %v3525 = vmax.f32 %v3493, 0.0
  %vm3526 = vcmask 130048
  %3527 = vst.msk [vmem:[%s3] sm:$0xff] %vm3526, %v3494
  %3528 = vst.msk [vmem:[%s3 + $0x8] sm:$0xff] %vm3526, %v3495
  %3529 = vst.msk [vmem:[%s3 + $0x10] sm:$0xff] %vm3526, %v3496
  %3530 = vst.msk [vmem:[%s3 + $0x18] sm:$0xff] %vm3526, %v3497
  %3531 = vst.msk [vmem:[%s3 + $0x20] sm:$0xff] %vm3526, %v3498
  %3532 = vst.msk [vmem:[%s3 + $0x28] sm:$0xff] %vm3526, %v3499
  %3533 = vst.msk [vmem:[%s3 + $0x30] sm:$0xff] %vm3526, %v3500
  %3534 = vst.msk [vmem:[%s3 + $0x38] sm:$0xff] %vm3526, %v3501
  %3535 = vst.msk [vmem:[%s3 + $0x40] sm:$0xff] %vm3526, %v3502
  %3536 = vst.msk [vmem:[%s3 + $0x48] sm:$0xff] %vm3526, %v3503
  %3537 = vst.msk [vmem:[%s3 + $0x50] sm:$0xff] %vm3526, %v3504
  %3538 = vst.msk [vmem:[%s3 + $0x58] sm:$0xff] %vm3526, %v3505
  %3539 = vst.msk [vmem:[%s3 + $0x60] sm:$0xff] %vm3526, %v3506
  %3540 = vst.msk [vmem:[%s3 + $0x68] sm:$0xff] %vm3526, %v3507
  %3541 = vst.msk [vmem:[%s3 + $0x70] sm:$0xff] %vm3526, %v3508
  %3542 = vst.msk [vmem:[%s3 + $0x78] sm:$0xff] %vm3526, %v3509
  %3543 = vst.msk [vmem:[%s3 + $0x80] sm:$0xff] %vm3526, %v3510
  %3544 = vst.msk [vmem:[%s3 + $0x88] sm:$0xff] %vm3526, %v3511
  %3545 = vst.msk [vmem:[%s3 + $0x90] sm:$0xff] %vm3526, %v3512
  %3546 = vst.msk [vmem:[%s3 + $0x98] sm:$0xff] %vm3526, %v3513
  %3547 = vst.msk [vmem:[%s3 + $0xa0] sm:$0xff] %vm3526, %v3514
  %3548 = vst.msk [vmem:[%s3 + $0xa8] sm:$0xff] %vm3526, %v3515
  %3549 = vst.msk [vmem:[%s3 + $0xb0] sm:$0xff] %vm3526, %v3516
  %3550 = vst.msk [vmem:[%s3 + $0xb8] sm:$0xff] %vm3526, %v3517
  %3551 = vst.msk [vmem:[%s3 + $0xc0] sm:$0xff] %vm3526, %v3518
  %3552 = vst.msk [vmem:[%s3 + $0xc8] sm:$0xff] %vm3526, %v3519
  %3553 = vst.msk [vmem:[%s3 + $0xd0] sm:$0xff] %vm3526, %v3520
  %3554 = vst.msk [vmem:[%s3 + $0xd8] sm:$0xff] %vm3526, %v3521
  %3555 = vst.msk [vmem:[%s3 + $0xe0] sm:$0xff] %vm3526, %v3522
  %3556 = vst.msk [vmem:[%s3 + $0xe8] sm:$0xff] %vm3526, %v3523
  %3557 = vst.msk [vmem:[%s3 + $0xf0] sm:$0xff] %vm3526, %v3524
  %3558 = vst.msk [vmem:[%s3 + $0xf8] sm:$0xff] %vm3526, %v3525
  // Predicated region
  $region14: #{faster_rcnn_forward.3} parent=0 // pred_check
    _
  $region15: #{faster_rcnn_forward.3} parent=0 // pred_check_branch
    %3560 = sbr.rel (0) target = $region17
  $region16: #{faster_rcnn_forward.3} parent=0 // pred_region
    _
  $region17: #{faster_rcnn_forward.3} parent=0 // pred_fallthru
    _
  // Predicated region
  $region18: #{faster_rcnn_forward.3} parent=0 // pred_check
    _
  $region19: #{faster_rcnn_forward.3} parent=0 // pred_check_branch
    %3562 = sbr.rel (0) target = $region21
  $region20: #{faster_rcnn_forward.3} parent=0 // pred_region
    _
  $region21: #{faster_rcnn_forward.3} parent=0 // pred_fallthru
    _

// kernel: faster_rcnn_forward.5
$region0: #{faster_rcnn_forward.5}
  #allocation0 [shape = 'u32[]', space=smem, size = 0x4, offset = 0x4, fixed_abs, tag = 'smem constant byte address 0x4 - core index']
  #allocation1 [shape = 'u32[144,128]{1,0:T(1,128)}', space=vmem, size = 0x12000, scoped, tag = 'internal scratch']
  %s0 = inlined_call_operand.vmem [shape: f32[16,64], index: 0, kind: input, shape index: {}]
  %s1 = inlined_call_operand.vmem [shape: f32[64,32], index: 1, kind: input, shape index: {}]
  %s2 = inlined_call_operand.vmem [shape: f32[1,32], index: 2, kind: input, shape index: {}]
  %s3 = inlined_call_operand.vmem [shape: f32[32,32], index: 3, kind: input, shape index: {}]
  %s4 = inlined_call_operand.vmem [shape: f32[1,32], index: 4, kind: input, shape index: {}]
  %s5 = inlined_call_operand.vmem [shape: f32[32,25], index: 5, kind: input, shape index: {}]
  %s6 = inlined_call_operand.vmem [shape: f32[1,25], index: 6, kind: input, shape index: {}]
  %s7 = inlined_call_operand.vmem [shape: f32[16,25], index: 7, kind: output, shape index: {}]
  %s8 = sld [smem:[#allocation0]]
  $region38: #{faster_rcnn_forward.5} parent=0
    _
  %s10 = ssub.s32 1, %s8
  %s11 = scalar_select 0, %s10, %s8
  // Predicated region
  $region2: #{faster_rcnn_forward.5} parent=0 // pred_check
    _
  $region3: #{faster_rcnn_forward.5} parent=0 // pred_check_branch
    %13 = sbr.rel (0) target = $region5
  $region4: #{faster_rcnn_forward.5} parent=0 // pred_region
    _
  $region5: #{faster_rcnn_forward.5} parent=0 // pred_fallthru
    _
  // Predicated region
  $region6: #{faster_rcnn_forward.5} parent=0 // pred_check
    _
  $region7: #{faster_rcnn_forward.5} parent=0 // pred_check_branch
    %15 = sbr.rel (0) target = $region9
  $region8: #{faster_rcnn_forward.5} parent=0 // pred_region
    _
  $region9: #{faster_rcnn_forward.5} parent=0 // pred_fallthru
    _
  // Predicated region
  $region10: #{faster_rcnn_forward.5} parent=0 // pred_check
    _
  $region11: #{faster_rcnn_forward.5} parent=0 // pred_check_branch
    %17 = sbr.rel (0) target = $region13
  $region12: #{faster_rcnn_forward.5} parent=0 // pred_region
    _
  $region13: #{faster_rcnn_forward.5} parent=0 // pred_fallthru
    _
  // Predicated region
  $region14: #{faster_rcnn_forward.5} parent=0 // pred_check
    _
  $region15: #{faster_rcnn_forward.5} parent=0 // pred_check_branch
    %19 = sbr.rel (0) target = $region17
  $region16: #{faster_rcnn_forward.5} parent=0 // pred_region
    _
  $region17: #{faster_rcnn_forward.5} parent=0 // pred_fallthru
    _
  // Predicated region
  $region18: #{faster_rcnn_forward.5} parent=0 // pred_check
    _
  $region19: #{faster_rcnn_forward.5} parent=0 // pred_check_branch
    %21 = sbr.rel (0) target = $region21
  $region20: #{faster_rcnn_forward.5} parent=0 // pred_region
    _
  $region21: #{faster_rcnn_forward.5} parent=0 // pred_fallthru
    _
  // Predicated region
  $region22: #{faster_rcnn_forward.5} parent=0 // pred_check
    _
  $region23: #{faster_rcnn_forward.5} parent=0 // pred_check_branch
    %23 = sbr.rel (0) target = $region25
  $region24: #{faster_rcnn_forward.5} parent=0 // pred_region
    _
  $region25: #{faster_rcnn_forward.5} parent=0 // pred_fallthru
    _
  // Predicated region
  $region26: #{faster_rcnn_forward.5} parent=0 // pred_check
    _
  $region27: #{faster_rcnn_forward.5} parent=0 // pred_check_branch
    %25 = sbr.rel (0) target = $region29
  $region28: #{faster_rcnn_forward.5} parent=0 // pred_region
    _
  $region29: #{faster_rcnn_forward.5} parent=0 // pred_fallthru
    _
  %v26 = vld [vmem:[%s0] sm:$0xff]
  %v27 = vld [vmem:[%s0 + $0x8] sm:$0xff]
  %v28 = vld [vmem:[%s1] sm:$0xff]
  %v29 = vld [vmem:[%s1 + $0x8] sm:$0xff]
  %v30 = vld [vmem:[%s1 + $0x10] sm:$0xff]
  %v31 = vld [vmem:[%s1 + $0x18] sm:$0xff]
  %v32 = vld [vmem:[%s1 + $0x20] sm:$0xff]
  %v33 = vld [vmem:[%s1 + $0x28] sm:$0xff]
  %v34 = vld [vmem:[%s1 + $0x30] sm:$0xff]
  %v35 = vld [vmem:[%s1 + $0x38] sm:$0xff]
  %v36 = vld [vmem:[%s2] sm:$0x1]
  %v38 = vlaneseq
  %v39 = vshrl.u32 %v38, 7
  %v40 = vsub.s32 0, %v39
  %v41 = vrot.slane %v36, %v40
  %vm43 = vcmask 523264
  %v45 = vsel %vm43, %v26, 0
  %v48 = vsel %vm43, %v27, 0
  %50 = vmatprep.subr.mxu0 0.0
  %51 = vmatpush1.msra.mxu0 %v28
  %52 = vmatprep.subr.mxu0 0.0
  %53 = vmatpush1.msra.mxu0 %v29
  %54 = vmatprep.subr.mxu0 0.0
  %55 = vmatpush1.msra.mxu0 %v30
  %56 = vmatprep.subr.mxu0 0.0
  %57 = vmatpush1.msra.mxu0 %v31
  %58 = vmatprep.subr.mxu0 0.0
  %59 = vmatpush1.msra.mxu0 %v32
  %60 = vmatprep.subr.mxu0 0.0
  %61 = vmatpush1.msra.mxu0 %v33
  %62 = vmatprep.subr.mxu0 0.0
  %63 = vmatpush1.msra.mxu0 %v34
  %64 = vmatprep.subr.mxu0 0.0
  %65 = vmatpush1.msra.mxu0 %v35
  %66 = vmatprep.subr.mxu0 0.0
  %67 = vmatpush1.msra.mxu0 0.0
  %68 = vmatprep.subr.mxu0 0.0
  %69 = vmatpush1.msra.mxu0 0.0
  %70 = vmatprep.subr.mxu0 0.0
  %71 = vmatpush1.msra.mxu0 0.0
  %72 = vmatprep.subr.mxu0 0.0
  %73 = vmatpush1.msra.mxu0 0.0
  %74 = vmatprep.subr.mxu0 0.0
  %75 = vmatpush1.msra.mxu0 0.0
  %76 = vmatprep.subr.mxu0 0.0
  %77 = vmatpush1.msra.mxu0 0.0
  %78 = vmatprep.subr.mxu0 0.0
  %79 = vmatpush1.msra.mxu0 0.0
  %80 = vmatprep.subr.mxu0 0.0
  %81 = vmatpush1.msra.mxu0 0.0
  %82 = vmatprep.subr.mxu0 0.0
  %83 = vmatpush1.msra.mxu0 0.0
  %84 = vmatprep.subr.mxu0 0.0
  %85 = vmatpush1.msra.mxu0 0.0
  %86 = vmatprep.subr.mxu0 0.0
  %87 = vmatpush1.msra.mxu0 0.0
  %88 = vmatprep.subr.mxu0 0.0
  %89 = vmatpush1.msra.mxu0 0.0
  %90 = vmatprep.subr.mxu0 0.0
  %91 = vmatpush1.msra.mxu0 0.0
  %92 = vmatprep.subr.mxu0 0.0
  %93 = vmatpush1.msra.mxu0 0.0
  %94 = vmatprep.subr.mxu0 0.0
  %95 = vmatpush1.msra.mxu0 0.0
  %96 = vmatprep.subr.mxu0 0.0
  %97 = vmatpush1.msra.mxu0 0.0
  %98 = vmatprep.subr.mxu0 0.0
  %99 = vmatpush1.msra.mxu0 0.0
  %100 = vmatprep.subr.mxu0 0.0
  %101 = vmatpush1.msra.mxu0 0.0
  %102 = vmatprep.subr.mxu0 0.0
  %103 = vmatpush1.msra.mxu0 0.0
  %104 = vmatprep.subr.mxu0 0.0
  %105 = vmatpush1.msra.mxu0 0.0
  %106 = vmatprep.subr.mxu0 0.0
  %107 = vmatpush1.msra.mxu0 0.0
  %108 = vmatprep.subr.mxu0 0.0
  %109 = vmatpush1.msra.mxu0 0.0
  %110 = vmatprep.subr.mxu0 0.0
  %111 = vmatpush1.msra.mxu0 0.0
  %112 = vmatprep.subr.mxu0 0.0
  %113 = vmatpush1.msra.mxu0 0.0
  %114 = vmatprep.mubr.f32.mxu0 0.0
  %115 = vmatmul.mubr.f32.gmra.mrb[0].mxu0 %v45
  %v116 = vpop.f32.mrb[0].mxu0
  %v117 = vadd.f32 %v41, %v116
  %v118 = vpop.f32.mrb[0].mxu0
  %119 = vmatprep.mubr.f32.mxu0 0.0
  %120 = vmatmul.mubr.f32.gmra.mrb[0].mxu0 %v48
  %v121 = vpop.f32.mrb[0].mxu0
  %v122 = vadd.f32 %v41, %v121
  %v123 = vpop.f32.mrb[0].mxu0
  %124 = vdwg.mxu0
  %v125 = vmax.f32 %v117, 0.0
  %v126 = vmax.f32 %v122, 0.0
  %v127 = vld [vmem:[%s3] sm:$0xff]
  %v128 = vld [vmem:[%s3 + $0x8] sm:$0xff]
  %v129 = vld [vmem:[%s3 + $0x10] sm:$0xff]
  %v130 = vld [vmem:[%s3 + $0x18] sm:$0xff]
  %v131 = vld [vmem:[%s4] sm:$0x1]
  %v133 = vlaneseq
  %v134 = vshrl.u32 %v133, 7
  %v135 = vsub.s32 0, %v134
  %v136 = vrot.slane %v131, %v135
  %vm138 = vcmask 261120
  %v140 = vsel %vm138, %v125, 0
  %v143 = vsel %vm138, %v126, 0
  %145 = vmatprep.subr.mxu0 0.0
  %146 = vmatpush1.msra.mxu0 %v127
  %147 = vmatprep.subr.mxu0 0.0
  %148 = vmatpush1.msra.mxu0 %v128
  %149 = vmatprep.subr.mxu0 0.0
  %150 = vmatpush1.msra.mxu0 %v129
  %151 = vmatprep.subr.mxu0 0.0
  %152 = vmatpush1.msra.mxu0 %v130
  %153 = vmatprep.subr.mxu0 0.0
  %154 = vmatpush1.msra.mxu0 0.0
  %155 = vmatprep.subr.mxu0 0.0
  %156 = vmatpush1.msra.mxu0 0.0
  %157 = vmatprep.subr.mxu0 0.0
  %158 = vmatpush1.msra.mxu0 0.0
  %159 = vmatprep.subr.mxu0 0.0
  %160 = vmatpush1.msra.mxu0 0.0
  %161 = vmatprep.subr.mxu0 0.0
  %162 = vmatpush1.msra.mxu0 0.0
  %163 = vmatprep.subr.mxu0 0.0
  %164 = vmatpush1.msra.mxu0 0.0
  %165 = vmatprep.subr.mxu0 0.0
  %166 = vmatpush1.msra.mxu0 0.0
  %167 = vmatprep.subr.mxu0 0.0
  %168 = vmatpush1.msra.mxu0 0.0
  %169 = vmatprep.subr.mxu0 0.0
  %170 = vmatpush1.msra.mxu0 0.0
  %171 = vmatprep.subr.mxu0 0.0
  %172 = vmatpush1.msra.mxu0 0.0
  %173 = vmatprep.subr.mxu0 0.0
  %174 = vmatpush1.msra.mxu0 0.0
  %175 = vmatprep.subr.mxu0 0.0
  %176 = vmatpush1.msra.mxu0 0.0
  %177 = vmatprep.subr.mxu0 0.0
  %178 = vmatpush1.msra.mxu0 0.0
  %179 = vmatprep.subr.mxu0 0.0
  %180 = vmatpush1.msra.mxu0 0.0
  %181 = vmatprep.subr.mxu0 0.0
  %182 = vmatpush1.msra.mxu0 0.0
  %183 = vmatprep.subr.mxu0 0.0
  %184 = vmatpush1.msra.mxu0 0.0
  %185 = vmatprep.subr.mxu0 0.0
  %186 = vmatpush1.msra.mxu0 0.0
  %187 = vmatprep.subr.mxu0 0.0
  %188 = vmatpush1.msra.mxu0 0.0
  %189 = vmatprep.subr.mxu0 0.0
  %190 = vmatpush1.msra.mxu0 0.0
  %191 = vmatprep.subr.mxu0 0.0
  %192 = vmatpush1.msra.mxu0 0.0
  %193 = vmatprep.subr.mxu0 0.0
  %194 = vmatpush1.msra.mxu0 0.0
  %195 = vmatprep.subr.mxu0 0.0
  %196 = vmatpush1.msra.mxu0 0.0
  %197 = vmatprep.subr.mxu0 0.0
  %198 = vmatpush1.msra.mxu0 0.0
  %199 = vmatprep.subr.mxu0 0.0
  %200 = vmatpush1.msra.mxu0 0.0
  %201 = vmatprep.subr.mxu0 0.0
  %202 = vmatpush1.msra.mxu0 0.0
  %203 = vmatprep.subr.mxu0 0.0
  %204 = vmatpush1.msra.mxu0 0.0
  %205 = vmatprep.subr.mxu0 0.0
  %206 = vmatpush1.msra.mxu0 0.0
  %207 = vmatprep.subr.mxu0 0.0
  %208 = vmatpush1.msra.mxu0 0.0
  %209 = vmatprep.mubr.f32.mxu0 0.0
  %210 = vmatmul.mubr.f32.gmra.mrb[0].mxu0 %v140
  %v211 = vpop.f32.mrb[0].mxu0
  %v212 = vadd.f32 %v136, %v211
  %v213 = vpop.f32.mrb[0].mxu0
  %214 = vmatprep.mubr.f32.mxu0 0.0
  %215 = vmatmul.mubr.f32.gmra.mrb[0].mxu0 %v143
  %v216 = vpop.f32.mrb[0].mxu0
  %v217 = vadd.f32 %v136, %v216
  %v218 = vpop.f32.mrb[0].mxu0
  %219 = vdwg.mxu0
  %v220 = vmax.f32 %v212, 0.0
  %v221 = vmax.f32 %v217, 0.0
  %v222 = vld [vmem:[%s5] sm:$0xff]
  %v223 = vld [vmem:[%s5 + $0x8] sm:$0xff]
  %v224 = vld [vmem:[%s5 + $0x10] sm:$0xff]
  %v225 = vld [vmem:[%s5 + $0x18] sm:$0xff]
  %v226 = vld [vmem:[%s6] sm:$0x1]
  %v228 = vlaneseq
  %v229 = vshrl.u32 %v228, 7
  %v230 = vsub.s32 0, %v229
  %v231 = vrot.slane %v226, %v230
  %v234 = vsel %vm138, %v220, 0
  %v237 = vsel %vm138, %v221, 0
  %239 = vmatprep.subr.mxu0 0.0
  %240 = vmatpush1.msra.mxu0 %v222
  %241 = vmatprep.subr.mxu0 0.0
  %242 = vmatpush1.msra.mxu0 %v223
  %243 = vmatprep.subr.mxu0 0.0
  %244 = vmatpush1.msra.mxu0 %v224
  %245 = vmatprep.subr.mxu0 0.0
  %246 = vmatpush1.msra.mxu0 %v225
  %247 = vmatprep.subr.mxu0 0.0
  %248 = vmatpush1.msra.mxu0 0.0
  %249 = vmatprep.subr.mxu0 0.0
  %250 = vmatpush1.msra.mxu0 0.0
  %251 = vmatprep.subr.mxu0 0.0
  %252 = vmatpush1.msra.mxu0 0.0
  %253 = vmatprep.subr.mxu0 0.0
  %254 = vmatpush1.msra.mxu0 0.0
  %255 = vmatprep.subr.mxu0 0.0
  %256 = vmatpush1.msra.mxu0 0.0
  %257 = vmatprep.subr.mxu0 0.0
  %258 = vmatpush1.msra.mxu0 0.0
  %259 = vmatprep.subr.mxu0 0.0
  %260 = vmatpush1.msra.mxu0 0.0
  %261 = vmatprep.subr.mxu0 0.0
  %262 = vmatpush1.msra.mxu0 0.0
  %263 = vmatprep.subr.mxu0 0.0
  %264 = vmatpush1.msra.mxu0 0.0
  %265 = vmatprep.subr.mxu0 0.0
  %266 = vmatpush1.msra.mxu0 0.0
  %267 = vmatprep.subr.mxu0 0.0
  %268 = vmatpush1.msra.mxu0 0.0
  %269 = vmatprep.subr.mxu0 0.0
  %270 = vmatpush1.msra.mxu0 0.0
  %271 = vmatprep.subr.mxu0 0.0
  %272 = vmatpush1.msra.mxu0 0.0
  %273 = vmatprep.subr.mxu0 0.0
  %274 = vmatpush1.msra.mxu0 0.0
  %275 = vmatprep.subr.mxu0 0.0
  %276 = vmatpush1.msra.mxu0 0.0
  %277 = vmatprep.subr.mxu0 0.0
  %278 = vmatpush1.msra.mxu0 0.0
  %279 = vmatprep.subr.mxu0 0.0
  %280 = vmatpush1.msra.mxu0 0.0
  %281 = vmatprep.subr.mxu0 0.0
  %282 = vmatpush1.msra.mxu0 0.0
  %283 = vmatprep.subr.mxu0 0.0
  %284 = vmatpush1.msra.mxu0 0.0
  %285 = vmatprep.subr.mxu0 0.0
  %286 = vmatpush1.msra.mxu0 0.0
  %287 = vmatprep.subr.mxu0 0.0
  %288 = vmatpush1.msra.mxu0 0.0
  %289 = vmatprep.subr.mxu0 0.0
  %290 = vmatpush1.msra.mxu0 0.0
  %291 = vmatprep.subr.mxu0 0.0
  %292 = vmatpush1.msra.mxu0 0.0
  %293 = vmatprep.subr.mxu0 0.0
  %294 = vmatpush1.msra.mxu0 0.0
  %295 = vmatprep.subr.mxu0 0.0
  %296 = vmatpush1.msra.mxu0 0.0
  %297 = vmatprep.subr.mxu0 0.0
  %298 = vmatpush1.msra.mxu0 0.0
  %299 = vmatprep.subr.mxu0 0.0
  %300 = vmatpush1.msra.mxu0 0.0
  %301 = vmatprep.subr.mxu0 0.0
  %302 = vmatpush1.msra.mxu0 0.0
  %303 = vmatprep.mubr.f32.mxu0 0.0
  %304 = vmatmul.mubr.f32.gmra.mrb[0].mxu0 %v234
  %v305 = vpop.f32.mrb[0].mxu0
  %v306 = vadd.f32 %v231, %v305
  %v307 = vpop.f32.mrb[0].mxu0
  %308 = vmatprep.mubr.f32.mxu0 0.0
  %309 = vmatmul.mubr.f32.gmra.mrb[0].mxu0 %v237
  %v310 = vpop.f32.mrb[0].mxu0
  %v311 = vadd.f32 %v231, %v310
  %v312 = vpop.f32.mrb[0].mxu0
  %313 = vdwg.mxu0
  %vm314 = vcmask 203776
  %315 = vst.msk [vmem:[%s7] sm:$0xff] %vm314, %v306
  %316 = vst.msk [vmem:[%s7 + $0x8] sm:$0xff] %vm314, %v311
  // Predicated region
  $region30: #{faster_rcnn_forward.5} parent=0 // pred_check
    _
  $region31: #{faster_rcnn_forward.5} parent=0 // pred_check_branch
    %318 = sbr.rel (0) target = $region33
  $region32: #{faster_rcnn_forward.5} parent=0 // pred_region
    _
  $region33: #{faster_rcnn_forward.5} parent=0 // pred_fallthru
    _
  // Predicated region
  $region34: #{faster_rcnn_forward.5} parent=0 // pred_check
    _
  $region35: #{faster_rcnn_forward.5} parent=0 // pred_check_branch
    %320 = sbr.rel (0) target = $region37
  $region36: #{faster_rcnn_forward.5} parent=0 // pred_region
    _
  $region37: #{faster_rcnn_forward.5} parent=0 // pred_fallthru
    _

</llo_original>
